<compile_context>
chip_gen: v5e
topology: v5e:2x2
jax: 0.10.0
libtpu: 0.0.40
codegen_flags: <defaults>
</compile_context>

<pallas_src>
import jax
import jax.numpy as jnp
from jax.experimental import pallas as pl
from jax.experimental.pallas import tpu as pltpu

_MAX_N_TILE = 1024


# ---------------------------------------------------------------------------
# Helpers
# ---------------------------------------------------------------------------
def _round_up(n, m):
    return ((n + m - 1) // m) * m


def _choose_tiling(n):
    """Returns (n_tile, n_pad, num_tiles) for the point axis."""
    if n <= _MAX_N_TILE:
        return n, n, 1                      # one full-N block per batch element
    n_pad = _round_up(n, _MAX_N_TILE)
    return _MAX_N_TILE, n_pad, n_pad // _MAX_N_TILE


# ---------------------------------------------------------------------------
# Kernel 1: channels-first point MLP (conv1-3, BN folded) + global max-pool
# ---------------------------------------------------------------------------
def _make_point_kernel(n_tile, n_valid, n_pad):
    mask_needed = (n_pad != n_valid)

    def kernel(x_ref,              # (1, K, NT)  f32
               w1_ref, b1_ref,     # (64,  K) bf16, (64,  1) f32
               w2_ref, b2_ref,     # (128, 64) bf16, (128, 1) f32
               w3_ref, b3_ref,     # (1024,128) bf16, (1024,1) f32
               out_ref):           # (1, 1024, 1) f32 (resident across N tiles)
        n = pl.program_id(1)

        @pl.when(n == 0)
        def _init():
            out_ref[0] = jnp.full(out_ref.shape[1:], -jnp.inf, dtype=out_ref.dtype)

        # bf16 cast in-register (avoids a separate HBM cast pass in the wrapper)
        x = x_ref[0].astype(jnp.bfloat16)                               # (K, NT)

        h = jnp.dot(w1_ref[...], x,
                    preferred_element_type=jnp.float32) + b1_ref[...]
        h = jnp.maximum(h, 0.0)                                         # (64, NT)
        h = jnp.dot(w2_ref[...], h.astype(jnp.bfloat16),
                    preferred_element_type=jnp.float32) + b2_ref[...]
        h = jnp.maximum(h, 0.0)                                         # (128, NT)
        h = jnp.dot(w3_ref[...], h.astype(jnp.bfloat16),
                    preferred_element_type=jnp.float32) + b3_ref[...]
        h = jnp.maximum(h, 0.0)                                         # (1024, NT)

        if mask_needed:
            # Tail columns (global point index >= n_valid) must not reach the max.
            col = jax.lax.broadcasted_iota(jnp.int32, (1, n_tile), 1) + n * n_tile
            h = jnp.where(col < n_valid, h, -jnp.inf)

        tile_max = jnp.max(h, axis=1, keepdims=True)                    # (1024, 1)
        out_ref[0] = jnp.maximum(out_ref[0], tile_max)

    return kernel


# ---------------------------------------------------------------------------
# Kernel 2: batched FC head (fc1/fc2/fc3, BN folded) + identity add
# ---------------------------------------------------------------------------
def _head_kernel(g_ref,                 # (B, 1024) f32 pooled features
                 w4_ref, b4_ref,        # (1024, 512) bf16, (1, 512) f32
                 w5_ref, b5_ref,        # (512, 256)  bf16, (1, 256) f32
                 w6_ref, b6_ref,        # (256, KKp)  bf16, (1, KKp) f32
                 iden_ref,              # (1, KKp) f32
                 out_ref):              # (B, KKp) f32
    g = g_ref[...].astype(jnp.bfloat16)
    h = jnp.maximum(
        jnp.dot(g, w4_ref[...], preferred_element_type=jnp.float32)
        + b4_ref[...], 0.0)
    h = jnp.maximum(
        jnp.dot(h.astype(jnp.bfloat16), w5_ref[...],
                preferred_element_type=jnp.float32) + b5_ref[...], 0.0)
    y = jnp.dot(h.astype(jnp.bfloat16), w6_ref[...],
                preferred_element_type=jnp.float32) + b6_ref[...]
    out_ref[...] = y + iden_ref[...]


# ---------------------------------------------------------------------------
# Wrapper
# ---------------------------------------------------------------------------
def stnkd_forward(x_bkn, params):
    """x_bkn: (B, k, N) float32 (PyTorch Conv1d layout). Returns (B, k, k)."""
    B, K, N = x_bkn.shape
    KK = K * K
    (w1, b1, w2, b2, w3, b3, w4, b4, w5, b5, w6, b6, iden) = params

    # -------- stage 1: per-point MLP + global max-pool (channels-first) ------
    n_tile, n_pad, num_tiles = _choose_tiling(N)
    x = x_bkn
    if n_pad != N:
        # Cheap zero-pad of the ragged tail; padded columns are masked to -inf
        # in-kernel before the max, so they never contribute.
        x = jnp.pad(x, ((0, 0), (0, 0), (0, n_pad - N)))

    w1t = jnp.transpose(w1).astype(jnp.bfloat16)            # (64,   K)
    w2t = jnp.transpose(w2).astype(jnp.bfloat16)            # (128,  64)
    w3t = jnp.transpose(w3).astype(jnp.bfloat16)            # (1024, 128)
    b1c = jnp.reshape(b1, (-1, 1)).astype(jnp.float32)      # (64,   1)
    b2c = jnp.reshape(b2, (-1, 1)).astype(jnp.float32)      # (128,  1)
    b3c = jnp.reshape(b3, (-1, 1)).astype(jnp.float32)      # (1024, 1)

    def const_spec(shape):
        return pl.BlockSpec(shape, lambda b, n: (0,) * len(shape))

    pooled = pl.pallas_call(
        _make_point_kernel(n_tile, N, n_pad),
        out_shape=jax.ShapeDtypeStruct((B, 1024, 1), jnp.float32),
        grid=(B, num_tiles),
        in_specs=[
            pl.BlockSpec((1, K, n_tile), lambda b, n: (b, 0, n)),
            const_spec(w1t.shape), const_spec(b1c.shape),
            const_spec(w2t.shape), const_spec(b2c.shape),
            const_spec(w3t.shape), const_spec(b3c.shape),
        ],
        out_specs=pl.BlockSpec((1, 1024, 1), lambda b, n: (b, 0, 0)),
        compiler_params=pltpu.CompilerParams(
            dimension_semantics=("parallel", "arbitrary"),
            vmem_limit_bytes=32 * 1024 * 1024,
        ),
    )(x, w1t, b1c, w2t, b2c, w3t, b3c)

    pooled = pooled.reshape(B, 1024)          # drop the trailing unit dim (free)

    # -------- stage 2: batched FC head (one tiny pallas_call) ----------------
    kk_pad = _round_up(KK, 128)   # lane-dense output guard (e.g. STN3d k=3)
    w4b = w4.astype(jnp.bfloat16)
    w5b = w5.astype(jnp.bfloat16)
    w6p = w6.astype(jnp.bfloat16)
    b4f = b4.astype(jnp.float32)
    b5f = b5.astype(jnp.float32)
    b6p = b6.astype(jnp.float32)
    idenp = iden.reshape(1, KK).astype(jnp.float32)
    if kk_pad != KK:
        w6p = jnp.pad(w6p, ((0, 0), (0, kk_pad - KK)))
        b6p = jnp.pad(b6p, ((0, 0), (0, kk_pad - KK)))
        idenp = jnp.pad(idenp, ((0, 0), (0, kk_pad - KK)))

    def full_spec(shape):
        return pl.BlockSpec(shape, lambda i: (0,) * len(shape))

    y = pl.pallas_call(
        _head_kernel,
        out_shape=jax.ShapeDtypeStruct((B, kk_pad), jnp.float32),
        grid=(1,),
        in_specs=[
            full_spec((B, 1024)),
            full_spec(w4b.shape), full_spec(b4f.shape),
            full_spec(w5b.shape), full_spec(b5f.shape),
            full_spec(w6p.shape), full_spec(b6p.shape),
            full_spec(idenp.shape),
        ],
        out_specs=full_spec((B, kk_pad)),
        compiler_params=pltpu.CompilerParams(
            dimension_semantics=("arbitrary",),
        ),
    )(pooled, w4b, b4f, w5b, b5f, w6p, b6p, idenp)

    return y[:, :KK].reshape(B, K, K)


# ---------------------------------------------------------------------------
# Parameter construction (BN folded, eval mode) + pure-JAX reference
# ---------------------------------------------------------------------------
def _fold_bn(w, b, gamma, beta, mean, var, eps=1e-5):
    scale = gamma / jnp.sqrt(var + eps)
    w_eff = w * scale[None, :]
    b_eff = (b - mean) * scale + beta
    return w_eff.astype(jnp.float32), b_eff.astype(jnp.float32)


def make_params(key, k=64):
    """Deterministic synthetic parameters mirroring STNkd.__init__ shapes."""
    dims = [(k, 64), (64, 128), (128, 1024), (1024, 512), (512, 256), (256, k * k)]
    has_bn = [True, True, True, True, True, False]
    keys = jax.random.split(key, 32)
    ki = iter(range(32))

    layers = []
    for (cin, cout), bn in zip(dims, has_bn):
        w = 0.05 * jax.random.normal(keys[next(ki)], (cin, cout), jnp.float32)
        b = 0.05 * jax.random.normal(keys[next(ki)], (cout,), jnp.float32)
        if bn:
            gamma = 1.0 + 0.1 * jax.random.normal(keys[next(ki)], (cout,), jnp.float32)
            beta = 0.1 * jax.random.normal(keys[next(ki)], (cout,), jnp.float32)
            mean = 0.05 * jax.random.normal(keys[next(ki)], (cout,), jnp.float32)
            var = 1.0 + 0.1 * jax.random.uniform(keys[next(ki)], (cout,), jnp.float32)
            w, b = _fold_bn(w, b, gamma, beta, mean, var)
        layers.append((w, b.reshape(1, -1)))

    (w1, b1), (w2, b2), (w3, b3), (w4, b4), (w5, b5), (w6, b6) = layers
    iden = jnp.eye(k, dtype=jnp.float32).reshape(1, k * k)
    return (w1, b1, w2, b2, w3, b3, w4, b4, w5, b5, w6, b6, iden)


def reference_forward(x_bkn, params):
    """Plain-JAX reference using the same bf16-operand / f32-accumulate recipe."""
    (w1, b1, w2, b2, w3, b3, w4, b4, w5, b5, w6, b6, iden) = params
    B, K, N = x_bkn.shape
    bf = lambda a: a.astype(jnp.bfloat16)

    def mm(a, w):
        return jax.lax.dot_general(
            bf(a), bf(w), (((a.ndim - 1,), (0,)), ((), ())),
            preferred_element_type=jnp.float32)

    x = jnp.transpose(x_bkn, (0, 2, 1))                      # (B, N, K)
    h = jax.nn.relu(mm(x, w1) + b1)
    h = jax.nn.relu(mm(h, w2) + b2)
    h = jax.nn.relu(mm(h, w3) + b3)
    g = jnp.max(h, axis=1)                                   # (B, 1024) f32
    g = jax.nn.relu(mm(g, w4) + b4)
    g = jax.nn.relu(mm(g, w5) + b5)
    y = mm(g, w6) + b6                                       # (B, K*K)
    return (y + iden).reshape(B, K, K)


if __name__ == "__main__":
    K = 16     # feature-transform size (STNkd k); small for the demo
    B = 2      # batch

    key = jax.random.PRNGKey(0)
    k_x1, k_x2, k_p = jax.random.split(key, 3)
    params = make_params(k_p, k=K)

    fwd = jax.jit(stnkd_forward)

    # Case 1: N <= 1024 -> single whole-N block per batch element (no padding).
    x_small = jax.random.normal(k_x1, (B, K, 256), jnp.float32)   # (B, k, N)
    out_small = jax.block_until_ready(fwd(x_small, params))
    ref_small = reference_forward(x_small, params)
    assert out_small.shape == (B, K, K)
    assert jnp.allclose(out_small, ref_small, atol=1e-2, rtol=1e-2), \
        float(jnp.max(jnp.abs(out_small - ref_small)))

    # Case 2: N = 1280 > 1024 -> 2 tiles of 1024, running max + tail masking.
    x_big = jax.random.normal(k_x2, (B, K, 1280), jnp.float32)
    out_big = jax.block_until_ready(fwd(x_big, params))
    ref_big = reference_forward(x_big, params)
    assert out_big.shape == (B, K, K)
    assert jnp.allclose(out_big, ref_big, atol=1e-2, rtol=1e-2), \
        float(jnp.max(jnp.abs(out_big - ref_big)))

    print("KERNEL_OK")
</pallas_src>

<mosaic_0001>
module attributes {stable_mosaic.version = 11 : i64} {
  func.func @kernel(%arg0: i32, %arg1: i32, %arg2: memref<1x16x256xf32, #tpu.memory_space<vmem>>, %arg3: memref<64x16xbf16, #tpu.memory_space<vmem>>, %arg4: memref<64x1xf32, #tpu.memory_space<vmem>>, %arg5: memref<128x64xbf16, #tpu.memory_space<vmem>>, %arg6: memref<128x1xf32, #tpu.memory_space<vmem>>, %arg7: memref<1024x128xbf16, #tpu.memory_space<vmem>>, %arg8: memref<1024x1xf32, #tpu.memory_space<vmem>>, %arg9: memref<1x1024x1xf32, #tpu.memory_space<vmem>>) attributes {dimension_semantics = [#tpu.dimension_semantics<parallel>, #tpu.dimension_semantics<arbitrary>], iteration_bounds = array<i64: 2, 1>, scalar_prefetch = 0 : i64, scratch_operands = 0 : i64, tpu.core_type = #tpu.core_type<tc>, window_params = [{transform_indices = @transform_0, window_bounds = array<i64: 1, 16, 256>}, {pipeline_mode = #tpu.pipeline_mode<synchronous>, transform_indices = @transform_1, window_bounds = array<i64: 64, 16>}, {pipeline_mode = #tpu.pipeline_mode<synchronous>, transform_indices = @transform_2, window_bounds = array<i64: 64, 1>}, {pipeline_mode = #tpu.pipeline_mode<synchronous>, transform_indices = @transform_3, window_bounds = array<i64: 128, 64>}, {pipeline_mode = #tpu.pipeline_mode<synchronous>, transform_indices = @transform_4, window_bounds = array<i64: 128, 1>}, {pipeline_mode = #tpu.pipeline_mode<synchronous>, transform_indices = @transform_5, window_bounds = array<i64: 1024, 128>}, {pipeline_mode = #tpu.pipeline_mode<synchronous>, transform_indices = @transform_6, window_bounds = array<i64: 1024, 1>}, {transform_indices = @transform_7, window_bounds = array<i64: 1, 1024, 1>}]} {
    %c0_i32 = arith.constant 0 : i32
    %0 = arith.cmpi eq, %arg1, %c0_i32 : i32
    %1 = arith.extui %0 : i1 to i32
    %c0_i32_0 = arith.constant 0 : i32
    %2 = arith.cmpi ne, %1, %c0_i32_0 : i32
    scf.if %2 {
      %cst_27 = arith.constant 0xFF800000 : f32
      %37 = vector.broadcast %cst_27 : f32 to vector<1024x1xf32>
      %c0_28 = arith.constant 0 : index
      %c0_29 = arith.constant 0 : index
      %c0_30 = arith.constant 0 : index
      %38 = vector.load %arg9[%c0_28, %c0_29, %c0_30] : memref<1x1024x1xf32, #tpu.memory_space<vmem>>, vector<1x1024x1xf32>
      %39 = vector.shape_cast %38 : vector<1x1024x1xf32> to vector<1024x1xf32>
      %40 = vector.shape_cast %37 : vector<1024x1xf32> to vector<1x1024x1xf32>
      tpu.vector_store %arg9[%c0_28, %c0_29, %c0_30], %40 {strides = array<i32>} : memref<1x1024x1xf32, #tpu.memory_space<vmem>>, vector<1x1024x1xf32>,
    } else {
    }
    %c0 = arith.constant 0 : index
    %c0_1 = arith.constant 0 : index
    %c0_2 = arith.constant 0 : index
    %3 = vector.load %arg2[%c0, %c0_1, %c0_2] : memref<1x16x256xf32, #tpu.memory_space<vmem>>, vector<1x16x256xf32>
    %4 = vector.shape_cast %3 : vector<1x16x256xf32> to vector<16x256xf32>
    %5 = arith.truncf %4 : vector<16x256xf32> to vector<16x256xbf16>
    %c0_3 = arith.constant 0 : index
    %c0_4 = arith.constant 0 : index
    %6 = vector.load %arg3[%c0_3, %c0_4] : memref<64x16xbf16, #tpu.memory_space<vmem>>, vector<64x16xbf16>
    %cst = arith.constant dense<0.000000e+00> : vector<64x256xf32>
    %7 = tpu.matmul %6, %5, %cst {dimension_numbers = #tpu.dot_dimension_numbers<[1], [0], [0], [1], [0, 0, 1, 1], [], []>} : vector<64x16xbf16>, vector<16x256xbf16>, vector<64x256xf32> -> vector<64x256xf32>
    %c0_5 = arith.constant 0 : index
    %c0_6 = arith.constant 0 : index
    %8 = vector.load %arg4[%c0_5, %c0_6] : memref<64x1xf32, #tpu.memory_space<vmem>>, vector<64x1xf32>
    %9 = vector.broadcast %8 : vector<64x1xf32> to vector<64x256xf32>
    %10 = arith.addf %7, %9 : vector<64x256xf32>
    %cst_7 = arith.constant 0.000000e+00 : f32
    %11 = vector.broadcast %cst_7 : f32 to vector<64x256xf32>
    %12 = arith.maximumf %10, %11 : vector<64x256xf32>
    %c0_8 = arith.constant 0 : index
    %c0_9 = arith.constant 0 : index
    %13 = vector.load %arg5[%c0_8, %c0_9] : memref<128x64xbf16, #tpu.memory_space<vmem>>, vector<128x64xbf16>
    %14 = arith.truncf %12 : vector<64x256xf32> to vector<64x256xbf16>
    %cst_10 = arith.constant dense<0.000000e+00> : vector<128x256xf32>
    %15 = tpu.matmul %13, %14, %cst_10 {dimension_numbers = #tpu.dot_dimension_numbers<[1], [0], [0], [1], [0, 0, 1, 1], [], []>} : vector<128x64xbf16>, vector<64x256xbf16>, vector<128x256xf32> -> vector<128x256xf32>
    %c0_11 = arith.constant 0 : index
    %c0_12 = arith.constant 0 : index
    %16 = vector.load %arg6[%c0_11, %c0_12] : memref<128x1xf32, #tpu.memory_space<vmem>>, vector<128x1xf32>
    %17 = vector.broadcast %16 : vector<128x1xf32> to vector<128x256xf32>
    %18 = arith.addf %15, %17 : vector<128x256xf32>
    %cst_13 = arith.constant 0.000000e+00 : f32
    %19 = vector.broadcast %cst_13 : f32 to vector<128x256xf32>
    %20 = arith.maximumf %18, %19 : vector<128x256xf32>
    %c0_14 = arith.constant 0 : index
    %c0_15 = arith.constant 0 : index
    %21 = vector.load %arg7[%c0_14, %c0_15] : memref<1024x128xbf16, #tpu.memory_space<vmem>>, vector<1024x128xbf16>
    %22 = arith.truncf %20 : vector<128x256xf32> to vector<128x256xbf16>
    %cst_16 = arith.constant dense<0.000000e+00> : vector<1024x256xf32>
    %23 = tpu.matmul %21, %22, %cst_16 {dimension_numbers = #tpu.dot_dimension_numbers<[1], [0], [0], [1], [0, 0, 1, 1], [], []>} : vector<1024x128xbf16>, vector<128x256xbf16>, vector<1024x256xf32> -> vector<1024x256xf32>
    %c0_17 = arith.constant 0 : index
    %c0_18 = arith.constant 0 : index
    %24 = vector.load %arg8[%c0_17, %c0_18] : memref<1024x1xf32, #tpu.memory_space<vmem>>, vector<1024x1xf32>
    %25 = vector.broadcast %24 : vector<1024x1xf32> to vector<1024x256xf32>
    %26 = arith.addf %23, %25 : vector<1024x256xf32>
    %cst_19 = arith.constant 0.000000e+00 : f32
    %27 = vector.broadcast %cst_19 : f32 to vector<1024x256xf32>
    %28 = arith.maximumf %26, %27 : vector<1024x256xf32>
    %cst_20 = arith.constant dense<0xFF800000> : vector<1024xf32>
    %29 = vector.multi_reduction <maximumf>, %28, %cst_20 [1] : vector<1024x256xf32> to vector<1024xf32>
    %30 = vector.shape_cast %29 : vector<1024xf32> to vector<1024x1xf32>
    %c0_21 = arith.constant 0 : index
    %c0_22 = arith.constant 0 : index
    %c0_23 = arith.constant 0 : index
    %31 = vector.load %arg9[%c0_21, %c0_22, %c0_23] : memref<1x1024x1xf32, #tpu.memory_space<vmem>>, vector<1x1024x1xf32>
    %32 = vector.shape_cast %31 : vector<1x1024x1xf32> to vector<1024x1xf32>
    %33 = arith.maximumf %32, %30 : vector<1024x1xf32>
    %c0_24 = arith.constant 0 : index
    %c0_25 = arith.constant 0 : index
    %c0_26 = arith.constant 0 : index
    %34 = vector.load %arg9[%c0_24, %c0_25, %c0_26] : memref<1x1024x1xf32, #tpu.memory_space<vmem>>, vector<1x1024x1xf32>
    %35 = vector.shape_cast %34 : vector<1x1024x1xf32> to vector<1024x1xf32>
    %36 = vector.shape_cast %33 : vector<1024x1xf32> to vector<1x1024x1xf32>
    tpu.vector_store %arg9[%c0_24, %c0_25, %c0_26], %36 {strides = array<i32>} : memref<1x1024x1xf32, #tpu.memory_space<vmem>>, vector<1x1024x1xf32>,
    return
  }
  func.func @transform_0(%arg0: i32, %arg1: i32) -> (i32, i32, i32) {
    %c0_i32 = arith.constant 0 : i32
    %c0_i32_0 = arith.constant 0 : i32
    return %arg0, %c0_i32, %arg1 : i32, i32, i32
  }
  func.func @transform_1(%arg0: i32, %arg1: i32) -> (i32, i32) {
    %c0_i32 = arith.constant 0 : i32
    %c0_i32_0 = arith.constant 0 : i32
    %c0_i32_1 = arith.constant 0 : i32
    return %c0_i32, %c0_i32_0 : i32, i32
  }
  func.func @transform_2(%arg0: i32, %arg1: i32) -> (i32, i32) {
    %c0_i32 = arith.constant 0 : i32
    %c0_i32_0 = arith.constant 0 : i32
    %c0_i32_1 = arith.constant 0 : i32
    return %c0_i32, %c0_i32_0 : i32, i32
  }
  func.func @transform_3(%arg0: i32, %arg1: i32) -> (i32, i32) {
    %c0_i32 = arith.constant 0 : i32
    %c0_i32_0 = arith.constant 0 : i32
    %c0_i32_1 = arith.constant 0 : i32
    return %c0_i32, %c0_i32_0 : i32, i32
  }
  func.func @transform_4(%arg0: i32, %arg1: i32) -> (i32, i32) {
    %c0_i32 = arith.constant 0 : i32
    %c0_i32_0 = arith.constant 0 : i32
    %c0_i32_1 = arith.constant 0 : i32
    return %c0_i32, %c0_i32_0 : i32, i32
  }
  func.func @transform_5(%arg0: i32, %arg1: i32) -> (i32, i32) {
    %c0_i32 = arith.constant 0 : i32
    %c0_i32_0 = arith.constant 0 : i32
    %c0_i32_1 = arith.constant 0 : i32
    return %c0_i32, %c0_i32_0 : i32, i32
  }
  func.func @transform_6(%arg0: i32, %arg1: i32) -> (i32, i32) {
    %c0_i32 = arith.constant 0 : i32
    %c0_i32_0 = arith.constant 0 : i32
    %c0_i32_1 = arith.constant 0 : i32
    return %c0_i32, %c0_i32_0 : i32, i32
  }
  func.func @transform_7(%arg0: i32, %arg1: i32) -> (i32, i32, i32) {
    %c0_i32 = arith.constant 0 : i32
    %c0_i32_0 = arith.constant 0 : i32
    %c0_i32_1 = arith.constant 0 : i32
    return %arg0, %c0_i32, %c0_i32_0 : i32, i32, i32
  }
}

module attributes {stable_mosaic.version = 11 : i64} {
  func.func @_head_kernel(%arg0: i32, %arg1: memref<2x1024xf32, #tpu.memory_space<vmem>>, %arg2: memref<1024x512xbf16, #tpu.memory_space<vmem>>, %arg3: memref<1x512xf32, #tpu.memory_space<vmem>>, %arg4: memref<512x256xbf16, #tpu.memory_space<vmem>>, %arg5: memref<1x256xf32, #tpu.memory_space<vmem>>, %arg6: memref<256x256xbf16, #tpu.memory_space<vmem>>, %arg7: memref<1x256xf32, #tpu.memory_space<vmem>>, %arg8: memref<1x256xf32, #tpu.memory_space<vmem>>, %arg9: memref<2x256xf32, #tpu.memory_space<vmem>>) attributes {dimension_semantics = [#tpu.dimension_semantics<arbitrary>], iteration_bounds = array<i64: 1>, scalar_prefetch = 0 : i64, scratch_operands = 0 : i64, tpu.core_type = #tpu.core_type<tc>, window_params = [{pipeline_mode = #tpu.pipeline_mode<synchronous>, transform_indices = @transform_0, window_bounds = array<i64: 2, 1024>}, {pipeline_mode = #tpu.pipeline_mode<synchronous>, transform_indices = @transform_1, window_bounds = array<i64: 1024, 512>}, {pipeline_mode = #tpu.pipeline_mode<synchronous>, transform_indices = @transform_2, window_bounds = array<i64: 1, 512>}, {pipeline_mode = #tpu.pipeline_mode<synchronous>, transform_indices = @transform_3, window_bounds = array<i64: 512, 256>}, {pipeline_mode = #tpu.pipeline_mode<synchronous>, transform_indices = @transform_4, window_bounds = array<i64: 1, 256>}, {pipeline_mode = #tpu.pipeline_mode<synchronous>, transform_indices = @transform_5, window_bounds = array<i64: 256, 256>}, {pipeline_mode = #tpu.pipeline_mode<synchronous>, transform_indices = @transform_6, window_bounds = array<i64: 1, 256>}, {pipeline_mode = #tpu.pipeline_mode<synchronous>, transform_indices = @transform_7, window_bounds = array<i64: 1, 256>}, {pipeline_mode = #tpu.pipeline_mode<synchronous>, transform_indices = @transform_8, window_bounds = array<i64: 2, 256>}]} {
    %c0 = arith.constant 0 : index
    %c0_0 = arith.constant 0 : index
    %0 = vector.load %arg1[%c0, %c0_0] : memref<2x1024xf32, #tpu.memory_space<vmem>>, vector<2x1024xf32>
    %1 = arith.truncf %0 : vector<2x1024xf32> to vector<2x1024xbf16>
    %c0_1 = arith.constant 0 : index
    %c0_2 = arith.constant 0 : index
    %2 = vector.load %arg2[%c0_1, %c0_2] : memref<1024x512xbf16, #tpu.memory_space<vmem>>, vector<1024x512xbf16>
    %cst = arith.constant dense<0.000000e+00> : vector<2x512xf32>
    %3 = tpu.matmul %1, %2, %cst {dimension_numbers = #tpu.dot_dimension_numbers<[1], [0], [0], [1], [0, 0, 1, 1], [], []>} : vector<2x1024xbf16>, vector<1024x512xbf16>, vector<2x512xf32> -> vector<2x512xf32>
    %c0_3 = arith.constant 0 : index
    %c0_4 = arith.constant 0 : index
    %4 = vector.load %arg3[%c0_3, %c0_4] : memref<1x512xf32, #tpu.memory_space<vmem>>, vector<1x512xf32>
    %5 = vector.broadcast %4 : vector<1x512xf32> to vector<2x512xf32>
    %6 = arith.addf %3, %5 : vector<2x512xf32>
    %cst_5 = arith.constant 0.000000e+00 : f32
    %7 = vector.broadcast %cst_5 : f32 to vector<2x512xf32>
    %8 = arith.maximumf %6, %7 : vector<2x512xf32>
    %9 = arith.truncf %8 : vector<2x512xf32> to vector<2x512xbf16>
    %c0_6 = arith.constant 0 : index
    %c0_7 = arith.constant 0 : index
    %10 = vector.load %arg4[%c0_6, %c0_7] : memref<512x256xbf16, #tpu.memory_space<vmem>>, vector<512x256xbf16>
    %cst_8 = arith.constant dense<0.000000e+00> : vector<2x256xf32>
    %11 = tpu.matmul %9, %10, %cst_8 {dimension_numbers = #tpu.dot_dimension_numbers<[1], [0], [0], [1], [0, 0, 1, 1], [], []>} : vector<2x512xbf16>, vector<512x256xbf16>, vector<2x256xf32> -> vector<2x256xf32>
    %c0_9 = arith.constant 0 : index
    %c0_10 = arith.constant 0 : index
    %12 = vector.load %arg5[%c0_9, %c0_10] : memref<1x256xf32, #tpu.memory_space<vmem>>, vector<1x256xf32>
    %13 = vector.broadcast %12 : vector<1x256xf32> to vector<2x256xf32>
    %14 = arith.addf %11, %13 : vector<2x256xf32>
    %cst_11 = arith.constant 0.000000e+00 : f32
    %15 = vector.broadcast %cst_11 : f32 to vector<2x256xf32>
    %16 = arith.maximumf %14, %15 : vector<2x256xf32>
    %17 = arith.truncf %16 : vector<2x256xf32> to vector<2x256xbf16>
    %c0_12 = arith.constant 0 : index
    %c0_13 = arith.constant 0 : index
    %18 = vector.load %arg6[%c0_12, %c0_13] : memref<256x256xbf16, #tpu.memory_space<vmem>>, vector<256x256xbf16>
    %cst_14 = arith.constant dense<0.000000e+00> : vector<2x256xf32>
    %19 = tpu.matmul %17, %18, %cst_14 {dimension_numbers = #tpu.dot_dimension_numbers<[1], [0], [0], [1], [0, 0, 1, 1], [], []>} : vector<2x256xbf16>, vector<256x256xbf16>, vector<2x256xf32> -> vector<2x256xf32>
    %c0_15 = arith.constant 0 : index
    %c0_16 = arith.constant 0 : index
    %20 = vector.load %arg7[%c0_15, %c0_16] : memref<1x256xf32, #tpu.memory_space<vmem>>, vector<1x256xf32>
    %21 = vector.broadcast %20 : vector<1x256xf32> to vector<2x256xf32>
    %22 = arith.addf %19, %21 : vector<2x256xf32>
    %c0_17 = arith.constant 0 : index
    %c0_18 = arith.constant 0 : index
    %23 = vector.load %arg8[%c0_17, %c0_18] : memref<1x256xf32, #tpu.memory_space<vmem>>, vector<1x256xf32>
    %24 = vector.broadcast %23 : vector<1x256xf32> to vector<2x256xf32>
    %25 = arith.addf %22, %24 : vector<2x256xf32>
    %c0_19 = arith.constant 0 : index
    %c0_20 = arith.constant 0 : index
    %26 = vector.load %arg9[%c0_19, %c0_20] : memref<2x256xf32, #tpu.memory_space<vmem>>, vector<2x256xf32>
    tpu.vector_store %arg9[%c0_19, %c0_20], %25 {strides = array<i32>} : memref<2x256xf32, #tpu.memory_space<vmem>>, vector<2x256xf32>,
    return
  }
  func.func @transform_0(%arg0: i32) -> (i32, i32) {
    %c0_i32 = arith.constant 0 : i32
    %c0_i32_0 = arith.constant 0 : i32
    %c0_i32_1 = arith.constant 0 : i32
    return %c0_i32, %c0_i32_0 : i32, i32
  }
  func.func @transform_1(%arg0: i32) -> (i32, i32) {
    %c0_i32 = arith.constant 0 : i32
    %c0_i32_0 = arith.constant 0 : i32
    %c0_i32_1 = arith.constant 0 : i32
    return %c0_i32, %c0_i32_0 : i32, i32
  }
  func.func @transform_2(%arg0: i32) -> (i32, i32) {
    %c0_i32 = arith.constant 0 : i32
    %c0_i32_0 = arith.constant 0 : i32
    %c0_i32_1 = arith.constant 0 : i32
    return %c0_i32, %c0_i32_0 : i32, i32
  }
  func.func @transform_3(%arg0: i32) -> (i32, i32) {
    %c0_i32 = arith.constant 0 : i32
    %c0_i32_0 = arith.constant 0 : i32
    %c0_i32_1 = arith.constant 0 : i32
    return %c0_i32, %c0_i32_0 : i32, i32
  }
  func.func @transform_4(%arg0: i32) -> (i32, i32) {
    %c0_i32 = arith.constant 0 : i32
    %c0_i32_0 = arith.constant 0 : i32
    %c0_i32_1 = arith.constant 0 : i32
    return %c0_i32, %c0_i32_0 : i32, i32
  }
  func.func @transform_5(%arg0: i32) -> (i32, i32) {
    %c0_i32 = arith.constant 0 : i32
    %c0_i32_0 = arith.constant 0 : i32
    %c0_i32_1 = arith.constant 0 : i32
    return %c0_i32, %c0_i32_0 : i32, i32
  }
  func.func @transform_6(%arg0: i32) -> (i32, i32) {
    %c0_i32 = arith.constant 0 : i32
    %c0_i32_0 = arith.constant 0 : i32
    %c0_i32_1 = arith.constant 0 : i32
    return %c0_i32, %c0_i32_0 : i32, i32
  }
  func.func @transform_7(%arg0: i32) -> (i32, i32) {
    %c0_i32 = arith.constant 0 : i32
    %c0_i32_0 = arith.constant 0 : i32
    %c0_i32_1 = arith.constant 0 : i32
    return %c0_i32, %c0_i32_0 : i32, i32
  }
  func.func @transform_8(%arg0: i32) -> (i32, i32) {
    %c0_i32 = arith.constant 0 : i32
    %c0_i32_0 = arith.constant 0 : i32
    %c0_i32_1 = arith.constant 0 : i32
    return %c0_i32, %c0_i32_0 : i32, i32
  }
}

</mosaic_0001>

<llo_original>
// kernel: stnkd_forward.3
$region0: #{stnkd_forward.3}
  #allocation0 [shape = 'u32[]', space=smem, size = 0x4, offset = 0x4, fixed_abs, tag = 'smem constant byte address 0x4 - core index']
  #allocation1 [shape = 'u32[72,128]{1,0:T(1,128)}', space=vmem, size = 0x9000, scoped, tag = 'internal scratch']
  %s0 = inlined_call_operand.vmem [shape: f32[2,1024], index: 0, kind: input, shape index: {}]
  %s1 = inlined_call_operand.vmem [shape: bf16[1024,512], index: 1, kind: input, shape index: {}]
  %s2 = inlined_call_operand.vmem [shape: f32[1,512], index: 2, kind: input, shape index: {}]
  %s3 = inlined_call_operand.vmem [shape: bf16[512,256], index: 3, kind: input, shape index: {}]
  %s4 = inlined_call_operand.vmem [shape: f32[1,256], index: 4, kind: input, shape index: {}]
  %s5 = inlined_call_operand.vmem [shape: bf16[256,256], index: 5, kind: input, shape index: {}]
  %s6 = inlined_call_operand.vmem [shape: f32[1,256], index: 6, kind: input, shape index: {}]
  %s7 = inlined_call_operand.vmem [shape: f32[1,256], index: 7, kind: input, shape index: {}]
  %s8 = inlined_call_operand.vmem [shape: f32[2,256], index: 8, kind: output, shape index: {}]
  %s9 = sld [smem:[#allocation0]]
  $region42: #{stnkd_forward.3} parent=0
    _
  %s11 = ssub.s32 1, %s9
  %s12 = scalar_select 0, %s11, %s9
  // Predicated region
  $region2: #{stnkd_forward.3} parent=0 // pred_check
    _
  $region3: #{stnkd_forward.3} parent=0 // pred_check_branch
    %14 = sbr.rel (0) target = $region5
  $region4: #{stnkd_forward.3} parent=0 // pred_region
    _
  $region5: #{stnkd_forward.3} parent=0 // pred_fallthru
    _
  // Predicated region
  $region6: #{stnkd_forward.3} parent=0 // pred_check
    _
  $region7: #{stnkd_forward.3} parent=0 // pred_check_branch
    %16 = sbr.rel (0) target = $region9
  $region8: #{stnkd_forward.3} parent=0 // pred_region
    _
  $region9: #{stnkd_forward.3} parent=0 // pred_fallthru
    _
  // Predicated region
  $region10: #{stnkd_forward.3} parent=0 // pred_check
    _
  $region11: #{stnkd_forward.3} parent=0 // pred_check_branch
    %18 = sbr.rel (0) target = $region13
  $region12: #{stnkd_forward.3} parent=0 // pred_region
    _
  $region13: #{stnkd_forward.3} parent=0 // pred_fallthru
    _
  // Predicated region
  $region14: #{stnkd_forward.3} parent=0 // pred_check
    _
  $region15: #{stnkd_forward.3} parent=0 // pred_check_branch
    %20 = sbr.rel (0) target = $region17
  $region16: #{stnkd_forward.3} parent=0 // pred_region
    _
  $region17: #{stnkd_forward.3} parent=0 // pred_fallthru
    _
  // Predicated region
  $region18: #{stnkd_forward.3} parent=0 // pred_check
    _
  $region19: #{stnkd_forward.3} parent=0 // pred_check_branch
    %22 = sbr.rel (0) target = $region21
  $region20: #{stnkd_forward.3} parent=0 // pred_region
    _
  $region21: #{stnkd_forward.3} parent=0 // pred_fallthru
    _
  // Predicated region
  $region22: #{stnkd_forward.3} parent=0 // pred_check
    _
  $region23: #{stnkd_forward.3} parent=0 // pred_check_branch
    %24 = sbr.rel (0) target = $region25
  $region24: #{stnkd_forward.3} parent=0 // pred_region
    _
  $region25: #{stnkd_forward.3} parent=0 // pred_fallthru
    _
  // Predicated region
  $region26: #{stnkd_forward.3} parent=0 // pred_check
    _
  $region27: #{stnkd_forward.3} parent=0 // pred_check_branch
    %26 = sbr.rel (0) target = $region29
  $region28: #{stnkd_forward.3} parent=0 // pred_region
    _
  $region29: #{stnkd_forward.3} parent=0 // pred_fallthru
    _
  // Predicated region
  $region30: #{stnkd_forward.3} parent=0 // pred_check
    _
  $region31: #{stnkd_forward.3} parent=0 // pred_check_branch
    %28 = sbr.rel (0) target = $region33
  $region32: #{stnkd_forward.3} parent=0 // pred_region
    _
  $region33: #{stnkd_forward.3} parent=0 // pred_fallthru
    _
  %v29 = vld [vmem:[%s0] sm:$0xff]
  %v30 = vld [vmem:[%s0 + $0x8] sm:$0xff]
  %33 = vst [vmem:[#allocation1] ss:$4 sm:$0xff] %v29
  %s34 = scalar_lea.vmem [#allocation1], 32
  %35 = vst [vmem:[%s34] ss:$4 sm:$0xff] %v30
  %v36 = vld.sshfl [vmem:[#allocation1] sm:$0xff pattern:$0x73625140]
  %v37 = vld.sshfl [vmem:[#allocation1 + $0x8] sm:$0xff pattern:$0x73625140]
  %v38 = vld.sshfl [vmem:[#allocation1 + $0x10] sm:$0xff pattern:$0x73625140]
  %v39 = vld.sshfl [vmem:[#allocation1 + $0x18] sm:$0xff pattern:$0x73625140]
  %v40 = vld.sshfl [vmem:[#allocation1 + $0x20] sm:$0xff pattern:$0x73625140]
  %v41 = vld.sshfl [vmem:[#allocation1 + $0x28] sm:$0xff pattern:$0x73625140]
  %v42 = vld.sshfl [vmem:[#allocation1 + $0x30] sm:$0xff pattern:$0x73625140]
  %v43 = vld.sshfl [vmem:[#allocation1 + $0x38] sm:$0xff pattern:$0x73625140]
  %v52 = vpack.c.bf16 %v36, %v36
  %v53 = vpack.c.bf16 %v37, %v37
  %v54 = vpack.c.bf16 %v38, %v38
  %v55 = vpack.c.bf16 %v39, %v39
  %v56 = vpack.c.bf16 %v40, %v40
  %v57 = vpack.c.bf16 %v41, %v41
  %v58 = vpack.c.bf16 %v42, %v42
  %v59 = vpack.c.bf16 %v43, %v43
  %v60 = vld [vmem:[%s1] sm:$0xff]
  %v61 = vld [vmem:[%s1 + $0x8] sm:$0xff]
  %v62 = vld [vmem:[%s1 + $0x10] sm:$0xff]
  %v63 = vld [vmem:[%s1 + $0x18] sm:$0xff]
  %v64 = vld [vmem:[%s1 + $0x20] sm:$0xff]
  %v65 = vld [vmem:[%s1 + $0x28] sm:$0xff]
  %v66 = vld [vmem:[%s1 + $0x30] sm:$0xff]
  %v67 = vld [vmem:[%s1 + $0x38] sm:$0xff]
  %v68 = vld [vmem:[%s1 + $0x40] sm:$0xff]
  %v69 = vld [vmem:[%s1 + $0x48] sm:$0xff]
  %v70 = vld [vmem:[%s1 + $0x50] sm:$0xff]
  %v71 = vld [vmem:[%s1 + $0x58] sm:$0xff]
  %v72 = vld [vmem:[%s1 + $0x60] sm:$0xff]
  %v73 = vld [vmem:[%s1 + $0x68] sm:$0xff]
  %v74 = vld [vmem:[%s1 + $0x70] sm:$0xff]
  %v75 = vld [vmem:[%s1 + $0x78] sm:$0xff]
  %v76 = vld [vmem:[%s1 + $0x80] sm:$0xff]
  %v77 = vld [vmem:[%s1 + $0x88] sm:$0xff]
  %v78 = vld [vmem:[%s1 + $0x90] sm:$0xff]
  %v79 = vld [vmem:[%s1 + $0x98] sm:$0xff]
  %v80 = vld [vmem:[%s1 + $0xa0] sm:$0xff]
  %v81 = vld [vmem:[%s1 + $0xa8] sm:$0xff]
  %v82 = vld [vmem:[%s1 + $0xb0] sm:$0xff]
  %v83 = vld [vmem:[%s1 + $0xb8] sm:$0xff]
  %v84 = vld [vmem:[%s1 + $0xc0] sm:$0xff]
  %v85 = vld [vmem:[%s1 + $0xc8] sm:$0xff]
  %v86 = vld [vmem:[%s1 + $0xd0] sm:$0xff]
  %v87 = vld [vmem:[%s1 + $0xd8] sm:$0xff]
  %v88 = vld [vmem:[%s1 + $0xe0] sm:$0xff]
  %v89 = vld [vmem:[%s1 + $0xe8] sm:$0xff]
  %v90 = vld [vmem:[%s1 + $0xf0] sm:$0xff]
  %v91 = vld [vmem:[%s1 + $0xf8] sm:$0xff]
  %v92 = vld [vmem:[%s1 + $0x100] sm:$0xff]
  %v93 = vld [vmem:[%s1 + $0x108] sm:$0xff]
  %v94 = vld [vmem:[%s1 + $0x110] sm:$0xff]
  %v95 = vld [vmem:[%s1 + $0x118] sm:$0xff]
  %v96 = vld [vmem:[%s1 + $0x120] sm:$0xff]
  %v97 = vld [vmem:[%s1 + $0x128] sm:$0xff]
  %v98 = vld [vmem:[%s1 + $0x130] sm:$0xff]
  %v99 = vld [vmem:[%s1 + $0x138] sm:$0xff]
  %v100 = vld [vmem:[%s1 + $0x140] sm:$0xff]
  %v101 = vld [vmem:[%s1 + $0x148] sm:$0xff]
  %v102 = vld [vmem:[%s1 + $0x150] sm:$0xff]
  %v103 = vld [vmem:[%s1 + $0x158] sm:$0xff]
  %v104 = vld [vmem:[%s1 + $0x160] sm:$0xff]
  %v105 = vld [vmem:[%s1 + $0x168] sm:$0xff]
  %v106 = vld [vmem:[%s1 + $0x170] sm:$0xff]
  %v107 = vld [vmem:[%s1 + $0x178] sm:$0xff]
  %v108 = vld [vmem:[%s1 + $0x180] sm:$0xff]
  %v109 = vld [vmem:[%s1 + $0x188] sm:$0xff]
  %v110 = vld [vmem:[%s1 + $0x190] sm:$0xff]
  %v111 = vld [vmem:[%s1 + $0x198] sm:$0xff]
  %v112 = vld [vmem:[%s1 + $0x1a0] sm:$0xff]
  %v113 = vld [vmem:[%s1 + $0x1a8] sm:$0xff]
  %v114 = vld [vmem:[%s1 + $0x1b0] sm:$0xff]
  %v115 = vld [vmem:[%s1 + $0x1b8] sm:$0xff]
  %v116 = vld [vmem:[%s1 + $0x1c0] sm:$0xff]
  %v117 = vld [vmem:[%s1 + $0x1c8] sm:$0xff]
  %v118 = vld [vmem:[%s1 + $0x1d0] sm:$0xff]
  %v119 = vld [vmem:[%s1 + $0x1d8] sm:$0xff]
  %v120 = vld [vmem:[%s1 + $0x1e0] sm:$0xff]
  %v121 = vld [vmem:[%s1 + $0x1e8] sm:$0xff]
  %v122 = vld [vmem:[%s1 + $0x1f0] sm:$0xff]
  %v123 = vld [vmem:[%s1 + $0x1f8] sm:$0xff]
  %v124 = vld [vmem:[%s1 + $0x200] sm:$0xff]
  %v125 = vld [vmem:[%s1 + $0x208] sm:$0xff]
  %v126 = vld [vmem:[%s1 + $0x210] sm:$0xff]
  %v127 = vld [vmem:[%s1 + $0x218] sm:$0xff]
  %v128 = vld [vmem:[%s1 + $0x220] sm:$0xff]
  %v129 = vld [vmem:[%s1 + $0x228] sm:$0xff]
  %v130 = vld [vmem:[%s1 + $0x230] sm:$0xff]
  %v131 = vld [vmem:[%s1 + $0x238] sm:$0xff]
  %v132 = vld [vmem:[%s1 + $0x240] sm:$0xff]
  %v133 = vld [vmem:[%s1 + $0x248] sm:$0xff]
  %v134 = vld [vmem:[%s1 + $0x250] sm:$0xff]
  %v135 = vld [vmem:[%s1 + $0x258] sm:$0xff]
  %v136 = vld [vmem:[%s1 + $0x260] sm:$0xff]
  %v137 = vld [vmem:[%s1 + $0x268] sm:$0xff]
  %v138 = vld [vmem:[%s1 + $0x270] sm:$0xff]
  %v139 = vld [vmem:[%s1 + $0x278] sm:$0xff]
  %v140 = vld [vmem:[%s1 + $0x280] sm:$0xff]
  %v141 = vld [vmem:[%s1 + $0x288] sm:$0xff]
  %v142 = vld [vmem:[%s1 + $0x290] sm:$0xff]
  %v143 = vld [vmem:[%s1 + $0x298] sm:$0xff]
  %v144 = vld [vmem:[%s1 + $0x2a0] sm:$0xff]
  %v145 = vld [vmem:[%s1 + $0x2a8] sm:$0xff]
  %v146 = vld [vmem:[%s1 + $0x2b0] sm:$0xff]
  %v147 = vld [vmem:[%s1 + $0x2b8] sm:$0xff]
  %v148 = vld [vmem:[%s1 + $0x2c0] sm:$0xff]
  %v149 = vld [vmem:[%s1 + $0x2c8] sm:$0xff]
  %v150 = vld [vmem:[%s1 + $0x2d0] sm:$0xff]
  %v151 = vld [vmem:[%s1 + $0x2d8] sm:$0xff]
  %v152 = vld [vmem:[%s1 + $0x2e0] sm:$0xff]
  %v153 = vld [vmem:[%s1 + $0x2e8] sm:$0xff]
  %v154 = vld [vmem:[%s1 + $0x2f0] sm:$0xff]
  %v155 = vld [vmem:[%s1 + $0x2f8] sm:$0xff]
  %v156 = vld [vmem:[%s1 + $0x300] sm:$0xff]
  %v157 = vld [vmem:[%s1 + $0x308] sm:$0xff]
  %v158 = vld [vmem:[%s1 + $0x310] sm:$0xff]
  %v159 = vld [vmem:[%s1 + $0x318] sm:$0xff]
  %v160 = vld [vmem:[%s1 + $0x320] sm:$0xff]
  %v161 = vld [vmem:[%s1 + $0x328] sm:$0xff]
  %v162 = vld [vmem:[%s1 + $0x330] sm:$0xff]
  %v163 = vld [vmem:[%s1 + $0x338] sm:$0xff]
  %v164 = vld [vmem:[%s1 + $0x340] sm:$0xff]
  %v165 = vld [vmem:[%s1 + $0x348] sm:$0xff]
  %v166 = vld [vmem:[%s1 + $0x350] sm:$0xff]
  %v167 = vld [vmem:[%s1 + $0x358] sm:$0xff]
  %v168 = vld [vmem:[%s1 + $0x360] sm:$0xff]
  %v169 = vld [vmem:[%s1 + $0x368] sm:$0xff]
  %v170 = vld [vmem:[%s1 + $0x370] sm:$0xff]
  %v171 = vld [vmem:[%s1 + $0x378] sm:$0xff]
  %v172 = vld [vmem:[%s1 + $0x380] sm:$0xff]
  %v173 = vld [vmem:[%s1 + $0x388] sm:$0xff]
  %v174 = vld [vmem:[%s1 + $0x390] sm:$0xff]
  %v175 = vld [vmem:[%s1 + $0x398] sm:$0xff]
  %v176 = vld [vmem:[%s1 + $0x3a0] sm:$0xff]
  %v177 = vld [vmem:[%s1 + $0x3a8] sm:$0xff]
  %v178 = vld [vmem:[%s1 + $0x3b0] sm:$0xff]
  %v179 = vld [vmem:[%s1 + $0x3b8] sm:$0xff]
  %v180 = vld [vmem:[%s1 + $0x3c0] sm:$0xff]
  %v181 = vld [vmem:[%s1 + $0x3c8] sm:$0xff]
  %v182 = vld [vmem:[%s1 + $0x3d0] sm:$0xff]
  %v183 = vld [vmem:[%s1 + $0x3d8] sm:$0xff]
  %v184 = vld [vmem:[%s1 + $0x3e0] sm:$0xff]
  %v185 = vld [vmem:[%s1 + $0x3e8] sm:$0xff]
  %v186 = vld [vmem:[%s1 + $0x3f0] sm:$0xff]
  %v187 = vld [vmem:[%s1 + $0x3f8] sm:$0xff]
  %v188 = vld [vmem:[%s1 + $0x400] sm:$0xff]
  %v189 = vld [vmem:[%s1 + $0x408] sm:$0xff]
  %v190 = vld [vmem:[%s1 + $0x410] sm:$0xff]
  %v191 = vld [vmem:[%s1 + $0x418] sm:$0xff]
  %v192 = vld [vmem:[%s1 + $0x420] sm:$0xff]
  %v193 = vld [vmem:[%s1 + $0x428] sm:$0xff]
  %v194 = vld [vmem:[%s1 + $0x430] sm:$0xff]
  %v195 = vld [vmem:[%s1 + $0x438] sm:$0xff]
  %v196 = vld [vmem:[%s1 + $0x440] sm:$0xff]
  %v197 = vld [vmem:[%s1 + $0x448] sm:$0xff]
  %v198 = vld [vmem:[%s1 + $0x450] sm:$0xff]
  %v199 = vld [vmem:[%s1 + $0x458] sm:$0xff]
  %v200 = vld [vmem:[%s1 + $0x460] sm:$0xff]
  %v201 = vld [vmem:[%s1 + $0x468] sm:$0xff]
  %v202 = vld [vmem:[%s1 + $0x470] sm:$0xff]
  %v203 = vld [vmem:[%s1 + $0x478] sm:$0xff]
  %v204 = vld [vmem:[%s1 + $0x480] sm:$0xff]
  %v205 = vld [vmem:[%s1 + $0x488] sm:$0xff]
  %v206 = vld [vmem:[%s1 + $0x490] sm:$0xff]
  %v207 = vld [vmem:[%s1 + $0x498] sm:$0xff]
  %v208 = vld [vmem:[%s1 + $0x4a0] sm:$0xff]
  %v209 = vld [vmem:[%s1 + $0x4a8] sm:$0xff]
  %v210 = vld [vmem:[%s1 + $0x4b0] sm:$0xff]
  %v211 = vld [vmem:[%s1 + $0x4b8] sm:$0xff]
  %v212 = vld [vmem:[%s1 + $0x4c0] sm:$0xff]
  %v213 = vld [vmem:[%s1 + $0x4c8] sm:$0xff]
  %v214 = vld [vmem:[%s1 + $0x4d0] sm:$0xff]
  %v215 = vld [vmem:[%s1 + $0x4d8] sm:$0xff]
  %v216 = vld [vmem:[%s1 + $0x4e0] sm:$0xff]
  %v217 = vld [vmem:[%s1 + $0x4e8] sm:$0xff]
  %v218 = vld [vmem:[%s1 + $0x4f0] sm:$0xff]
  %v219 = vld [vmem:[%s1 + $0x4f8] sm:$0xff]
  %v220 = vld [vmem:[%s1 + $0x500] sm:$0xff]
  %v221 = vld [vmem:[%s1 + $0x508] sm:$0xff]
  %v222 = vld [vmem:[%s1 + $0x510] sm:$0xff]
  %v223 = vld [vmem:[%s1 + $0x518] sm:$0xff]
  %v224 = vld [vmem:[%s1 + $0x520] sm:$0xff]
  %v225 = vld [vmem:[%s1 + $0x528] sm:$0xff]
  %v226 = vld [vmem:[%s1 + $0x530] sm:$0xff]
  %v227 = vld [vmem:[%s1 + $0x538] sm:$0xff]
  %v228 = vld [vmem:[%s1 + $0x540] sm:$0xff]
  %v229 = vld [vmem:[%s1 + $0x548] sm:$0xff]
  %v230 = vld [vmem:[%s1 + $0x550] sm:$0xff]
  %v231 = vld [vmem:[%s1 + $0x558] sm:$0xff]
  %v232 = vld [vmem:[%s1 + $0x560] sm:$0xff]
  %v233 = vld [vmem:[%s1 + $0x568] sm:$0xff]
  %v234 = vld [vmem:[%s1 + $0x570] sm:$0xff]
  %v235 = vld [vmem:[%s1 + $0x578] sm:$0xff]
  %v236 = vld [vmem:[%s1 + $0x580] sm:$0xff]
  %v237 = vld [vmem:[%s1 + $0x588] sm:$0xff]
  %v238 = vld [vmem:[%s1 + $0x590] sm:$0xff]
  %v239 = vld [vmem:[%s1 + $0x598] sm:$0xff]
  %v240 = vld [vmem:[%s1 + $0x5a0] sm:$0xff]
  %v241 = vld [vmem:[%s1 + $0x5a8] sm:$0xff]
  %v242 = vld [vmem:[%s1 + $0x5b0] sm:$0xff]
  %v243 = vld [vmem:[%s1 + $0x5b8] sm:$0xff]
  %v244 = vld [vmem:[%s1 + $0x5c0] sm:$0xff]
  %v245 = vld [vmem:[%s1 + $0x5c8] sm:$0xff]
  %v246 = vld [vmem:[%s1 + $0x5d0] sm:$0xff]
  %v247 = vld [vmem:[%s1 + $0x5d8] sm:$0xff]
  %v248 = vld [vmem:[%s1 + $0x5e0] sm:$0xff]
  %v249 = vld [vmem:[%s1 + $0x5e8] sm:$0xff]
  %v250 = vld [vmem:[%s1 + $0x5f0] sm:$0xff]
  %v251 = vld [vmem:[%s1 + $0x5f8] sm:$0xff]
  %v252 = vld [vmem:[%s1 + $0x600] sm:$0xff]
  %v253 = vld [vmem:[%s1 + $0x608] sm:$0xff]
  %v254 = vld [vmem:[%s1 + $0x610] sm:$0xff]
  %v255 = vld [vmem:[%s1 + $0x618] sm:$0xff]
  %v256 = vld [vmem:[%s1 + $0x620] sm:$0xff]
  %v257 = vld [vmem:[%s1 + $0x628] sm:$0xff]
  %v258 = vld [vmem:[%s1 + $0x630] sm:$0xff]
  %v259 = vld [vmem:[%s1 + $0x638] sm:$0xff]
  %v260 = vld [vmem:[%s1 + $0x640] sm:$0xff]
  %v261 = vld [vmem:[%s1 + $0x648] sm:$0xff]
  %v262 = vld [vmem:[%s1 + $0x650] sm:$0xff]
  %v263 = vld [vmem:[%s1 + $0x658] sm:$0xff]
  %v264 = vld [vmem:[%s1 + $0x660] sm:$0xff]
  %v265 = vld [vmem:[%s1 + $0x668] sm:$0xff]
  %v266 = vld [vmem:[%s1 + $0x670] sm:$0xff]
  %v267 = vld [vmem:[%s1 + $0x678] sm:$0xff]
  %v268 = vld [vmem:[%s1 + $0x680] sm:$0xff]
  %v269 = vld [vmem:[%s1 + $0x688] sm:$0xff]
  %v270 = vld [vmem:[%s1 + $0x690] sm:$0xff]
  %v271 = vld [vmem:[%s1 + $0x698] sm:$0xff]
  %v272 = vld [vmem:[%s1 + $0x6a0] sm:$0xff]
  %v273 = vld [vmem:[%s1 + $0x6a8] sm:$0xff]
  %v274 = vld [vmem:[%s1 + $0x6b0] sm:$0xff]
  %v275 = vld [vmem:[%s1 + $0x6b8] sm:$0xff]
  %v276 = vld [vmem:[%s1 + $0x6c0] sm:$0xff]
  %v277 = vld [vmem:[%s1 + $0x6c8] sm:$0xff]
  %v278 = vld [vmem:[%s1 + $0x6d0] sm:$0xff]
  %v279 = vld [vmem:[%s1 + $0x6d8] sm:$0xff]
  %v280 = vld [vmem:[%s1 + $0x6e0] sm:$0xff]
  %v281 = vld [vmem:[%s1 + $0x6e8] sm:$0xff]
  %v282 = vld [vmem:[%s1 + $0x6f0] sm:$0xff]
  %v283 = vld [vmem:[%s1 + $0x6f8] sm:$0xff]
  %v284 = vld [vmem:[%s1 + $0x700] sm:$0xff]
  %v285 = vld [vmem:[%s1 + $0x708] sm:$0xff]
  %v286 = vld [vmem:[%s1 + $0x710] sm:$0xff]
  %v287 = vld [vmem:[%s1 + $0x718] sm:$0xff]
  %v288 = vld [vmem:[%s1 + $0x720] sm:$0xff]
  %v289 = vld [vmem:[%s1 + $0x728] sm:$0xff]
  %v290 = vld [vmem:[%s1 + $0x730] sm:$0xff]
  %v291 = vld [vmem:[%s1 + $0x738] sm:$0xff]
  %v292 = vld [vmem:[%s1 + $0x740] sm:$0xff]
  %v293 = vld [vmem:[%s1 + $0x748] sm:$0xff]
  %v294 = vld [vmem:[%s1 + $0x750] sm:$0xff]
  %v295 = vld [vmem:[%s1 + $0x758] sm:$0xff]
  %v296 = vld [vmem:[%s1 + $0x760] sm:$0xff]
  %v297 = vld [vmem:[%s1 + $0x768] sm:$0xff]
  %v298 = vld [vmem:[%s1 + $0x770] sm:$0xff]
  %v299 = vld [vmem:[%s1 + $0x778] sm:$0xff]
  %v300 = vld [vmem:[%s1 + $0x780] sm:$0xff]
  %v301 = vld [vmem:[%s1 + $0x788] sm:$0xff]
  %v302 = vld [vmem:[%s1 + $0x790] sm:$0xff]
  %v303 = vld [vmem:[%s1 + $0x798] sm:$0xff]
  %v304 = vld [vmem:[%s1 + $0x7a0] sm:$0xff]
  %v305 = vld [vmem:[%s1 + $0x7a8] sm:$0xff]
  %v306 = vld [vmem:[%s1 + $0x7b0] sm:$0xff]
  %v307 = vld [vmem:[%s1 + $0x7b8] sm:$0xff]
  %v308 = vld [vmem:[%s1 + $0x7c0] sm:$0xff]
  %v309 = vld [vmem:[%s1 + $0x7c8] sm:$0xff]
  %v310 = vld [vmem:[%s1 + $0x7d0] sm:$0xff]
  %v311 = vld [vmem:[%s1 + $0x7d8] sm:$0xff]
  %v312 = vld [vmem:[%s1 + $0x7e0] sm:$0xff]
  %v313 = vld [vmem:[%s1 + $0x7e8] sm:$0xff]
  %v314 = vld [vmem:[%s1 + $0x7f0] sm:$0xff]
  %v315 = vld [vmem:[%s1 + $0x7f8] sm:$0xff]
  %v316 = vld [vmem:[%s2] sm:$0xf]
  %v318 = vperm.slane %v316, 0
  %v319 = vperm.slane %v316, 1
  %v320 = vperm.slane %v316, 2
  %v321 = vperm.slane %v316, 3
  %v582 = vunpack.c.l.b16 %v60
  %v583 = vunpack.c.h.b16 %v60
  %v584 = vunpack.c.l.b16 %v61
  %v585 = vunpack.c.h.b16 %v61
  %v586 = vunpack.c.l.b16 %v62
  %v587 = vunpack.c.h.b16 %v62
  %v588 = vunpack.c.l.b16 %v63
  %v589 = vunpack.c.h.b16 %v63
  %v590 = vunpack.c.l.b16 %v64
  %v591 = vunpack.c.h.b16 %v64
  %v592 = vunpack.c.l.b16 %v65
  %v593 = vunpack.c.h.b16 %v65
  %v594 = vunpack.c.l.b16 %v66
  %v595 = vunpack.c.h.b16 %v66
  %v596 = vunpack.c.l.b16 %v67
  %v597 = vunpack.c.h.b16 %v67
  %v598 = vunpack.c.l.b16 %v68
  %v599 = vunpack.c.h.b16 %v68
  %v600 = vunpack.c.l.b16 %v69
  %v601 = vunpack.c.h.b16 %v69
  %v602 = vunpack.c.l.b16 %v70
  %v603 = vunpack.c.h.b16 %v70
  %v604 = vunpack.c.l.b16 %v71
  %v605 = vunpack.c.h.b16 %v71
  %v606 = vunpack.c.l.b16 %v72
  %v607 = vunpack.c.h.b16 %v72
  %v608 = vunpack.c.l.b16 %v73
  %v609 = vunpack.c.h.b16 %v73
  %v610 = vunpack.c.l.b16 %v74
  %v611 = vunpack.c.h.b16 %v74
  %v612 = vunpack.c.l.b16 %v75
  %v613 = vunpack.c.h.b16 %v75
  %v614 = vunpack.c.l.b16 %v76
  %v615 = vunpack.c.h.b16 %v76
  %v616 = vunpack.c.l.b16 %v77
  %v617 = vunpack.c.h.b16 %v77
  %v618 = vunpack.c.l.b16 %v78
  %v619 = vunpack.c.h.b16 %v78
  %v620 = vunpack.c.l.b16 %v79
  %v621 = vunpack.c.h.b16 %v79
  %v622 = vunpack.c.l.b16 %v80
  %v623 = vunpack.c.h.b16 %v80
  %v624 = vunpack.c.l.b16 %v81
  %v625 = vunpack.c.h.b16 %v81
  %v626 = vunpack.c.l.b16 %v82
  %v627 = vunpack.c.h.b16 %v82
  %v628 = vunpack.c.l.b16 %v83
  %v629 = vunpack.c.h.b16 %v83
  %v630 = vunpack.c.l.b16 %v84
  %v631 = vunpack.c.h.b16 %v84
  %v632 = vunpack.c.l.b16 %v85
  %v633 = vunpack.c.h.b16 %v85
  %v634 = vunpack.c.l.b16 %v86
  %v635 = vunpack.c.h.b16 %v86
  %v636 = vunpack.c.l.b16 %v87
  %v637 = vunpack.c.h.b16 %v87
  %v638 = vunpack.c.l.b16 %v88
  %v639 = vunpack.c.h.b16 %v88
  %v640 = vunpack.c.l.b16 %v89
  %v641 = vunpack.c.h.b16 %v89
  %v642 = vunpack.c.l.b16 %v90
  %v643 = vunpack.c.h.b16 %v90
  %v644 = vunpack.c.l.b16 %v91
  %v645 = vunpack.c.h.b16 %v91
  %v646 = vunpack.c.l.b16 %v92
  %v647 = vunpack.c.h.b16 %v92
  %v648 = vunpack.c.l.b16 %v93
  %v649 = vunpack.c.h.b16 %v93
  %v650 = vunpack.c.l.b16 %v94
  %v651 = vunpack.c.h.b16 %v94
  %v652 = vunpack.c.l.b16 %v95
  %v653 = vunpack.c.h.b16 %v95
  %v654 = vunpack.c.l.b16 %v96
  %v655 = vunpack.c.h.b16 %v96
  %v656 = vunpack.c.l.b16 %v97
  %v657 = vunpack.c.h.b16 %v97
  %v658 = vunpack.c.l.b16 %v98
  %v659 = vunpack.c.h.b16 %v98
  %v660 = vunpack.c.l.b16 %v99
  %v661 = vunpack.c.h.b16 %v99
  %v662 = vunpack.c.l.b16 %v100
  %v663 = vunpack.c.h.b16 %v100
  %v664 = vunpack.c.l.b16 %v101
  %v665 = vunpack.c.h.b16 %v101
  %v666 = vunpack.c.l.b16 %v102
  %v667 = vunpack.c.h.b16 %v102
  %v668 = vunpack.c.l.b16 %v103
  %v669 = vunpack.c.h.b16 %v103
  %v670 = vunpack.c.l.b16 %v104
  %v671 = vunpack.c.h.b16 %v104
  %v672 = vunpack.c.l.b16 %v105
  %v673 = vunpack.c.h.b16 %v105
  %v674 = vunpack.c.l.b16 %v106
  %v675 = vunpack.c.h.b16 %v106
  %v676 = vunpack.c.l.b16 %v107
  %v677 = vunpack.c.h.b16 %v107
  %v678 = vunpack.c.l.b16 %v108
  %v679 = vunpack.c.h.b16 %v108
  %v680 = vunpack.c.l.b16 %v109
  %v681 = vunpack.c.h.b16 %v109
  %v682 = vunpack.c.l.b16 %v110
  %v683 = vunpack.c.h.b16 %v110
  %v684 = vunpack.c.l.b16 %v111
  %v685 = vunpack.c.h.b16 %v111
  %v686 = vunpack.c.l.b16 %v112
  %v687 = vunpack.c.h.b16 %v112
  %v688 = vunpack.c.l.b16 %v113
  %v689 = vunpack.c.h.b16 %v113
  %v690 = vunpack.c.l.b16 %v114
  %v691 = vunpack.c.h.b16 %v114
  %v692 = vunpack.c.l.b16 %v115
  %v693 = vunpack.c.h.b16 %v115
  %v694 = vunpack.c.l.b16 %v116
  %v695 = vunpack.c.h.b16 %v116
  %v696 = vunpack.c.l.b16 %v117
  %v697 = vunpack.c.h.b16 %v117
  %v698 = vunpack.c.l.b16 %v118
  %v699 = vunpack.c.h.b16 %v118
  %v700 = vunpack.c.l.b16 %v119
  %v701 = vunpack.c.h.b16 %v119
  %v702 = vunpack.c.l.b16 %v120
  %v703 = vunpack.c.h.b16 %v120
  %v704 = vunpack.c.l.b16 %v121
  %v705 = vunpack.c.h.b16 %v121
  %v706 = vunpack.c.l.b16 %v122
  %v707 = vunpack.c.h.b16 %v122
  %v708 = vunpack.c.l.b16 %v123
  %v709 = vunpack.c.h.b16 %v123
  %v710 = vunpack.c.l.b16 %v124
  %v711 = vunpack.c.h.b16 %v124
  %v712 = vunpack.c.l.b16 %v125
  %v713 = vunpack.c.h.b16 %v125
  %v714 = vunpack.c.l.b16 %v126
  %v715 = vunpack.c.h.b16 %v126
  %v716 = vunpack.c.l.b16 %v127
  %v717 = vunpack.c.h.b16 %v127
  %v718 = vunpack.c.l.b16 %v128
  %v719 = vunpack.c.h.b16 %v128
  %v720 = vunpack.c.l.b16 %v129
  %v721 = vunpack.c.h.b16 %v129
  %v722 = vunpack.c.l.b16 %v130
  %v723 = vunpack.c.h.b16 %v130
  %v724 = vunpack.c.l.b16 %v131
  %v725 = vunpack.c.h.b16 %v131
  %v726 = vunpack.c.l.b16 %v132
  %v727 = vunpack.c.h.b16 %v132
  %v728 = vunpack.c.l.b16 %v133
  %v729 = vunpack.c.h.b16 %v133
  %v730 = vunpack.c.l.b16 %v134
  %v731 = vunpack.c.h.b16 %v134
  %v732 = vunpack.c.l.b16 %v135
  %v733 = vunpack.c.h.b16 %v135
  %v734 = vunpack.c.l.b16 %v136
  %v735 = vunpack.c.h.b16 %v136
  %v736 = vunpack.c.l.b16 %v137
  %v737 = vunpack.c.h.b16 %v137
  %v738 = vunpack.c.l.b16 %v138
  %v739 = vunpack.c.h.b16 %v138
  %v740 = vunpack.c.l.b16 %v139
  %v741 = vunpack.c.h.b16 %v139
  %v742 = vunpack.c.l.b16 %v140
  %v743 = vunpack.c.h.b16 %v140
  %v744 = vunpack.c.l.b16 %v141
  %v745 = vunpack.c.h.b16 %v141
  %v746 = vunpack.c.l.b16 %v142
  %v747 = vunpack.c.h.b16 %v142
  %v748 = vunpack.c.l.b16 %v143
  %v749 = vunpack.c.h.b16 %v143
  %v750 = vunpack.c.l.b16 %v144
  %v751 = vunpack.c.h.b16 %v144
  %v752 = vunpack.c.l.b16 %v145
  %v753 = vunpack.c.h.b16 %v145
  %v754 = vunpack.c.l.b16 %v146
  %v755 = vunpack.c.h.b16 %v146
  %v756 = vunpack.c.l.b16 %v147
  %v757 = vunpack.c.h.b16 %v147
  %v758 = vunpack.c.l.b16 %v148
  %v759 = vunpack.c.h.b16 %v148
  %v760 = vunpack.c.l.b16 %v149
  %v761 = vunpack.c.h.b16 %v149
  %v762 = vunpack.c.l.b16 %v150
  %v763 = vunpack.c.h.b16 %v150
  %v764 = vunpack.c.l.b16 %v151
  %v765 = vunpack.c.h.b16 %v151
  %v766 = vunpack.c.l.b16 %v152
  %v767 = vunpack.c.h.b16 %v152
  %v768 = vunpack.c.l.b16 %v153
  %v769 = vunpack.c.h.b16 %v153
  %v770 = vunpack.c.l.b16 %v154
  %v771 = vunpack.c.h.b16 %v154
  %v772 = vunpack.c.l.b16 %v155
  %v773 = vunpack.c.h.b16 %v155
  %v774 = vunpack.c.l.b16 %v156
  %v775 = vunpack.c.h.b16 %v156
  %v776 = vunpack.c.l.b16 %v157
  %v777 = vunpack.c.h.b16 %v157
  %v778 = vunpack.c.l.b16 %v158
  %v779 = vunpack.c.h.b16 %v158
  %v780 = vunpack.c.l.b16 %v159
  %v781 = vunpack.c.h.b16 %v159
  %v782 = vunpack.c.l.b16 %v160
  %v783 = vunpack.c.h.b16 %v160
  %v784 = vunpack.c.l.b16 %v161
  %v785 = vunpack.c.h.b16 %v161
  %v786 = vunpack.c.l.b16 %v162
  %v787 = vunpack.c.h.b16 %v162
  %v788 = vunpack.c.l.b16 %v163
  %v789 = vunpack.c.h.b16 %v163
  %v790 = vunpack.c.l.b16 %v164
  %v791 = vunpack.c.h.b16 %v164
  %v792 = vunpack.c.l.b16 %v165
  %v793 = vunpack.c.h.b16 %v165
  %v794 = vunpack.c.l.b16 %v166
  %v795 = vunpack.c.h.b16 %v166
  %v796 = vunpack.c.l.b16 %v167
  %v797 = vunpack.c.h.b16 %v167
  %v798 = vunpack.c.l.b16 %v168
  %v799 = vunpack.c.h.b16 %v168
  %v800 = vunpack.c.l.b16 %v169
  %v801 = vunpack.c.h.b16 %v169
  %v802 = vunpack.c.l.b16 %v170
  %v803 = vunpack.c.h.b16 %v170
  %v804 = vunpack.c.l.b16 %v171
  %v805 = vunpack.c.h.b16 %v171
  %v806 = vunpack.c.l.b16 %v172
  %v807 = vunpack.c.h.b16 %v172
  %v808 = vunpack.c.l.b16 %v173
  %v809 = vunpack.c.h.b16 %v173
  %v810 = vunpack.c.l.b16 %v174
  %v811 = vunpack.c.h.b16 %v174
  %v812 = vunpack.c.l.b16 %v175
  %v813 = vunpack.c.h.b16 %v175
  %v814 = vunpack.c.l.b16 %v176
  %v815 = vunpack.c.h.b16 %v176
  %v816 = vunpack.c.l.b16 %v177
  %v817 = vunpack.c.h.b16 %v177
  %v818 = vunpack.c.l.b16 %v178
  %v819 = vunpack.c.h.b16 %v178
  %v820 = vunpack.c.l.b16 %v179
  %v821 = vunpack.c.h.b16 %v179
  %v822 = vunpack.c.l.b16 %v180
  %v823 = vunpack.c.h.b16 %v180
  %v824 = vunpack.c.l.b16 %v181
  %v825 = vunpack.c.h.b16 %v181
  %v826 = vunpack.c.l.b16 %v182
  %v827 = vunpack.c.h.b16 %v182
  %v828 = vunpack.c.l.b16 %v183
  %v829 = vunpack.c.h.b16 %v183
  %v830 = vunpack.c.l.b16 %v184
  %v831 = vunpack.c.h.b16 %v184
  %v832 = vunpack.c.l.b16 %v185
  %v833 = vunpack.c.h.b16 %v185
  %v834 = vunpack.c.l.b16 %v186
  %v835 = vunpack.c.h.b16 %v186
  %v836 = vunpack.c.l.b16 %v187
  %v837 = vunpack.c.h.b16 %v187
  %v838 = vunpack.c.l.b16 %v188
  %v839 = vunpack.c.h.b16 %v188
  %v840 = vunpack.c.l.b16 %v189
  %v841 = vunpack.c.h.b16 %v189
  %v842 = vunpack.c.l.b16 %v190
  %v843 = vunpack.c.h.b16 %v190
  %v844 = vunpack.c.l.b16 %v191
  %v845 = vunpack.c.h.b16 %v191
  %v846 = vunpack.c.l.b16 %v192
  %v847 = vunpack.c.h.b16 %v192
  %v848 = vunpack.c.l.b16 %v193
  %v849 = vunpack.c.h.b16 %v193
  %v850 = vunpack.c.l.b16 %v194
  %v851 = vunpack.c.h.b16 %v194
  %v852 = vunpack.c.l.b16 %v195
  %v853 = vunpack.c.h.b16 %v195
  %v854 = vunpack.c.l.b16 %v196
  %v855 = vunpack.c.h.b16 %v196
  %v856 = vunpack.c.l.b16 %v197
  %v857 = vunpack.c.h.b16 %v197
  %v858 = vunpack.c.l.b16 %v198
  %v859 = vunpack.c.h.b16 %v198
  %v860 = vunpack.c.l.b16 %v199
  %v861 = vunpack.c.h.b16 %v199
  %v862 = vunpack.c.l.b16 %v200
  %v863 = vunpack.c.h.b16 %v200
  %v864 = vunpack.c.l.b16 %v201
  %v865 = vunpack.c.h.b16 %v201
  %v866 = vunpack.c.l.b16 %v202
  %v867 = vunpack.c.h.b16 %v202
  %v868 = vunpack.c.l.b16 %v203
  %v869 = vunpack.c.h.b16 %v203
  %v870 = vunpack.c.l.b16 %v204
  %v871 = vunpack.c.h.b16 %v204
  %v872 = vunpack.c.l.b16 %v205
  %v873 = vunpack.c.h.b16 %v205
  %v874 = vunpack.c.l.b16 %v206
  %v875 = vunpack.c.h.b16 %v206
  %v876 = vunpack.c.l.b16 %v207
  %v877 = vunpack.c.h.b16 %v207
  %v878 = vunpack.c.l.b16 %v208
  %v879 = vunpack.c.h.b16 %v208
  %v880 = vunpack.c.l.b16 %v209
  %v881 = vunpack.c.h.b16 %v209
  %v882 = vunpack.c.l.b16 %v210
  %v883 = vunpack.c.h.b16 %v210
  %v884 = vunpack.c.l.b16 %v211
  %v885 = vunpack.c.h.b16 %v211
  %v886 = vunpack.c.l.b16 %v212
  %v887 = vunpack.c.h.b16 %v212
  %v888 = vunpack.c.l.b16 %v213
  %v889 = vunpack.c.h.b16 %v213
  %v890 = vunpack.c.l.b16 %v214
  %v891 = vunpack.c.h.b16 %v214
  %v892 = vunpack.c.l.b16 %v215
  %v893 = vunpack.c.h.b16 %v215
  %v894 = vunpack.c.l.b16 %v216
  %v895 = vunpack.c.h.b16 %v216
  %v896 = vunpack.c.l.b16 %v217
  %v897 = vunpack.c.h.b16 %v217
  %v898 = vunpack.c.l.b16 %v218
  %v899 = vunpack.c.h.b16 %v218
  %v900 = vunpack.c.l.b16 %v219
  %v901 = vunpack.c.h.b16 %v219
  %v902 = vunpack.c.l.b16 %v220
  %v903 = vunpack.c.h.b16 %v220
  %v904 = vunpack.c.l.b16 %v221
  %v905 = vunpack.c.h.b16 %v221
  %v906 = vunpack.c.l.b16 %v222
  %v907 = vunpack.c.h.b16 %v222
  %v908 = vunpack.c.l.b16 %v223
  %v909 = vunpack.c.h.b16 %v223
  %v910 = vunpack.c.l.b16 %v224
  %v911 = vunpack.c.h.b16 %v224
  %v912 = vunpack.c.l.b16 %v225
  %v913 = vunpack.c.h.b16 %v225
  %v914 = vunpack.c.l.b16 %v226
  %v915 = vunpack.c.h.b16 %v226
  %v916 = vunpack.c.l.b16 %v227
  %v917 = vunpack.c.h.b16 %v227
  %v918 = vunpack.c.l.b16 %v228
  %v919 = vunpack.c.h.b16 %v228
  %v920 = vunpack.c.l.b16 %v229
  %v921 = vunpack.c.h.b16 %v229
  %v922 = vunpack.c.l.b16 %v230
  %v923 = vunpack.c.h.b16 %v230
  %v924 = vunpack.c.l.b16 %v231
  %v925 = vunpack.c.h.b16 %v231
  %v926 = vunpack.c.l.b16 %v232
  %v927 = vunpack.c.h.b16 %v232
  %v928 = vunpack.c.l.b16 %v233
  %v929 = vunpack.c.h.b16 %v233
  %v930 = vunpack.c.l.b16 %v234
  %v931 = vunpack.c.h.b16 %v234
  %v932 = vunpack.c.l.b16 %v235
  %v933 = vunpack.c.h.b16 %v235
  %v934 = vunpack.c.l.b16 %v236
  %v935 = vunpack.c.h.b16 %v236
  %v936 = vunpack.c.l.b16 %v237
  %v937 = vunpack.c.h.b16 %v237
  %v938 = vunpack.c.l.b16 %v238
  %v939 = vunpack.c.h.b16 %v238
  %v940 = vunpack.c.l.b16 %v239
  %v941 = vunpack.c.h.b16 %v239
  %v942 = vunpack.c.l.b16 %v240
  %v943 = vunpack.c.h.b16 %v240
  %v944 = vunpack.c.l.b16 %v241
  %v945 = vunpack.c.h.b16 %v241
  %v946 = vunpack.c.l.b16 %v242
  %v947 = vunpack.c.h.b16 %v242
  %v948 = vunpack.c.l.b16 %v243
  %v949 = vunpack.c.h.b16 %v243
  %v950 = vunpack.c.l.b16 %v244
  %v951 = vunpack.c.h.b16 %v244
  %v952 = vunpack.c.l.b16 %v245
  %v953 = vunpack.c.h.b16 %v245
  %v954 = vunpack.c.l.b16 %v246
  %v955 = vunpack.c.h.b16 %v246
  %v956 = vunpack.c.l.b16 %v247
  %v957 = vunpack.c.h.b16 %v247
  %v958 = vunpack.c.l.b16 %v248
  %v959 = vunpack.c.h.b16 %v248
  %v960 = vunpack.c.l.b16 %v249
  %v961 = vunpack.c.h.b16 %v249
  %v962 = vunpack.c.l.b16 %v250
  %v963 = vunpack.c.h.b16 %v250
  %v964 = vunpack.c.l.b16 %v251
  %v965 = vunpack.c.h.b16 %v251
  %v966 = vunpack.c.l.b16 %v252
  %v967 = vunpack.c.h.b16 %v252
  %v968 = vunpack.c.l.b16 %v253
  %v969 = vunpack.c.h.b16 %v253
  %v970 = vunpack.c.l.b16 %v254
  %v971 = vunpack.c.h.b16 %v254
  %v972 = vunpack.c.l.b16 %v255
  %v973 = vunpack.c.h.b16 %v255
  %v974 = vunpack.c.l.b16 %v256
  %v975 = vunpack.c.h.b16 %v256
  %v976 = vunpack.c.l.b16 %v257
  %v977 = vunpack.c.h.b16 %v257
  %v978 = vunpack.c.l.b16 %v258
  %v979 = vunpack.c.h.b16 %v258
  %v980 = vunpack.c.l.b16 %v259
  %v981 = vunpack.c.h.b16 %v259
  %v982 = vunpack.c.l.b16 %v260
  %v983 = vunpack.c.h.b16 %v260
  %v984 = vunpack.c.l.b16 %v261
  %v985 = vunpack.c.h.b16 %v261
  %v986 = vunpack.c.l.b16 %v262
  %v987 = vunpack.c.h.b16 %v262
  %v988 = vunpack.c.l.b16 %v263
  %v989 = vunpack.c.h.b16 %v263
  %v990 = vunpack.c.l.b16 %v264
  %v991 = vunpack.c.h.b16 %v264
  %v992 = vunpack.c.l.b16 %v265
  %v993 = vunpack.c.h.b16 %v265
  %v994 = vunpack.c.l.b16 %v266
  %v995 = vunpack.c.h.b16 %v266
  %v996 = vunpack.c.l.b16 %v267
  %v997 = vunpack.c.h.b16 %v267
  %v998 = vunpack.c.l.b16 %v268
  %v999 = vunpack.c.h.b16 %v268
  %v1000 = vunpack.c.l.b16 %v269
  %v1001 = vunpack.c.h.b16 %v269
  %v1002 = vunpack.c.l.b16 %v270
  %v1003 = vunpack.c.h.b16 %v270
  %v1004 = vunpack.c.l.b16 %v271
  %v1005 = vunpack.c.h.b16 %v271
  %v1006 = vunpack.c.l.b16 %v272
  %v1007 = vunpack.c.h.b16 %v272
  %v1008 = vunpack.c.l.b16 %v273
  %v1009 = vunpack.c.h.b16 %v273
  %v1010 = vunpack.c.l.b16 %v274
  %v1011 = vunpack.c.h.b16 %v274
  %v1012 = vunpack.c.l.b16 %v275
  %v1013 = vunpack.c.h.b16 %v275
  %v1014 = vunpack.c.l.b16 %v276
  %v1015 = vunpack.c.h.b16 %v276
  %v1016 = vunpack.c.l.b16 %v277
  %v1017 = vunpack.c.h.b16 %v277
  %v1018 = vunpack.c.l.b16 %v278
  %v1019 = vunpack.c.h.b16 %v278
  %v1020 = vunpack.c.l.b16 %v279
  %v1021 = vunpack.c.h.b16 %v279
  %v1022 = vunpack.c.l.b16 %v280
  %v1023 = vunpack.c.h.b16 %v280
  %v1024 = vunpack.c.l.b16 %v281
  %v1025 = vunpack.c.h.b16 %v281
  %v1026 = vunpack.c.l.b16 %v282
  %v1027 = vunpack.c.h.b16 %v282
  %v1028 = vunpack.c.l.b16 %v283
  %v1029 = vunpack.c.h.b16 %v283
  %v1030 = vunpack.c.l.b16 %v284
  %v1031 = vunpack.c.h.b16 %v284
  %v1032 = vunpack.c.l.b16 %v285
  %v1033 = vunpack.c.h.b16 %v285
  %v1034 = vunpack.c.l.b16 %v286
  %v1035 = vunpack.c.h.b16 %v286
  %v1036 = vunpack.c.l.b16 %v287
  %v1037 = vunpack.c.h.b16 %v287
  %v1038 = vunpack.c.l.b16 %v288
  %v1039 = vunpack.c.h.b16 %v288
  %v1040 = vunpack.c.l.b16 %v289
  %v1041 = vunpack.c.h.b16 %v289
  %v1042 = vunpack.c.l.b16 %v290
  %v1043 = vunpack.c.h.b16 %v290
  %v1044 = vunpack.c.l.b16 %v291
  %v1045 = vunpack.c.h.b16 %v291
  %v1046 = vunpack.c.l.b16 %v292
  %v1047 = vunpack.c.h.b16 %v292
  %v1048 = vunpack.c.l.b16 %v293
  %v1049 = vunpack.c.h.b16 %v293
  %v1050 = vunpack.c.l.b16 %v294
  %v1051 = vunpack.c.h.b16 %v294
  %v1052 = vunpack.c.l.b16 %v295
  %v1053 = vunpack.c.h.b16 %v295
  %v1054 = vunpack.c.l.b16 %v296
  %v1055 = vunpack.c.h.b16 %v296
  %v1056 = vunpack.c.l.b16 %v297
  %v1057 = vunpack.c.h.b16 %v297
  %v1058 = vunpack.c.l.b16 %v298
  %v1059 = vunpack.c.h.b16 %v298
  %v1060 = vunpack.c.l.b16 %v299
  %v1061 = vunpack.c.h.b16 %v299
  %v1062 = vunpack.c.l.b16 %v300
  %v1063 = vunpack.c.h.b16 %v300
  %v1064 = vunpack.c.l.b16 %v301
  %v1065 = vunpack.c.h.b16 %v301
  %v1066 = vunpack.c.l.b16 %v302
  %v1067 = vunpack.c.h.b16 %v302
  %v1068 = vunpack.c.l.b16 %v303
  %v1069 = vunpack.c.h.b16 %v303
  %v1070 = vunpack.c.l.b16 %v304
  %v1071 = vunpack.c.h.b16 %v304
  %v1072 = vunpack.c.l.b16 %v305
  %v1073 = vunpack.c.h.b16 %v305
  %v1074 = vunpack.c.l.b16 %v306
  %v1075 = vunpack.c.h.b16 %v306
  %v1076 = vunpack.c.l.b16 %v307
  %v1077 = vunpack.c.h.b16 %v307
  %v1078 = vunpack.c.l.b16 %v308
  %v1079 = vunpack.c.h.b16 %v308
  %v1080 = vunpack.c.l.b16 %v309
  %v1081 = vunpack.c.h.b16 %v309
  %v1082 = vunpack.c.l.b16 %v310
  %v1083 = vunpack.c.h.b16 %v310
  %v1084 = vunpack.c.l.b16 %v311
  %v1085 = vunpack.c.h.b16 %v311
  %v1086 = vunpack.c.l.b16 %v312
  %v1087 = vunpack.c.h.b16 %v312
  %v1088 = vunpack.c.l.b16 %v313
  %v1089 = vunpack.c.h.b16 %v313
  %v1090 = vunpack.c.l.b16 %v314
  %v1091 = vunpack.c.h.b16 %v314
  %v1092 = vunpack.c.l.b16 %v315
  %v1093 = vunpack.c.h.b16 %v315
  %v1094 = vpack.c.b16 %v586, %v582
  %v1095 = vpack.c.b16 %v587, %v583
  %v1096 = vpack.c.b16 %v588, %v584
  %v1097 = vpack.c.b16 %v589, %v585
  %v1098 = vpack.c.b16 %v594, %v590
  %v1099 = vpack.c.b16 %v595, %v591
  %v1100 = vpack.c.b16 %v596, %v592
  %v1101 = vpack.c.b16 %v597, %v593
  %v1102 = vpack.c.b16 %v602, %v598
  %v1103 = vpack.c.b16 %v603, %v599
  %v1104 = vpack.c.b16 %v604, %v600
  %v1105 = vpack.c.b16 %v605, %v601
  %v1106 = vpack.c.b16 %v610, %v606
  %v1107 = vpack.c.b16 %v611, %v607
  %v1108 = vpack.c.b16 %v612, %v608
  %v1109 = vpack.c.b16 %v613, %v609
  %v1110 = vpack.c.b16 %v618, %v614
  %v1111 = vpack.c.b16 %v619, %v615
  %v1112 = vpack.c.b16 %v620, %v616
  %v1113 = vpack.c.b16 %v621, %v617
  %v1114 = vpack.c.b16 %v626, %v622
  %v1115 = vpack.c.b16 %v627, %v623
  %v1116 = vpack.c.b16 %v628, %v624
  %v1117 = vpack.c.b16 %v629, %v625
  %v1118 = vpack.c.b16 %v634, %v630
  %v1119 = vpack.c.b16 %v635, %v631
  %v1120 = vpack.c.b16 %v636, %v632
  %v1121 = vpack.c.b16 %v637, %v633
  %v1122 = vpack.c.b16 %v642, %v638
  %v1123 = vpack.c.b16 %v643, %v639
  %v1124 = vpack.c.b16 %v644, %v640
  %v1125 = vpack.c.b16 %v645, %v641
  %v1126 = vpack.c.b16 %v650, %v646
  %v1127 = vpack.c.b16 %v651, %v647
  %v1128 = vpack.c.b16 %v652, %v648
  %v1129 = vpack.c.b16 %v653, %v649
  %v1130 = vpack.c.b16 %v658, %v654
  %v1131 = vpack.c.b16 %v659, %v655
  %v1132 = vpack.c.b16 %v660, %v656
  %v1133 = vpack.c.b16 %v661, %v657
  %v1134 = vpack.c.b16 %v666, %v662
  %v1135 = vpack.c.b16 %v667, %v663
  %v1136 = vpack.c.b16 %v668, %v664
  %v1137 = vpack.c.b16 %v669, %v665
  %v1138 = vpack.c.b16 %v674, %v670
  %v1139 = vpack.c.b16 %v675, %v671
  %v1140 = vpack.c.b16 %v676, %v672
  %v1141 = vpack.c.b16 %v677, %v673
  %v1142 = vpack.c.b16 %v682, %v678
  %v1143 = vpack.c.b16 %v683, %v679
  %v1144 = vpack.c.b16 %v684, %v680
  %v1145 = vpack.c.b16 %v685, %v681
  %v1146 = vpack.c.b16 %v690, %v686
  %v1147 = vpack.c.b16 %v691, %v687
  %v1148 = vpack.c.b16 %v692, %v688
  %v1149 = vpack.c.b16 %v693, %v689
  %v1150 = vpack.c.b16 %v698, %v694
  %v1151 = vpack.c.b16 %v699, %v695
  %v1152 = vpack.c.b16 %v700, %v696
  %v1153 = vpack.c.b16 %v701, %v697
  %v1154 = vpack.c.b16 %v706, %v702
  %v1155 = vpack.c.b16 %v707, %v703
  %v1156 = vpack.c.b16 %v708, %v704
  %v1157 = vpack.c.b16 %v709, %v705
  %v1158 = vpack.c.b16 %v714, %v710
  %v1159 = vpack.c.b16 %v715, %v711
  %v1160 = vpack.c.b16 %v716, %v712
  %v1161 = vpack.c.b16 %v717, %v713
  %v1162 = vpack.c.b16 %v722, %v718
  %v1163 = vpack.c.b16 %v723, %v719
  %v1164 = vpack.c.b16 %v724, %v720
  %v1165 = vpack.c.b16 %v725, %v721
  %v1166 = vpack.c.b16 %v730, %v726
  %v1167 = vpack.c.b16 %v731, %v727
  %v1168 = vpack.c.b16 %v732, %v728
  %v1169 = vpack.c.b16 %v733, %v729
  %v1170 = vpack.c.b16 %v738, %v734
  %v1171 = vpack.c.b16 %v739, %v735
  %v1172 = vpack.c.b16 %v740, %v736
  %v1173 = vpack.c.b16 %v741, %v737
  %v1174 = vpack.c.b16 %v746, %v742
  %v1175 = vpack.c.b16 %v747, %v743
  %v1176 = vpack.c.b16 %v748, %v744
  %v1177 = vpack.c.b16 %v749, %v745
  %v1178 = vpack.c.b16 %v754, %v750
  %v1179 = vpack.c.b16 %v755, %v751
  %v1180 = vpack.c.b16 %v756, %v752
  %v1181 = vpack.c.b16 %v757, %v753
  %v1182 = vpack.c.b16 %v762, %v758
  %v1183 = vpack.c.b16 %v763, %v759
  %v1184 = vpack.c.b16 %v764, %v760
  %v1185 = vpack.c.b16 %v765, %v761
  %v1186 = vpack.c.b16 %v770, %v766
  %v1187 = vpack.c.b16 %v771, %v767
  %v1188 = vpack.c.b16 %v772, %v768
  %v1189 = vpack.c.b16 %v773, %v769
  %v1190 = vpack.c.b16 %v778, %v774
  %v1191 = vpack.c.b16 %v779, %v775
  %v1192 = vpack.c.b16 %v780, %v776
  %v1193 = vpack.c.b16 %v781, %v777
  %v1194 = vpack.c.b16 %v786, %v782
  %v1195 = vpack.c.b16 %v787, %v783
  %v1196 = vpack.c.b16 %v788, %v784
  %v1197 = vpack.c.b16 %v789, %v785
  %v1198 = vpack.c.b16 %v794, %v790
  %v1199 = vpack.c.b16 %v795, %v791
  %v1200 = vpack.c.b16 %v796, %v792
  %v1201 = vpack.c.b16 %v797, %v793
  %v1202 = vpack.c.b16 %v802, %v798
  %v1203 = vpack.c.b16 %v803, %v799
  %v1204 = vpack.c.b16 %v804, %v800
  %v1205 = vpack.c.b16 %v805, %v801
  %v1206 = vpack.c.b16 %v810, %v806
  %v1207 = vpack.c.b16 %v811, %v807
  %v1208 = vpack.c.b16 %v812, %v808
  %v1209 = vpack.c.b16 %v813, %v809
  %v1210 = vpack.c.b16 %v818, %v814
  %v1211 = vpack.c.b16 %v819, %v815
  %v1212 = vpack.c.b16 %v820, %v816
  %v1213 = vpack.c.b16 %v821, %v817
  %v1214 = vpack.c.b16 %v826, %v822
  %v1215 = vpack.c.b16 %v827, %v823
  %v1216 = vpack.c.b16 %v828, %v824
  %v1217 = vpack.c.b16 %v829, %v825
  %v1218 = vpack.c.b16 %v834, %v830
  %v1219 = vpack.c.b16 %v835, %v831
  %v1220 = vpack.c.b16 %v836, %v832
  %v1221 = vpack.c.b16 %v837, %v833
  %v1222 = vpack.c.b16 %v842, %v838
  %v1223 = vpack.c.b16 %v843, %v839
  %v1224 = vpack.c.b16 %v844, %v840
  %v1225 = vpack.c.b16 %v845, %v841
  %v1226 = vpack.c.b16 %v850, %v846
  %v1227 = vpack.c.b16 %v851, %v847
  %v1228 = vpack.c.b16 %v852, %v848
  %v1229 = vpack.c.b16 %v853, %v849
  %v1230 = vpack.c.b16 %v858, %v854
  %v1231 = vpack.c.b16 %v859, %v855
  %v1232 = vpack.c.b16 %v860, %v856
  %v1233 = vpack.c.b16 %v861, %v857
  %v1234 = vpack.c.b16 %v866, %v862
  %v1235 = vpack.c.b16 %v867, %v863
  %v1236 = vpack.c.b16 %v868, %v864
  %v1237 = vpack.c.b16 %v869, %v865
  %v1238 = vpack.c.b16 %v874, %v870
  %v1239 = vpack.c.b16 %v875, %v871
  %v1240 = vpack.c.b16 %v876, %v872
  %v1241 = vpack.c.b16 %v877, %v873
  %v1242 = vpack.c.b16 %v882, %v878
  %v1243 = vpack.c.b16 %v883, %v879
  %v1244 = vpack.c.b16 %v884, %v880
  %v1245 = vpack.c.b16 %v885, %v881
  %v1246 = vpack.c.b16 %v890, %v886
  %v1247 = vpack.c.b16 %v891, %v887
  %v1248 = vpack.c.b16 %v892, %v888
  %v1249 = vpack.c.b16 %v893, %v889
  %v1250 = vpack.c.b16 %v898, %v894
  %v1251 = vpack.c.b16 %v899, %v895
  %v1252 = vpack.c.b16 %v900, %v896
  %v1253 = vpack.c.b16 %v901, %v897
  %v1254 = vpack.c.b16 %v906, %v902
  %v1255 = vpack.c.b16 %v907, %v903
  %v1256 = vpack.c.b16 %v908, %v904
  %v1257 = vpack.c.b16 %v909, %v905
  %v1258 = vpack.c.b16 %v914, %v910
  %v1259 = vpack.c.b16 %v915, %v911
  %v1260 = vpack.c.b16 %v916, %v912
  %v1261 = vpack.c.b16 %v917, %v913
  %v1262 = vpack.c.b16 %v922, %v918
  %v1263 = vpack.c.b16 %v923, %v919
  %v1264 = vpack.c.b16 %v924, %v920
  %v1265 = vpack.c.b16 %v925, %v921
  %v1266 = vpack.c.b16 %v930, %v926
  %v1267 = vpack.c.b16 %v931, %v927
  %v1268 = vpack.c.b16 %v932, %v928
  %v1269 = vpack.c.b16 %v933, %v929
  %v1270 = vpack.c.b16 %v938, %v934
  %v1271 = vpack.c.b16 %v939, %v935
  %v1272 = vpack.c.b16 %v940, %v936
  %v1273 = vpack.c.b16 %v941, %v937
  %v1274 = vpack.c.b16 %v946, %v942
  %v1275 = vpack.c.b16 %v947, %v943
  %v1276 = vpack.c.b16 %v948, %v944
  %v1277 = vpack.c.b16 %v949, %v945
  %v1278 = vpack.c.b16 %v954, %v950
  %v1279 = vpack.c.b16 %v955, %v951
  %v1280 = vpack.c.b16 %v956, %v952
  %v1281 = vpack.c.b16 %v957, %v953
  %v1282 = vpack.c.b16 %v962, %v958
  %v1283 = vpack.c.b16 %v963, %v959
  %v1284 = vpack.c.b16 %v964, %v960
  %v1285 = vpack.c.b16 %v965, %v961
  %v1286 = vpack.c.b16 %v970, %v966
  %v1287 = vpack.c.b16 %v971, %v967
  %v1288 = vpack.c.b16 %v972, %v968
  %v1289 = vpack.c.b16 %v973, %v969
  %v1290 = vpack.c.b16 %v978, %v974
  %v1291 = vpack.c.b16 %v979, %v975
  %v1292 = vpack.c.b16 %v980, %v976
  %v1293 = vpack.c.b16 %v981, %v977
  %v1294 = vpack.c.b16 %v986, %v982
  %v1295 = vpack.c.b16 %v987, %v983
  %v1296 = vpack.c.b16 %v988, %v984
  %v1297 = vpack.c.b16 %v989, %v985
  %v1298 = vpack.c.b16 %v994, %v990
  %v1299 = vpack.c.b16 %v995, %v991
  %v1300 = vpack.c.b16 %v996, %v992
  %v1301 = vpack.c.b16 %v997, %v993
  %v1302 = vpack.c.b16 %v1002, %v998
  %v1303 = vpack.c.b16 %v1003, %v999
  %v1304 = vpack.c.b16 %v1004, %v1000
  %v1305 = vpack.c.b16 %v1005, %v1001
  %v1306 = vpack.c.b16 %v1010, %v1006
  %v1307 = vpack.c.b16 %v1011, %v1007
  %v1308 = vpack.c.b16 %v1012, %v1008
  %v1309 = vpack.c.b16 %v1013, %v1009
  %v1310 = vpack.c.b16 %v1018, %v1014
  %v1311 = vpack.c.b16 %v1019, %v1015
  %v1312 = vpack.c.b16 %v1020, %v1016
  %v1313 = vpack.c.b16 %v1021, %v1017
  %v1314 = vpack.c.b16 %v1026, %v1022
  %v1315 = vpack.c.b16 %v1027, %v1023
  %v1316 = vpack.c.b16 %v1028, %v1024
  %v1317 = vpack.c.b16 %v1029, %v1025
  %v1318 = vpack.c.b16 %v1034, %v1030
  %v1319 = vpack.c.b16 %v1035, %v1031
  %v1320 = vpack.c.b16 %v1036, %v1032
  %v1321 = vpack.c.b16 %v1037, %v1033
  %v1322 = vpack.c.b16 %v1042, %v1038
  %v1323 = vpack.c.b16 %v1043, %v1039
  %v1324 = vpack.c.b16 %v1044, %v1040
  %v1325 = vpack.c.b16 %v1045, %v1041
  %v1326 = vpack.c.b16 %v1050, %v1046
  %v1327 = vpack.c.b16 %v1051, %v1047
  %v1328 = vpack.c.b16 %v1052, %v1048
  %v1329 = vpack.c.b16 %v1053, %v1049
  %v1330 = vpack.c.b16 %v1058, %v1054
  %v1331 = vpack.c.b16 %v1059, %v1055
  %v1332 = vpack.c.b16 %v1060, %v1056
  %v1333 = vpack.c.b16 %v1061, %v1057
  %v1334 = vpack.c.b16 %v1066, %v1062
  %v1335 = vpack.c.b16 %v1067, %v1063
  %v1336 = vpack.c.b16 %v1068, %v1064
  %v1337 = vpack.c.b16 %v1069, %v1065
  %v1338 = vpack.c.b16 %v1074, %v1070
  %v1339 = vpack.c.b16 %v1075, %v1071
  %v1340 = vpack.c.b16 %v1076, %v1072
  %v1341 = vpack.c.b16 %v1077, %v1073
  %v1342 = vpack.c.b16 %v1082, %v1078
  %v1343 = vpack.c.b16 %v1083, %v1079
  %v1344 = vpack.c.b16 %v1084, %v1080
  %v1345 = vpack.c.b16 %v1085, %v1081
  %v1346 = vpack.c.b16 %v1090, %v1086
  %v1347 = vpack.c.b16 %v1091, %v1087
  %v1348 = vpack.c.b16 %v1092, %v1088
  %v1349 = vpack.c.b16 %v1093, %v1089
  %1606 = vmatpush.bf16.msra.mxu0 %v1122
  %1607 = vmatpush.bf16.msra.mxu0 %v1118
  %1608 = vmatpush.bf16.msra.mxu0 %v1114
  %1609 = vmatpush.bf16.msra.mxu0 %v1110
  %1610 = vmatpush.bf16.msra.mxu0 %v1106
  %1611 = vmatpush.bf16.msra.mxu0 %v1102
  %1612 = vmatpush.bf16.msra.mxu0 %v1098
  %1613 = vmatpush.bf16.msra.mxu0 %v1094
  %1614 = vmatmul.bf16.gmra.mxu0 %v52
  %v1615 = vpop.f32.mrf.mxu0
  %v1616 = vadd.f32 %v318, %v1615
  %v1617 = vpop.f32.mrf.mxu0
  %1618 = vdwg.mxu0
  %1619 = vmatpush.bf16.msra.mxu0 %v1154
  %1620 = vmatpush.bf16.msra.mxu0 %v1150
  %1621 = vmatpush.bf16.msra.mxu0 %v1146
  %1622 = vmatpush.bf16.msra.mxu0 %v1142
  %1623 = vmatpush.bf16.msra.mxu0 %v1138
  %1624 = vmatpush.bf16.msra.mxu0 %v1134
  %1625 = vmatpush.bf16.msra.mxu0 %v1130
  %1626 = vmatpush.bf16.msra.mxu0 %v1126
  %1627 = vmatmul.bf16.gmra.mxu0 %v53
  %v1628 = vpop.f32.mrf.mxu0
  %v1629 = vadd.f32 %v1616, %v1628
  %v1630 = vpop.f32.mrf.mxu0
  %1631 = vdwg.mxu0
  %1632 = vmatpush.bf16.msra.mxu0 %v1186
  %1633 = vmatpush.bf16.msra.mxu0 %v1182
  %1634 = vmatpush.bf16.msra.mxu0 %v1178
  %1635 = vmatpush.bf16.msra.mxu0 %v1174
  %1636 = vmatpush.bf16.msra.mxu0 %v1170
  %1637 = vmatpush.bf16.msra.mxu0 %v1166
  %1638 = vmatpush.bf16.msra.mxu0 %v1162
  %1639 = vmatpush.bf16.msra.mxu0 %v1158
  %1640 = vmatmul.bf16.gmra.mxu0 %v54
  %v1641 = vpop.f32.mrf.mxu0
  %v1642 = vadd.f32 %v1629, %v1641
  %v1643 = vpop.f32.mrf.mxu0
  %1644 = vdwg.mxu0
  %1645 = vmatpush.bf16.msra.mxu0 %v1218
  %1646 = vmatpush.bf16.msra.mxu0 %v1214
  %1647 = vmatpush.bf16.msra.mxu0 %v1210
  %1648 = vmatpush.bf16.msra.mxu0 %v1206
  %1649 = vmatpush.bf16.msra.mxu0 %v1202
  %1650 = vmatpush.bf16.msra.mxu0 %v1198
  %1651 = vmatpush.bf16.msra.mxu0 %v1194
  %1652 = vmatpush.bf16.msra.mxu0 %v1190
  %1653 = vmatmul.bf16.gmra.mxu0 %v55
  %v1654 = vpop.f32.mrf.mxu0
  %v1655 = vadd.f32 %v1642, %v1654
  %v1656 = vpop.f32.mrf.mxu0
  %1657 = vdwg.mxu0
  %1658 = vmatpush.bf16.msra.mxu0 %v1250
  %1659 = vmatpush.bf16.msra.mxu0 %v1246
  %1660 = vmatpush.bf16.msra.mxu0 %v1242
  %1661 = vmatpush.bf16.msra.mxu0 %v1238
  %1662 = vmatpush.bf16.msra.mxu0 %v1234
  %1663 = vmatpush.bf16.msra.mxu0 %v1230
  %1664 = vmatpush.bf16.msra.mxu0 %v1226
  %1665 = vmatpush.bf16.msra.mxu0 %v1222
  %1666 = vmatmul.bf16.gmra.mxu0 %v56
  %v1667 = vpop.f32.mrf.mxu0
  %v1668 = vadd.f32 %v1655, %v1667
  %v1669 = vpop.f32.mrf.mxu0
  %1670 = vdwg.mxu0
  %1671 = vmatpush.bf16.msra.mxu0 %v1282
  %1672 = vmatpush.bf16.msra.mxu0 %v1278
  %1673 = vmatpush.bf16.msra.mxu0 %v1274
  %1674 = vmatpush.bf16.msra.mxu0 %v1270
  %1675 = vmatpush.bf16.msra.mxu0 %v1266
  %1676 = vmatpush.bf16.msra.mxu0 %v1262
  %1677 = vmatpush.bf16.msra.mxu0 %v1258
  %1678 = vmatpush.bf16.msra.mxu0 %v1254
  %1679 = vmatmul.bf16.gmra.mxu0 %v57
  %v1680 = vpop.f32.mrf.mxu0
  %v1681 = vadd.f32 %v1668, %v1680
  %v1682 = vpop.f32.mrf.mxu0
  %1683 = vdwg.mxu0
  %1684 = vmatpush.bf16.msra.mxu0 %v1314
  %1685 = vmatpush.bf16.msra.mxu0 %v1310
  %1686 = vmatpush.bf16.msra.mxu0 %v1306
  %1687 = vmatpush.bf16.msra.mxu0 %v1302
  %1688 = vmatpush.bf16.msra.mxu0 %v1298
  %1689 = vmatpush.bf16.msra.mxu0 %v1294
  %1690 = vmatpush.bf16.msra.mxu0 %v1290
  %1691 = vmatpush.bf16.msra.mxu0 %v1286
  %1692 = vmatmul.bf16.gmra.mxu0 %v58
  %v1693 = vpop.f32.mrf.mxu0
  %v1694 = vadd.f32 %v1681, %v1693
  %v1695 = vpop.f32.mrf.mxu0
  %1696 = vdwg.mxu0
  %1697 = vmatpush.bf16.msra.mxu0 %v1346
  %1698 = vmatpush.bf16.msra.mxu0 %v1342
  %1699 = vmatpush.bf16.msra.mxu0 %v1338
  %1700 = vmatpush.bf16.msra.mxu0 %v1334
  %1701 = vmatpush.bf16.msra.mxu0 %v1330
  %1702 = vmatpush.bf16.msra.mxu0 %v1326
  %1703 = vmatpush.bf16.msra.mxu0 %v1322
  %1704 = vmatpush.bf16.msra.mxu0 %v1318
  %1705 = vmatmul.bf16.gmra.mxu0 %v59
  %v1706 = vpop.f32.mrf.mxu0
  %v1707 = vadd.f32 %v1694, %v1706
  %v1708 = vpop.f32.mrf.mxu0
  %1709 = vdwg.mxu0
  %1710 = vmatpush.bf16.msra.mxu0 %v1123
  %1711 = vmatpush.bf16.msra.mxu0 %v1119
  %1712 = vmatpush.bf16.msra.mxu0 %v1115
  %1713 = vmatpush.bf16.msra.mxu0 %v1111
  %1714 = vmatpush.bf16.msra.mxu0 %v1107
  %1715 = vmatpush.bf16.msra.mxu0 %v1103
  %1716 = vmatpush.bf16.msra.mxu0 %v1099
  %1717 = vmatpush.bf16.msra.mxu0 %v1095
  %1718 = vmatmul.bf16.gmra.mxu0 %v52
  %v1719 = vpop.f32.mrf.mxu0
  %v1720 = vadd.f32 %v319, %v1719
  %v1721 = vpop.f32.mrf.mxu0
  %1722 = vdwg.mxu0
  %1723 = vmatpush.bf16.msra.mxu0 %v1155
  %1724 = vmatpush.bf16.msra.mxu0 %v1151
  %1725 = vmatpush.bf16.msra.mxu0 %v1147
  %1726 = vmatpush.bf16.msra.mxu0 %v1143
  %1727 = vmatpush.bf16.msra.mxu0 %v1139
  %1728 = vmatpush.bf16.msra.mxu0 %v1135
  %1729 = vmatpush.bf16.msra.mxu0 %v1131
  %1730 = vmatpush.bf16.msra.mxu0 %v1127
  %1731 = vmatmul.bf16.gmra.mxu0 %v53
  %v1732 = vpop.f32.mrf.mxu0
  %v1733 = vadd.f32 %v1720, %v1732
  %v1734 = vpop.f32.mrf.mxu0
  %1735 = vdwg.mxu0
  %1736 = vmatpush.bf16.msra.mxu0 %v1187
  %1737 = vmatpush.bf16.msra.mxu0 %v1183
  %1738 = vmatpush.bf16.msra.mxu0 %v1179
  %1739 = vmatpush.bf16.msra.mxu0 %v1175
  %1740 = vmatpush.bf16.msra.mxu0 %v1171
  %1741 = vmatpush.bf16.msra.mxu0 %v1167
  %1742 = vmatpush.bf16.msra.mxu0 %v1163
  %1743 = vmatpush.bf16.msra.mxu0 %v1159
  %1744 = vmatmul.bf16.gmra.mxu0 %v54
  %v1745 = vpop.f32.mrf.mxu0
  %v1746 = vadd.f32 %v1733, %v1745
  %v1747 = vpop.f32.mrf.mxu0
  %1748 = vdwg.mxu0
  %1749 = vmatpush.bf16.msra.mxu0 %v1219
  %1750 = vmatpush.bf16.msra.mxu0 %v1215
  %1751 = vmatpush.bf16.msra.mxu0 %v1211
  %1752 = vmatpush.bf16.msra.mxu0 %v1207
  %1753 = vmatpush.bf16.msra.mxu0 %v1203
  %1754 = vmatpush.bf16.msra.mxu0 %v1199
  %1755 = vmatpush.bf16.msra.mxu0 %v1195
  %1756 = vmatpush.bf16.msra.mxu0 %v1191
  %1757 = vmatmul.bf16.gmra.mxu0 %v55
  %v1758 = vpop.f32.mrf.mxu0
  %v1759 = vadd.f32 %v1746, %v1758
  %v1760 = vpop.f32.mrf.mxu0
  %1761 = vdwg.mxu0
  %1762 = vmatpush.bf16.msra.mxu0 %v1251
  %1763 = vmatpush.bf16.msra.mxu0 %v1247
  %1764 = vmatpush.bf16.msra.mxu0 %v1243
  %1765 = vmatpush.bf16.msra.mxu0 %v1239
  %1766 = vmatpush.bf16.msra.mxu0 %v1235
  %1767 = vmatpush.bf16.msra.mxu0 %v1231
  %1768 = vmatpush.bf16.msra.mxu0 %v1227
  %1769 = vmatpush.bf16.msra.mxu0 %v1223
  %1770 = vmatmul.bf16.gmra.mxu0 %v56
  %v1771 = vpop.f32.mrf.mxu0
  %v1772 = vadd.f32 %v1759, %v1771
  %v1773 = vpop.f32.mrf.mxu0
  %1774 = vdwg.mxu0
  %1775 = vmatpush.bf16.msra.mxu0 %v1283
  %1776 = vmatpush.bf16.msra.mxu0 %v1279
  %1777 = vmatpush.bf16.msra.mxu0 %v1275
  %1778 = vmatpush.bf16.msra.mxu0 %v1271
  %1779 = vmatpush.bf16.msra.mxu0 %v1267
  %1780 = vmatpush.bf16.msra.mxu0 %v1263
  %1781 = vmatpush.bf16.msra.mxu0 %v1259
  %1782 = vmatpush.bf16.msra.mxu0 %v1255
  %1783 = vmatmul.bf16.gmra.mxu0 %v57
  %v1784 = vpop.f32.mrf.mxu0
  %v1785 = vadd.f32 %v1772, %v1784
  %v1786 = vpop.f32.mrf.mxu0
  %1787 = vdwg.mxu0
  %1788 = vmatpush.bf16.msra.mxu0 %v1315
  %1789 = vmatpush.bf16.msra.mxu0 %v1311
  %1790 = vmatpush.bf16.msra.mxu0 %v1307
  %1791 = vmatpush.bf16.msra.mxu0 %v1303
  %1792 = vmatpush.bf16.msra.mxu0 %v1299
  %1793 = vmatpush.bf16.msra.mxu0 %v1295
  %1794 = vmatpush.bf16.msra.mxu0 %v1291
  %1795 = vmatpush.bf16.msra.mxu0 %v1287
  %1796 = vmatmul.bf16.gmra.mxu0 %v58
  %v1797 = vpop.f32.mrf.mxu0
  %v1798 = vadd.f32 %v1785, %v1797
  %v1799 = vpop.f32.mrf.mxu0
  %1800 = vdwg.mxu0
  %1801 = vmatpush.bf16.msra.mxu0 %v1347
  %1802 = vmatpush.bf16.msra.mxu0 %v1343
  %1803 = vmatpush.bf16.msra.mxu0 %v1339
  %1804 = vmatpush.bf16.msra.mxu0 %v1335
  %1805 = vmatpush.bf16.msra.mxu0 %v1331
  %1806 = vmatpush.bf16.msra.mxu0 %v1327
  %1807 = vmatpush.bf16.msra.mxu0 %v1323
  %1808 = vmatpush.bf16.msra.mxu0 %v1319
  %1809 = vmatmul.bf16.gmra.mxu0 %v59
  %v1810 = vpop.f32.mrf.mxu0
  %v1811 = vadd.f32 %v1798, %v1810
  %v1812 = vpop.f32.mrf.mxu0
  %1813 = vdwg.mxu0
  %1814 = vmatpush.bf16.msra.mxu0 %v1124
  %1815 = vmatpush.bf16.msra.mxu0 %v1120
  %1816 = vmatpush.bf16.msra.mxu0 %v1116
  %1817 = vmatpush.bf16.msra.mxu0 %v1112
  %1818 = vmatpush.bf16.msra.mxu0 %v1108
  %1819 = vmatpush.bf16.msra.mxu0 %v1104
  %1820 = vmatpush.bf16.msra.mxu0 %v1100
  %1821 = vmatpush.bf16.msra.mxu0 %v1096
  %1822 = vmatmul.bf16.gmra.mxu0 %v52
  %v1823 = vpop.f32.mrf.mxu0
  %v1824 = vadd.f32 %v320, %v1823
  %v1825 = vpop.f32.mrf.mxu0
  %1826 = vdwg.mxu0
  %1827 = vmatpush.bf16.msra.mxu0 %v1156
  %1828 = vmatpush.bf16.msra.mxu0 %v1152
  %1829 = vmatpush.bf16.msra.mxu0 %v1148
  %1830 = vmatpush.bf16.msra.mxu0 %v1144
  %1831 = vmatpush.bf16.msra.mxu0 %v1140
  %1832 = vmatpush.bf16.msra.mxu0 %v1136
  %1833 = vmatpush.bf16.msra.mxu0 %v1132
  %1834 = vmatpush.bf16.msra.mxu0 %v1128
  %1835 = vmatmul.bf16.gmra.mxu0 %v53
  %v1836 = vpop.f32.mrf.mxu0
  %v1837 = vadd.f32 %v1824, %v1836
  %v1838 = vpop.f32.mrf.mxu0
  %1839 = vdwg.mxu0
  %1840 = vmatpush.bf16.msra.mxu0 %v1188
  %1841 = vmatpush.bf16.msra.mxu0 %v1184
  %1842 = vmatpush.bf16.msra.mxu0 %v1180
  %1843 = vmatpush.bf16.msra.mxu0 %v1176
  %1844 = vmatpush.bf16.msra.mxu0 %v1172
  %1845 = vmatpush.bf16.msra.mxu0 %v1168
  %1846 = vmatpush.bf16.msra.mxu0 %v1164
  %1847 = vmatpush.bf16.msra.mxu0 %v1160
  %1848 = vmatmul.bf16.gmra.mxu0 %v54
  %v1849 = vpop.f32.mrf.mxu0
  %v1850 = vadd.f32 %v1837, %v1849
  %v1851 = vpop.f32.mrf.mxu0
  %1852 = vdwg.mxu0
  %1853 = vmatpush.bf16.msra.mxu0 %v1220
  %1854 = vmatpush.bf16.msra.mxu0 %v1216
  %1855 = vmatpush.bf16.msra.mxu0 %v1212
  %1856 = vmatpush.bf16.msra.mxu0 %v1208
  %1857 = vmatpush.bf16.msra.mxu0 %v1204
  %1858 = vmatpush.bf16.msra.mxu0 %v1200
  %1859 = vmatpush.bf16.msra.mxu0 %v1196
  %1860 = vmatpush.bf16.msra.mxu0 %v1192
  %1861 = vmatmul.bf16.gmra.mxu0 %v55
  %v1862 = vpop.f32.mrf.mxu0
  %v1863 = vadd.f32 %v1850, %v1862
  %v1864 = vpop.f32.mrf.mxu0
  %1865 = vdwg.mxu0
  %1866 = vmatpush.bf16.msra.mxu0 %v1252
  %1867 = vmatpush.bf16.msra.mxu0 %v1248
  %1868 = vmatpush.bf16.msra.mxu0 %v1244
  %1869 = vmatpush.bf16.msra.mxu0 %v1240
  %1870 = vmatpush.bf16.msra.mxu0 %v1236
  %1871 = vmatpush.bf16.msra.mxu0 %v1232
  %1872 = vmatpush.bf16.msra.mxu0 %v1228
  %1873 = vmatpush.bf16.msra.mxu0 %v1224
  %1874 = vmatmul.bf16.gmra.mxu0 %v56
  %v1875 = vpop.f32.mrf.mxu0
  %v1876 = vadd.f32 %v1863, %v1875
  %v1877 = vpop.f32.mrf.mxu0
  %1878 = vdwg.mxu0
  %1879 = vmatpush.bf16.msra.mxu0 %v1284
  %1880 = vmatpush.bf16.msra.mxu0 %v1280
  %1881 = vmatpush.bf16.msra.mxu0 %v1276
  %1882 = vmatpush.bf16.msra.mxu0 %v1272
  %1883 = vmatpush.bf16.msra.mxu0 %v1268
  %1884 = vmatpush.bf16.msra.mxu0 %v1264
  %1885 = vmatpush.bf16.msra.mxu0 %v1260
  %1886 = vmatpush.bf16.msra.mxu0 %v1256
  %1887 = vmatmul.bf16.gmra.mxu0 %v57
  %v1888 = vpop.f32.mrf.mxu0
  %v1889 = vadd.f32 %v1876, %v1888
  %v1890 = vpop.f32.mrf.mxu0
  %1891 = vdwg.mxu0
  %1892 = vmatpush.bf16.msra.mxu0 %v1316
  %1893 = vmatpush.bf16.msra.mxu0 %v1312
  %1894 = vmatpush.bf16.msra.mxu0 %v1308
  %1895 = vmatpush.bf16.msra.mxu0 %v1304
  %1896 = vmatpush.bf16.msra.mxu0 %v1300
  %1897 = vmatpush.bf16.msra.mxu0 %v1296
  %1898 = vmatpush.bf16.msra.mxu0 %v1292
  %1899 = vmatpush.bf16.msra.mxu0 %v1288
  %1900 = vmatmul.bf16.gmra.mxu0 %v58
  %v1901 = vpop.f32.mrf.mxu0
  %v1902 = vadd.f32 %v1889, %v1901
  %v1903 = vpop.f32.mrf.mxu0
  %1904 = vdwg.mxu0
  %1905 = vmatpush.bf16.msra.mxu0 %v1348
  %1906 = vmatpush.bf16.msra.mxu0 %v1344
  %1907 = vmatpush.bf16.msra.mxu0 %v1340
  %1908 = vmatpush.bf16.msra.mxu0 %v1336
  %1909 = vmatpush.bf16.msra.mxu0 %v1332
  %1910 = vmatpush.bf16.msra.mxu0 %v1328
  %1911 = vmatpush.bf16.msra.mxu0 %v1324
  %1912 = vmatpush.bf16.msra.mxu0 %v1320
  %1913 = vmatmul.bf16.gmra.mxu0 %v59
  %v1914 = vpop.f32.mrf.mxu0
  %v1915 = vadd.f32 %v1902, %v1914
  %v1916 = vpop.f32.mrf.mxu0
  %1917 = vdwg.mxu0
  %1918 = vmatpush.bf16.msra.mxu0 %v1125
  %1919 = vmatpush.bf16.msra.mxu0 %v1121
  %1920 = vmatpush.bf16.msra.mxu0 %v1117
  %1921 = vmatpush.bf16.msra.mxu0 %v1113
  %1922 = vmatpush.bf16.msra.mxu0 %v1109
  %1923 = vmatpush.bf16.msra.mxu0 %v1105
  %1924 = vmatpush.bf16.msra.mxu0 %v1101
  %1925 = vmatpush.bf16.msra.mxu0 %v1097
  %1926 = vmatmul.bf16.gmra.mxu0 %v52
  %v1927 = vpop.f32.mrf.mxu0
  %v1928 = vadd.f32 %v321, %v1927
  %v1929 = vpop.f32.mrf.mxu0
  %1930 = vdwg.mxu0
  %1931 = vmatpush.bf16.msra.mxu0 %v1157
  %1932 = vmatpush.bf16.msra.mxu0 %v1153
  %1933 = vmatpush.bf16.msra.mxu0 %v1149
  %1934 = vmatpush.bf16.msra.mxu0 %v1145
  %1935 = vmatpush.bf16.msra.mxu0 %v1141
  %1936 = vmatpush.bf16.msra.mxu0 %v1137
  %1937 = vmatpush.bf16.msra.mxu0 %v1133
  %1938 = vmatpush.bf16.msra.mxu0 %v1129
  %1939 = vmatmul.bf16.gmra.mxu0 %v53
  %v1940 = vpop.f32.mrf.mxu0
  %v1941 = vadd.f32 %v1928, %v1940
  %v1942 = vpop.f32.mrf.mxu0
  %1943 = vdwg.mxu0
  %1944 = vmatpush.bf16.msra.mxu0 %v1189
  %1945 = vmatpush.bf16.msra.mxu0 %v1185
  %1946 = vmatpush.bf16.msra.mxu0 %v1181
  %1947 = vmatpush.bf16.msra.mxu0 %v1177
  %1948 = vmatpush.bf16.msra.mxu0 %v1173
  %1949 = vmatpush.bf16.msra.mxu0 %v1169
  %1950 = vmatpush.bf16.msra.mxu0 %v1165
  %1951 = vmatpush.bf16.msra.mxu0 %v1161
  %1952 = vmatmul.bf16.gmra.mxu0 %v54
  %v1953 = vpop.f32.mrf.mxu0
  %v1954 = vadd.f32 %v1941, %v1953
  %v1955 = vpop.f32.mrf.mxu0
  %1956 = vdwg.mxu0
  %1957 = vmatpush.bf16.msra.mxu0 %v1221
  %1958 = vmatpush.bf16.msra.mxu0 %v1217
  %1959 = vmatpush.bf16.msra.mxu0 %v1213
  %1960 = vmatpush.bf16.msra.mxu0 %v1209
  %1961 = vmatpush.bf16.msra.mxu0 %v1205
  %1962 = vmatpush.bf16.msra.mxu0 %v1201
  %1963 = vmatpush.bf16.msra.mxu0 %v1197
  %1964 = vmatpush.bf16.msra.mxu0 %v1193
  %1965 = vmatmul.bf16.gmra.mxu0 %v55
  %v1966 = vpop.f32.mrf.mxu0
  %v1967 = vadd.f32 %v1954, %v1966
  %v1968 = vpop.f32.mrf.mxu0
  %1969 = vdwg.mxu0
  %1970 = vmatpush.bf16.msra.mxu0 %v1253
  %1971 = vmatpush.bf16.msra.mxu0 %v1249
  %1972 = vmatpush.bf16.msra.mxu0 %v1245
  %1973 = vmatpush.bf16.msra.mxu0 %v1241
  %1974 = vmatpush.bf16.msra.mxu0 %v1237
  %1975 = vmatpush.bf16.msra.mxu0 %v1233
  %1976 = vmatpush.bf16.msra.mxu0 %v1229
  %1977 = vmatpush.bf16.msra.mxu0 %v1225
  %1978 = vmatmul.bf16.gmra.mxu0 %v56
  %v1979 = vpop.f32.mrf.mxu0
  %v1980 = vadd.f32 %v1967, %v1979
  %v1981 = vpop.f32.mrf.mxu0
  %1982 = vdwg.mxu0
  %1983 = vmatpush.bf16.msra.mxu0 %v1285
  %1984 = vmatpush.bf16.msra.mxu0 %v1281
  %1985 = vmatpush.bf16.msra.mxu0 %v1277
  %1986 = vmatpush.bf16.msra.mxu0 %v1273
  %1987 = vmatpush.bf16.msra.mxu0 %v1269
  %1988 = vmatpush.bf16.msra.mxu0 %v1265
  %1989 = vmatpush.bf16.msra.mxu0 %v1261
  %1990 = vmatpush.bf16.msra.mxu0 %v1257
  %1991 = vmatmul.bf16.gmra.mxu0 %v57
  %v1992 = vpop.f32.mrf.mxu0
  %v1993 = vadd.f32 %v1980, %v1992
  %v1994 = vpop.f32.mrf.mxu0
  %1995 = vdwg.mxu0
  %1996 = vmatpush.bf16.msra.mxu0 %v1317
  %1997 = vmatpush.bf16.msra.mxu0 %v1313
  %1998 = vmatpush.bf16.msra.mxu0 %v1309
  %1999 = vmatpush.bf16.msra.mxu0 %v1305
  %2000 = vmatpush.bf16.msra.mxu0 %v1301
  %2001 = vmatpush.bf16.msra.mxu0 %v1297
  %2002 = vmatpush.bf16.msra.mxu0 %v1293
  %2003 = vmatpush.bf16.msra.mxu0 %v1289
  %2004 = vmatmul.bf16.gmra.mxu0 %v58
  %v2005 = vpop.f32.mrf.mxu0
  %v2006 = vadd.f32 %v1993, %v2005
  %v2007 = vpop.f32.mrf.mxu0
  %2008 = vdwg.mxu0
  %2009 = vmatpush.bf16.msra.mxu0 %v1349
  %2010 = vmatpush.bf16.msra.mxu0 %v1345
  %2011 = vmatpush.bf16.msra.mxu0 %v1341
  %2012 = vmatpush.bf16.msra.mxu0 %v1337
  %2013 = vmatpush.bf16.msra.mxu0 %v1333
  %2014 = vmatpush.bf16.msra.mxu0 %v1329
  %2015 = vmatpush.bf16.msra.mxu0 %v1325
  %2016 = vmatpush.bf16.msra.mxu0 %v1321
  %2017 = vmatmul.bf16.gmra.mxu0 %v59
  %v2018 = vpop.f32.mrf.mxu0
  %v2019 = vadd.f32 %v2006, %v2018
  %v2020 = vpop.f32.mrf.mxu0
  %2021 = vdwg.mxu0
  %v2022 = vmax.f32 %v1707, 0.0
  %v2023 = vmax.f32 %v1811, 0.0
  %v2024 = vmax.f32 %v1915, 0.0
  %v2025 = vmax.f32 %v2019, 0.0
  %v2026 = vpack.c.bf16 %v2022, %v2022
  %v2027 = vpack.c.bf16 %v2023, %v2023
  %v2028 = vpack.c.bf16 %v2024, %v2024
  %v2029 = vpack.c.bf16 %v2025, %v2025
  %v2030 = vld [vmem:[%s3] sm:$0xff]
  %v2031 = vld [vmem:[%s3 + $0x8] sm:$0xff]
  %v2032 = vld [vmem:[%s3 + $0x10] sm:$0xff]
  %v2033 = vld [vmem:[%s3 + $0x18] sm:$0xff]
  %v2034 = vld [vmem:[%s3 + $0x20] sm:$0xff]
  %v2035 = vld [vmem:[%s3 + $0x28] sm:$0xff]
  %v2036 = vld [vmem:[%s3 + $0x30] sm:$0xff]
  %v2037 = vld [vmem:[%s3 + $0x38] sm:$0xff]
  %v2038 = vld [vmem:[%s3 + $0x40] sm:$0xff]
  %v2039 = vld [vmem:[%s3 + $0x48] sm:$0xff]
  %v2040 = vld [vmem:[%s3 + $0x50] sm:$0xff]
  %v2041 = vld [vmem:[%s3 + $0x58] sm:$0xff]
  %v2042 = vld [vmem:[%s3 + $0x60] sm:$0xff]
  %v2043 = vld [vmem:[%s3 + $0x68] sm:$0xff]
  %v2044 = vld [vmem:[%s3 + $0x70] sm:$0xff]
  %v2045 = vld [vmem:[%s3 + $0x78] sm:$0xff]
  %v2046 = vld [vmem:[%s3 + $0x80] sm:$0xff]
  %v2047 = vld [vmem:[%s3 + $0x88] sm:$0xff]
  %v2048 = vld [vmem:[%s3 + $0x90] sm:$0xff]
  %v2049 = vld [vmem:[%s3 + $0x98] sm:$0xff]
  %v2050 = vld [vmem:[%s3 + $0xa0] sm:$0xff]
  %v2051 = vld [vmem:[%s3 + $0xa8] sm:$0xff]
  %v2052 = vld [vmem:[%s3 + $0xb0] sm:$0xff]
  %v2053 = vld [vmem:[%s3 + $0xb8] sm:$0xff]
  %v2054 = vld [vmem:[%s3 + $0xc0] sm:$0xff]
  %v2055 = vld [vmem:[%s3 + $0xc8] sm:$0xff]
  %v2056 = vld [vmem:[%s3 + $0xd0] sm:$0xff]
  %v2057 = vld [vmem:[%s3 + $0xd8] sm:$0xff]
  %v2058 = vld [vmem:[%s3 + $0xe0] sm:$0xff]
  %v2059 = vld [vmem:[%s3 + $0xe8] sm:$0xff]
  %v2060 = vld [vmem:[%s3 + $0xf0] sm:$0xff]
  %v2061 = vld [vmem:[%s3 + $0xf8] sm:$0xff]
  %v2062 = vld [vmem:[%s3 + $0x100] sm:$0xff]
  %v2063 = vld [vmem:[%s3 + $0x108] sm:$0xff]
  %v2064 = vld [vmem:[%s3 + $0x110] sm:$0xff]
  %v2065 = vld [vmem:[%s3 + $0x118] sm:$0xff]
  %v2066 = vld [vmem:[%s3 + $0x120] sm:$0xff]
  %v2067 = vld [vmem:[%s3 + $0x128] sm:$0xff]
  %v2068 = vld [vmem:[%s3 + $0x130] sm:$0xff]
  %v2069 = vld [vmem:[%s3 + $0x138] sm:$0xff]
  %v2070 = vld [vmem:[%s3 + $0x140] sm:$0xff]
  %v2071 = vld [vmem:[%s3 + $0x148] sm:$0xff]
  %v2072 = vld [vmem:[%s3 + $0x150] sm:$0xff]
  %v2073 = vld [vmem:[%s3 + $0x158] sm:$0xff]
  %v2074 = vld [vmem:[%s3 + $0x160] sm:$0xff]
  %v2075 = vld [vmem:[%s3 + $0x168] sm:$0xff]
  %v2076 = vld [vmem:[%s3 + $0x170] sm:$0xff]
  %v2077 = vld [vmem:[%s3 + $0x178] sm:$0xff]
  %v2078 = vld [vmem:[%s3 + $0x180] sm:$0xff]
  %v2079 = vld [vmem:[%s3 + $0x188] sm:$0xff]
  %v2080 = vld [vmem:[%s3 + $0x190] sm:$0xff]
  %v2081 = vld [vmem:[%s3 + $0x198] sm:$0xff]
  %v2082 = vld [vmem:[%s3 + $0x1a0] sm:$0xff]
  %v2083 = vld [vmem:[%s3 + $0x1a8] sm:$0xff]
  %v2084 = vld [vmem:[%s3 + $0x1b0] sm:$0xff]
  %v2085 = vld [vmem:[%s3 + $0x1b8] sm:$0xff]
  %v2086 = vld [vmem:[%s3 + $0x1c0] sm:$0xff]
  %v2087 = vld [vmem:[%s3 + $0x1c8] sm:$0xff]
  %v2088 = vld [vmem:[%s3 + $0x1d0] sm:$0xff]
  %v2089 = vld [vmem:[%s3 + $0x1d8] sm:$0xff]
  %v2090 = vld [vmem:[%s3 + $0x1e0] sm:$0xff]
  %v2091 = vld [vmem:[%s3 + $0x1e8] sm:$0xff]
  %v2092 = vld [vmem:[%s3 + $0x1f0] sm:$0xff]
  %v2093 = vld [vmem:[%s3 + $0x1f8] sm:$0xff]
  %v2094 = vld [vmem:[%s4] sm:$0x3]
  %v2096 = vperm.slane %v2094, 0
  %v2097 = vperm.slane %v2094, 1
  %v2164 = vunpack.c.l.b16 %v2030
  %v2165 = vunpack.c.h.b16 %v2030
  %v2166 = vunpack.c.l.b16 %v2031
  %v2167 = vunpack.c.h.b16 %v2031
  %v2168 = vunpack.c.l.b16 %v2032
  %v2169 = vunpack.c.h.b16 %v2032
  %v2170 = vunpack.c.l.b16 %v2033
  %v2171 = vunpack.c.h.b16 %v2033
  %v2172 = vunpack.c.l.b16 %v2034
  %v2173 = vunpack.c.h.b16 %v2034
  %v2174 = vunpack.c.l.b16 %v2035
  %v2175 = vunpack.c.h.b16 %v2035
  %v2176 = vunpack.c.l.b16 %v2036
  %v2177 = vunpack.c.h.b16 %v2036
  %v2178 = vunpack.c.l.b16 %v2037
  %v2179 = vunpack.c.h.b16 %v2037
  %v2180 = vunpack.c.l.b16 %v2038
  %v2181 = vunpack.c.h.b16 %v2038
  %v2182 = vunpack.c.l.b16 %v2039
  %v2183 = vunpack.c.h.b16 %v2039
  %v2184 = vunpack.c.l.b16 %v2040
  %v2185 = vunpack.c.h.b16 %v2040
  %v2186 = vunpack.c.l.b16 %v2041
  %v2187 = vunpack.c.h.b16 %v2041
  %v2188 = vunpack.c.l.b16 %v2042
  %v2189 = vunpack.c.h.b16 %v2042
  %v2190 = vunpack.c.l.b16 %v2043
  %v2191 = vunpack.c.h.b16 %v2043
  %v2192 = vunpack.c.l.b16 %v2044
  %v2193 = vunpack.c.h.b16 %v2044
  %v2194 = vunpack.c.l.b16 %v2045
  %v2195 = vunpack.c.h.b16 %v2045
  %v2196 = vunpack.c.l.b16 %v2046
  %v2197 = vunpack.c.h.b16 %v2046
  %v2198 = vunpack.c.l.b16 %v2047
  %v2199 = vunpack.c.h.b16 %v2047
  %v2200 = vunpack.c.l.b16 %v2048
  %v2201 = vunpack.c.h.b16 %v2048
  %v2202 = vunpack.c.l.b16 %v2049
  %v2203 = vunpack.c.h.b16 %v2049
  %v2204 = vunpack.c.l.b16 %v2050
  %v2205 = vunpack.c.h.b16 %v2050
  %v2206 = vunpack.c.l.b16 %v2051
  %v2207 = vunpack.c.h.b16 %v2051
  %v2208 = vunpack.c.l.b16 %v2052
  %v2209 = vunpack.c.h.b16 %v2052
  %v2210 = vunpack.c.l.b16 %v2053
  %v2211 = vunpack.c.h.b16 %v2053
  %v2212 = vunpack.c.l.b16 %v2054
  %v2213 = vunpack.c.h.b16 %v2054
  %v2214 = vunpack.c.l.b16 %v2055
  %v2215 = vunpack.c.h.b16 %v2055
  %v2216 = vunpack.c.l.b16 %v2056
  %v2217 = vunpack.c.h.b16 %v2056
  %v2218 = vunpack.c.l.b16 %v2057
  %v2219 = vunpack.c.h.b16 %v2057
  %v2220 = vunpack.c.l.b16 %v2058
  %v2221 = vunpack.c.h.b16 %v2058
  %v2222 = vunpack.c.l.b16 %v2059
  %v2223 = vunpack.c.h.b16 %v2059
  %v2224 = vunpack.c.l.b16 %v2060
  %v2225 = vunpack.c.h.b16 %v2060
  %v2226 = vunpack.c.l.b16 %v2061
  %v2227 = vunpack.c.h.b16 %v2061
  %v2228 = vunpack.c.l.b16 %v2062
  %v2229 = vunpack.c.h.b16 %v2062
  %v2230 = vunpack.c.l.b16 %v2063
  %v2231 = vunpack.c.h.b16 %v2063
  %v2232 = vunpack.c.l.b16 %v2064
  %v2233 = vunpack.c.h.b16 %v2064
  %v2234 = vunpack.c.l.b16 %v2065
  %v2235 = vunpack.c.h.b16 %v2065
  %v2236 = vunpack.c.l.b16 %v2066
  %v2237 = vunpack.c.h.b16 %v2066
  %v2238 = vunpack.c.l.b16 %v2067
  %v2239 = vunpack.c.h.b16 %v2067
  %v2240 = vunpack.c.l.b16 %v2068
  %v2241 = vunpack.c.h.b16 %v2068
  %v2242 = vunpack.c.l.b16 %v2069
  %v2243 = vunpack.c.h.b16 %v2069
  %v2244 = vunpack.c.l.b16 %v2070
  %v2245 = vunpack.c.h.b16 %v2070
  %v2246 = vunpack.c.l.b16 %v2071
  %v2247 = vunpack.c.h.b16 %v2071
  %v2248 = vunpack.c.l.b16 %v2072
  %v2249 = vunpack.c.h.b16 %v2072
  %v2250 = vunpack.c.l.b16 %v2073
  %v2251 = vunpack.c.h.b16 %v2073
  %v2252 = vunpack.c.l.b16 %v2074
  %v2253 = vunpack.c.h.b16 %v2074
  %v2254 = vunpack.c.l.b16 %v2075
  %v2255 = vunpack.c.h.b16 %v2075
  %v2256 = vunpack.c.l.b16 %v2076
  %v2257 = vunpack.c.h.b16 %v2076
  %v2258 = vunpack.c.l.b16 %v2077
  %v2259 = vunpack.c.h.b16 %v2077
  %v2260 = vunpack.c.l.b16 %v2078
  %v2261 = vunpack.c.h.b16 %v2078
  %v2262 = vunpack.c.l.b16 %v2079
  %v2263 = vunpack.c.h.b16 %v2079
  %v2264 = vunpack.c.l.b16 %v2080
  %v2265 = vunpack.c.h.b16 %v2080
  %v2266 = vunpack.c.l.b16 %v2081
  %v2267 = vunpack.c.h.b16 %v2081
  %v2268 = vunpack.c.l.b16 %v2082
  %v2269 = vunpack.c.h.b16 %v2082
  %v2270 = vunpack.c.l.b16 %v2083
  %v2271 = vunpack.c.h.b16 %v2083
  %v2272 = vunpack.c.l.b16 %v2084
  %v2273 = vunpack.c.h.b16 %v2084
  %v2274 = vunpack.c.l.b16 %v2085
  %v2275 = vunpack.c.h.b16 %v2085
  %v2276 = vunpack.c.l.b16 %v2086
  %v2277 = vunpack.c.h.b16 %v2086
  %v2278 = vunpack.c.l.b16 %v2087
  %v2279 = vunpack.c.h.b16 %v2087
  %v2280 = vunpack.c.l.b16 %v2088
  %v2281 = vunpack.c.h.b16 %v2088
  %v2282 = vunpack.c.l.b16 %v2089
  %v2283 = vunpack.c.h.b16 %v2089
  %v2284 = vunpack.c.l.b16 %v2090
  %v2285 = vunpack.c.h.b16 %v2090
  %v2286 = vunpack.c.l.b16 %v2091
  %v2287 = vunpack.c.h.b16 %v2091
  %v2288 = vunpack.c.l.b16 %v2092
  %v2289 = vunpack.c.h.b16 %v2092
  %v2290 = vunpack.c.l.b16 %v2093
  %v2291 = vunpack.c.h.b16 %v2093
  %v2292 = vpack.c.b16 %v2166, %v2164
  %v2293 = vpack.c.b16 %v2167, %v2165
  %v2294 = vpack.c.b16 %v2170, %v2168
  %v2295 = vpack.c.b16 %v2171, %v2169
  %v2296 = vpack.c.b16 %v2174, %v2172
  %v2297 = vpack.c.b16 %v2175, %v2173
  %v2298 = vpack.c.b16 %v2178, %v2176
  %v2299 = vpack.c.b16 %v2179, %v2177
  %v2300 = vpack.c.b16 %v2182, %v2180
  %v2301 = vpack.c.b16 %v2183, %v2181
  %v2302 = vpack.c.b16 %v2186, %v2184
  %v2303 = vpack.c.b16 %v2187, %v2185
  %v2304 = vpack.c.b16 %v2190, %v2188
  %v2305 = vpack.c.b16 %v2191, %v2189
  %v2306 = vpack.c.b16 %v2194, %v2192
  %v2307 = vpack.c.b16 %v2195, %v2193
  %v2308 = vpack.c.b16 %v2198, %v2196
  %v2309 = vpack.c.b16 %v2199, %v2197
  %v2310 = vpack.c.b16 %v2202, %v2200
  %v2311 = vpack.c.b16 %v2203, %v2201
  %v2312 = vpack.c.b16 %v2206, %v2204
  %v2313 = vpack.c.b16 %v2207, %v2205
  %v2314 = vpack.c.b16 %v2210, %v2208
  %v2315 = vpack.c.b16 %v2211, %v2209
  %v2316 = vpack.c.b16 %v2214, %v2212
  %v2317 = vpack.c.b16 %v2215, %v2213
  %v2318 = vpack.c.b16 %v2218, %v2216
  %v2319 = vpack.c.b16 %v2219, %v2217
  %v2320 = vpack.c.b16 %v2222, %v2220
  %v2321 = vpack.c.b16 %v2223, %v2221
  %v2322 = vpack.c.b16 %v2226, %v2224
  %v2323 = vpack.c.b16 %v2227, %v2225
  %v2324 = vpack.c.b16 %v2230, %v2228
  %v2325 = vpack.c.b16 %v2231, %v2229
  %v2326 = vpack.c.b16 %v2234, %v2232
  %v2327 = vpack.c.b16 %v2235, %v2233
  %v2328 = vpack.c.b16 %v2238, %v2236
  %v2329 = vpack.c.b16 %v2239, %v2237
  %v2330 = vpack.c.b16 %v2242, %v2240
  %v2331 = vpack.c.b16 %v2243, %v2241
  %v2332 = vpack.c.b16 %v2246, %v2244
  %v2333 = vpack.c.b16 %v2247, %v2245
  %v2334 = vpack.c.b16 %v2250, %v2248
  %v2335 = vpack.c.b16 %v2251, %v2249
  %v2336 = vpack.c.b16 %v2254, %v2252
  %v2337 = vpack.c.b16 %v2255, %v2253
  %v2338 = vpack.c.b16 %v2258, %v2256
  %v2339 = vpack.c.b16 %v2259, %v2257
  %v2340 = vpack.c.b16 %v2262, %v2260
  %v2341 = vpack.c.b16 %v2263, %v2261
  %v2342 = vpack.c.b16 %v2266, %v2264
  %v2343 = vpack.c.b16 %v2267, %v2265
  %v2344 = vpack.c.b16 %v2270, %v2268
  %v2345 = vpack.c.b16 %v2271, %v2269
  %v2346 = vpack.c.b16 %v2274, %v2272
  %v2347 = vpack.c.b16 %v2275, %v2273
  %v2348 = vpack.c.b16 %v2278, %v2276
  %v2349 = vpack.c.b16 %v2279, %v2277
  %v2350 = vpack.c.b16 %v2282, %v2280
  %v2351 = vpack.c.b16 %v2283, %v2281
  %v2352 = vpack.c.b16 %v2286, %v2284
  %v2353 = vpack.c.b16 %v2287, %v2285
  %v2354 = vpack.c.b16 %v2290, %v2288
  %v2355 = vpack.c.b16 %v2291, %v2289
  %2420 = vmatpush.bf16.msra.mxu0 %v2306
  %2421 = vmatpush.bf16.msra.mxu0 %v2304
  %2422 = vmatpush.bf16.msra.mxu0 %v2302
  %2423 = vmatpush.bf16.msra.mxu0 %v2300
  %2424 = vmatpush.bf16.msra.mxu0 %v2298
  %2425 = vmatpush.bf16.msra.mxu0 %v2296
  %2426 = vmatpush.bf16.msra.mxu0 %v2294
  %2427 = vmatpush.bf16.msra.mxu0 %v2292
  %2428 = vmatmul.bf16.gmra.mxu0 %v2026
  %v2429 = vpop.f32.mrf.mxu0
  %v2430 = vadd.f32 %v2096, %v2429
  %v2431 = vpop.f32.mrf.mxu0
  %2432 = vdwg.mxu0
  %2433 = vmatpush.bf16.msra.mxu0 %v2322
  %2434 = vmatpush.bf16.msra.mxu0 %v2320
  %2435 = vmatpush.bf16.msra.mxu0 %v2318
  %2436 = vmatpush.bf16.msra.mxu0 %v2316
  %2437 = vmatpush.bf16.msra.mxu0 %v2314
  %2438 = vmatpush.bf16.msra.mxu0 %v2312
  %2439 = vmatpush.bf16.msra.mxu0 %v2310
  %2440 = vmatpush.bf16.msra.mxu0 %v2308
  %2441 = vmatmul.bf16.gmra.mxu0 %v2027
  %v2442 = vpop.f32.mrf.mxu0
  %v2443 = vadd.f32 %v2430, %v2442
  %v2444 = vpop.f32.mrf.mxu0
  %2445 = vdwg.mxu0
  %2446 = vmatpush.bf16.msra.mxu0 %v2338
  %2447 = vmatpush.bf16.msra.mxu0 %v2336
  %2448 = vmatpush.bf16.msra.mxu0 %v2334
  %2449 = vmatpush.bf16.msra.mxu0 %v2332
  %2450 = vmatpush.bf16.msra.mxu0 %v2330
  %2451 = vmatpush.bf16.msra.mxu0 %v2328
  %2452 = vmatpush.bf16.msra.mxu0 %v2326
  %2453 = vmatpush.bf16.msra.mxu0 %v2324
  %2454 = vmatmul.bf16.gmra.mxu0 %v2028
  %v2455 = vpop.f32.mrf.mxu0
  %v2456 = vadd.f32 %v2443, %v2455
  %v2457 = vpop.f32.mrf.mxu0
  %2458 = vdwg.mxu0
  %2459 = vmatpush.bf16.msra.mxu0 %v2354
  %2460 = vmatpush.bf16.msra.mxu0 %v2352
  %2461 = vmatpush.bf16.msra.mxu0 %v2350
  %2462 = vmatpush.bf16.msra.mxu0 %v2348
  %2463 = vmatpush.bf16.msra.mxu0 %v2346
  %2464 = vmatpush.bf16.msra.mxu0 %v2344
  %2465 = vmatpush.bf16.msra.mxu0 %v2342
  %2466 = vmatpush.bf16.msra.mxu0 %v2340
  %2467 = vmatmul.bf16.gmra.mxu0 %v2029
  %v2468 = vpop.f32.mrf.mxu0
  %v2469 = vadd.f32 %v2456, %v2468
  %v2470 = vpop.f32.mrf.mxu0
  %2471 = vdwg.mxu0
  %2472 = vmatpush.bf16.msra.mxu0 %v2307
  %2473 = vmatpush.bf16.msra.mxu0 %v2305
  %2474 = vmatpush.bf16.msra.mxu0 %v2303
  %2475 = vmatpush.bf16.msra.mxu0 %v2301
  %2476 = vmatpush.bf16.msra.mxu0 %v2299
  %2477 = vmatpush.bf16.msra.mxu0 %v2297
  %2478 = vmatpush.bf16.msra.mxu0 %v2295
  %2479 = vmatpush.bf16.msra.mxu0 %v2293
  %2480 = vmatmul.bf16.gmra.mxu0 %v2026
  %v2481 = vpop.f32.mrf.mxu0
  %v2482 = vadd.f32 %v2097, %v2481
  %v2483 = vpop.f32.mrf.mxu0
  %2484 = vdwg.mxu0
  %2485 = vmatpush.bf16.msra.mxu0 %v2323
  %2486 = vmatpush.bf16.msra.mxu0 %v2321
  %2487 = vmatpush.bf16.msra.mxu0 %v2319
  %2488 = vmatpush.bf16.msra.mxu0 %v2317
  %2489 = vmatpush.bf16.msra.mxu0 %v2315
  %2490 = vmatpush.bf16.msra.mxu0 %v2313
  %2491 = vmatpush.bf16.msra.mxu0 %v2311
  %2492 = vmatpush.bf16.msra.mxu0 %v2309
  %2493 = vmatmul.bf16.gmra.mxu0 %v2027
  %v2494 = vpop.f32.mrf.mxu0
  %v2495 = vadd.f32 %v2482, %v2494
  %v2496 = vpop.f32.mrf.mxu0
  %2497 = vdwg.mxu0
  %2498 = vmatpush.bf16.msra.mxu0 %v2339
  %2499 = vmatpush.bf16.msra.mxu0 %v2337
  %2500 = vmatpush.bf16.msra.mxu0 %v2335
  %2501 = vmatpush.bf16.msra.mxu0 %v2333
  %2502 = vmatpush.bf16.msra.mxu0 %v2331
  %2503 = vmatpush.bf16.msra.mxu0 %v2329
  %2504 = vmatpush.bf16.msra.mxu0 %v2327
  %2505 = vmatpush.bf16.msra.mxu0 %v2325
  %2506 = vmatmul.bf16.gmra.mxu0 %v2028
  %v2507 = vpop.f32.mrf.mxu0
  %v2508 = vadd.f32 %v2495, %v2507
  %v2509 = vpop.f32.mrf.mxu0
  %2510 = vdwg.mxu0
  %2511 = vmatpush.bf16.msra.mxu0 %v2355
  %2512 = vmatpush.bf16.msra.mxu0 %v2353
  %2513 = vmatpush.bf16.msra.mxu0 %v2351
  %2514 = vmatpush.bf16.msra.mxu0 %v2349
  %2515 = vmatpush.bf16.msra.mxu0 %v2347
  %2516 = vmatpush.bf16.msra.mxu0 %v2345
  %2517 = vmatpush.bf16.msra.mxu0 %v2343
  %2518 = vmatpush.bf16.msra.mxu0 %v2341
  %2519 = vmatmul.bf16.gmra.mxu0 %v2029
  %v2520 = vpop.f32.mrf.mxu0
  %v2521 = vadd.f32 %v2508, %v2520
  %v2522 = vpop.f32.mrf.mxu0
  %2523 = vdwg.mxu0
  %v2524 = vmax.f32 %v2469, 0.0
  %v2525 = vmax.f32 %v2521, 0.0
  %v2526 = vpack.c.bf16 %v2524, %v2524
  %v2527 = vpack.c.bf16 %v2525, %v2525
  %v2528 = vld [vmem:[%s5] sm:$0xff]
  %v2529 = vld [vmem:[%s5 + $0x8] sm:$0xff]
  %v2530 = vld [vmem:[%s5 + $0x10] sm:$0xff]
  %v2531 = vld [vmem:[%s5 + $0x18] sm:$0xff]
  %v2532 = vld [vmem:[%s5 + $0x20] sm:$0xff]
  %v2533 = vld [vmem:[%s5 + $0x28] sm:$0xff]
  %v2534 = vld [vmem:[%s5 + $0x30] sm:$0xff]
  %v2535 = vld [vmem:[%s5 + $0x38] sm:$0xff]
  %v2536 = vld [vmem:[%s5 + $0x40] sm:$0xff]
  %v2537 = vld [vmem:[%s5 + $0x48] sm:$0xff]
  %v2538 = vld [vmem:[%s5 + $0x50] sm:$0xff]
  %v2539 = vld [vmem:[%s5 + $0x58] sm:$0xff]
  %v2540 = vld [vmem:[%s5 + $0x60] sm:$0xff]
  %v2541 = vld [vmem:[%s5 + $0x68] sm:$0xff]
  %v2542 = vld [vmem:[%s5 + $0x70] sm:$0xff]
  %v2543 = vld [vmem:[%s5 + $0x78] sm:$0xff]
  %v2544 = vld [vmem:[%s5 + $0x80] sm:$0xff]
  %v2545 = vld [vmem:[%s5 + $0x88] sm:$0xff]
  %v2546 = vld [vmem:[%s5 + $0x90] sm:$0xff]
  %v2547 = vld [vmem:[%s5 + $0x98] sm:$0xff]
  %v2548 = vld [vmem:[%s5 + $0xa0] sm:$0xff]
  %v2549 = vld [vmem:[%s5 + $0xa8] sm:$0xff]
  %v2550 = vld [vmem:[%s5 + $0xb0] sm:$0xff]
  %v2551 = vld [vmem:[%s5 + $0xb8] sm:$0xff]
  %v2552 = vld [vmem:[%s5 + $0xc0] sm:$0xff]
  %v2553 = vld [vmem:[%s5 + $0xc8] sm:$0xff]
  %v2554 = vld [vmem:[%s5 + $0xd0] sm:$0xff]
  %v2555 = vld [vmem:[%s5 + $0xd8] sm:$0xff]
  %v2556 = vld [vmem:[%s5 + $0xe0] sm:$0xff]
  %v2557 = vld [vmem:[%s5 + $0xe8] sm:$0xff]
  %v2558 = vld [vmem:[%s5 + $0xf0] sm:$0xff]
  %v2559 = vld [vmem:[%s5 + $0xf8] sm:$0xff]
  %v2560 = vld [vmem:[%s6] sm:$0x3]
  %v2562 = vperm.slane %v2560, 0
  %v2563 = vperm.slane %v2560, 1
  %v2598 = vunpack.c.l.b16 %v2528
  %v2599 = vunpack.c.h.b16 %v2528
  %v2600 = vunpack.c.l.b16 %v2529
  %v2601 = vunpack.c.h.b16 %v2529
  %v2602 = vunpack.c.l.b16 %v2530
  %v2603 = vunpack.c.h.b16 %v2530
  %v2604 = vunpack.c.l.b16 %v2531
  %v2605 = vunpack.c.h.b16 %v2531
  %v2606 = vunpack.c.l.b16 %v2532
  %v2607 = vunpack.c.h.b16 %v2532
  %v2608 = vunpack.c.l.b16 %v2533
  %v2609 = vunpack.c.h.b16 %v2533
  %v2610 = vunpack.c.l.b16 %v2534
  %v2611 = vunpack.c.h.b16 %v2534
  %v2612 = vunpack.c.l.b16 %v2535
  %v2613 = vunpack.c.h.b16 %v2535
  %v2614 = vunpack.c.l.b16 %v2536
  %v2615 = vunpack.c.h.b16 %v2536
  %v2616 = vunpack.c.l.b16 %v2537
  %v2617 = vunpack.c.h.b16 %v2537
  %v2618 = vunpack.c.l.b16 %v2538
  %v2619 = vunpack.c.h.b16 %v2538
  %v2620 = vunpack.c.l.b16 %v2539
  %v2621 = vunpack.c.h.b16 %v2539
  %v2622 = vunpack.c.l.b16 %v2540
  %v2623 = vunpack.c.h.b16 %v2540
  %v2624 = vunpack.c.l.b16 %v2541
  %v2625 = vunpack.c.h.b16 %v2541
  %v2626 = vunpack.c.l.b16 %v2542
  %v2627 = vunpack.c.h.b16 %v2542
  %v2628 = vunpack.c.l.b16 %v2543
  %v2629 = vunpack.c.h.b16 %v2543
  %v2630 = vunpack.c.l.b16 %v2544
  %v2631 = vunpack.c.h.b16 %v2544
  %v2632 = vunpack.c.l.b16 %v2545
  %v2633 = vunpack.c.h.b16 %v2545
  %v2634 = vunpack.c.l.b16 %v2546
  %v2635 = vunpack.c.h.b16 %v2546
  %v2636 = vunpack.c.l.b16 %v2547
  %v2637 = vunpack.c.h.b16 %v2547
  %v2638 = vunpack.c.l.b16 %v2548
  %v2639 = vunpack.c.h.b16 %v2548
  %v2640 = vunpack.c.l.b16 %v2549
  %v2641 = vunpack.c.h.b16 %v2549
  %v2642 = vunpack.c.l.b16 %v2550
  %v2643 = vunpack.c.h.b16 %v2550
  %v2644 = vunpack.c.l.b16 %v2551
  %v2645 = vunpack.c.h.b16 %v2551
  %v2646 = vunpack.c.l.b16 %v2552
  %v2647 = vunpack.c.h.b16 %v2552
  %v2648 = vunpack.c.l.b16 %v2553
  %v2649 = vunpack.c.h.b16 %v2553
  %v2650 = vunpack.c.l.b16 %v2554
  %v2651 = vunpack.c.h.b16 %v2554
  %v2652 = vunpack.c.l.b16 %v2555
  %v2653 = vunpack.c.h.b16 %v2555
  %v2654 = vunpack.c.l.b16 %v2556
  %v2655 = vunpack.c.h.b16 %v2556
  %v2656 = vunpack.c.l.b16 %v2557
  %v2657 = vunpack.c.h.b16 %v2557
  %v2658 = vunpack.c.l.b16 %v2558
  %v2659 = vunpack.c.h.b16 %v2558
  %v2660 = vunpack.c.l.b16 %v2559
  %v2661 = vunpack.c.h.b16 %v2559
  %v2662 = vpack.c.b16 %v2600, %v2598
  %v2663 = vpack.c.b16 %v2601, %v2599
  %v2664 = vpack.c.b16 %v2604, %v2602
  %v2665 = vpack.c.b16 %v2605, %v2603
  %v2666 = vpack.c.b16 %v2608, %v2606
  %v2667 = vpack.c.b16 %v2609, %v2607
  %v2668 = vpack.c.b16 %v2612, %v2610
  %v2669 = vpack.c.b16 %v2613, %v2611
  %v2670 = vpack.c.b16 %v2616, %v2614
  %v2671 = vpack.c.b16 %v2617, %v2615
  %v2672 = vpack.c.b16 %v2620, %v2618
  %v2673 = vpack.c.b16 %v2621, %v2619
  %v2674 = vpack.c.b16 %v2624, %v2622
  %v2675 = vpack.c.b16 %v2625, %v2623
  %v2676 = vpack.c.b16 %v2628, %v2626
  %v2677 = vpack.c.b16 %v2629, %v2627
  %v2678 = vpack.c.b16 %v2632, %v2630
  %v2679 = vpack.c.b16 %v2633, %v2631
  %v2680 = vpack.c.b16 %v2636, %v2634
  %v2681 = vpack.c.b16 %v2637, %v2635
  %v2682 = vpack.c.b16 %v2640, %v2638
  %v2683 = vpack.c.b16 %v2641, %v2639
  %v2684 = vpack.c.b16 %v2644, %v2642
  %v2685 = vpack.c.b16 %v2645, %v2643
  %v2686 = vpack.c.b16 %v2648, %v2646
  %v2687 = vpack.c.b16 %v2649, %v2647
  %v2688 = vpack.c.b16 %v2652, %v2650
  %v2689 = vpack.c.b16 %v2653, %v2651
  %v2690 = vpack.c.b16 %v2656, %v2654
  %v2691 = vpack.c.b16 %v2657, %v2655
  %v2692 = vpack.c.b16 %v2660, %v2658
  %v2693 = vpack.c.b16 %v2661, %v2659
  %2726 = vmatpush.bf16.msra.mxu0 %v2676
  %2727 = vmatpush.bf16.msra.mxu0 %v2674
  %2728 = vmatpush.bf16.msra.mxu0 %v2672
  %2729 = vmatpush.bf16.msra.mxu0 %v2670
  %2730 = vmatpush.bf16.msra.mxu0 %v2668
  %2731 = vmatpush.bf16.msra.mxu0 %v2666
  %2732 = vmatpush.bf16.msra.mxu0 %v2664
  %2733 = vmatpush.bf16.msra.mxu0 %v2662
  %2734 = vmatmul.bf16.gmra.mxu0 %v2526
  %v2735 = vpop.f32.mrf.mxu0
  %v2736 = vadd.f32 %v2562, %v2735
  %v2737 = vpop.f32.mrf.mxu0
  %2738 = vdwg.mxu0
  %2739 = vmatpush.bf16.msra.mxu0 %v2692
  %2740 = vmatpush.bf16.msra.mxu0 %v2690
  %2741 = vmatpush.bf16.msra.mxu0 %v2688
  %2742 = vmatpush.bf16.msra.mxu0 %v2686
  %2743 = vmatpush.bf16.msra.mxu0 %v2684
  %2744 = vmatpush.bf16.msra.mxu0 %v2682
  %2745 = vmatpush.bf16.msra.mxu0 %v2680
  %2746 = vmatpush.bf16.msra.mxu0 %v2678
  %2747 = vmatmul.bf16.gmra.mxu0 %v2527
  %v2748 = vpop.f32.mrf.mxu0
  %v2749 = vadd.f32 %v2736, %v2748
  %v2750 = vpop.f32.mrf.mxu0
  %2751 = vdwg.mxu0
  %2752 = vmatpush.bf16.msra.mxu0 %v2677
  %2753 = vmatpush.bf16.msra.mxu0 %v2675
  %2754 = vmatpush.bf16.msra.mxu0 %v2673
  %2755 = vmatpush.bf16.msra.mxu0 %v2671
  %2756 = vmatpush.bf16.msra.mxu0 %v2669
  %2757 = vmatpush.bf16.msra.mxu0 %v2667
  %2758 = vmatpush.bf16.msra.mxu0 %v2665
  %2759 = vmatpush.bf16.msra.mxu0 %v2663
  %2760 = vmatmul.bf16.gmra.mxu0 %v2526
  %v2761 = vpop.f32.mrf.mxu0
  %v2762 = vadd.f32 %v2563, %v2761
  %v2763 = vpop.f32.mrf.mxu0
  %2764 = vdwg.mxu0
  %2765 = vmatpush.bf16.msra.mxu0 %v2693
  %2766 = vmatpush.bf16.msra.mxu0 %v2691
  %2767 = vmatpush.bf16.msra.mxu0 %v2689
  %2768 = vmatpush.bf16.msra.mxu0 %v2687
  %2769 = vmatpush.bf16.msra.mxu0 %v2685
  %2770 = vmatpush.bf16.msra.mxu0 %v2683
  %2771 = vmatpush.bf16.msra.mxu0 %v2681
  %2772 = vmatpush.bf16.msra.mxu0 %v2679
  %2773 = vmatmul.bf16.gmra.mxu0 %v2527
  %v2774 = vpop.f32.mrf.mxu0
  %v2775 = vadd.f32 %v2762, %v2774
  %v2776 = vpop.f32.mrf.mxu0
  %2777 = vdwg.mxu0
  %v2778 = vld [vmem:[%s7] sm:$0x3]
  %v2780 = vperm.slane %v2778, 0
  %v2781 = vperm.slane %v2778, 1
  %v2784 = vadd.f32 %v2749, %v2780
  %v2785 = vadd.f32 %v2775, %v2781
  %v2788 = vrot.slane %v2785, 6
  %vm2789 = vcmask 1041408
  %v2790 = vsel %vm2789, %v2784, %v2788
  %2792 = vst [vmem:[%s8] sm:$0xf] %v2790
  // Predicated region
  $region34: #{stnkd_forward.3} parent=0 // pred_check
    _
  $region35: #{stnkd_forward.3} parent=0 // pred_check_branch
    %2794 = sbr.rel (0) target = $region37
  $region36: #{stnkd_forward.3} parent=0 // pred_region
    _
  $region37: #{stnkd_forward.3} parent=0 // pred_fallthru
    _
  // Predicated region
  $region38: #{stnkd_forward.3} parent=0 // pred_check
    _
  $region39: #{stnkd_forward.3} parent=0 // pred_check_branch
    %2796 = sbr.rel (0) target = $region41
  $region40: #{stnkd_forward.3} parent=0 // pred_region
    _
  $region41: #{stnkd_forward.3} parent=0 // pred_fallthru
    _

// kernel: stnkd_forward.2
$region0: #{stnkd_forward.2}
  #allocation0 [shape = 'u32[]', space=smem, size = 0x4, offset = 0x4, fixed_abs, tag = 'smem constant byte address 0x4 - core index']
  #allocation1 [shape = 'u32[72,128]{1,0:T(1,128)}', space=vmem, size = 0x9000, scoped, tag = 'internal scratch']
  %s0 = inlined_call_operand.hbm [shape: f32[2,16,256], index: 0, kind: input, shape index: {}]
  %s1 = inlined_call_operand.vmem [shape: bf16[64,16], index: 1, kind: input, shape index: {}]
  %s2 = inlined_call_operand.vmem [shape: f32[64,1], index: 2, kind: input, shape index: {}]
  %s3 = inlined_call_operand.vmem [shape: bf16[128,64], index: 3, kind: input, shape index: {}]
  %s4 = inlined_call_operand.vmem [shape: f32[128,1], index: 4, kind: input, shape index: {}]
  %s5 = inlined_call_operand.vmem [shape: bf16[1024,128], index: 5, kind: input, shape index: {}]
  %s6 = inlined_call_operand.vmem [shape: f32[1024,1], index: 6, kind: input, shape index: {}]
  %s7 = inlined_call_operand.vmem [shape: f32[2,1024,1], index: 7, kind: output, shape index: {}]
  %s8 = sld [smem:[#allocation0]]
  $region69: #{stnkd_forward.2} parent=0
    _
  %s10 = ssub.s32 1, %s8
  %s11 = scalar_select 0, %s10, %s8
  $region1: #{stnkd_forward.2} parent=0
    #allocation2 [shape = 'u8[32768]{0}', space=vmem, size = 0x8000, scoped, tag = 'input window, operand 0']
    #allocation3 [shape = 's32[2]{0}', space=sflag, size = 0x8, scoped, tag = 'scoped memory for stnkd_forward.2']
    %12 = vsyncpa [#allocation3], 0
    %s13 = scalar_lea.sflag [#allocation3], 1
    %14 = vsyncpa %s13, 0
    loop: start=0, step=1, limit=4
    $region2: #{stnkd_forward.2} parent=1 // loop_pre_header
      _
    $region3: #{stnkd_forward.2} parent=1 // loop_header
      %s16 = sphi 0, %s20
      %p17 = scmp.ge.s32.totalorder %s16, 4
      %s23 = sphi 0, %s35
      %s24 = sphi 0, %s31
      %s25 = sphi 0, %s23
      %s26 = sphi 0, %s24
      %s27 = sphi 0, %s25
      %s28 = sphi 0, %s26
      %s40 = sphi 0, %s42
      %s43 = sphi 0, %s40
      %s44 = sphi 0, %s43
      %s60 = sphi 0, %s44
      %s64 = sphi 0, %s64
      %s66 = sphi 0, %s64
      %s67 = sphi 0, %s66
      %s81 = sphi 0, %s67
      %s85 = sphi 0, %s85
      %s87 = sphi 0, %s85
      %s88 = sphi 0, %s87
      %s102 = sphi 0, %s88
      %s106 = sphi 0, %s106
      %s108 = sphi 0, %s106
      %s109 = sphi 0, %s108
      %s123 = sphi 0, %s109
      %s127 = sphi 0, %s127
      %s129 = sphi 0, %s127
      %s130 = sphi 0, %s129
      %s144 = sphi 0, %s130
      %s148 = sphi 0, %s148
      %s150 = sphi 0, %s148
      %s151 = sphi 0, %s150
      %s165 = sphi 0, %s151
      %s169 = sphi 0, %s169
      %s171 = sphi 0, %s169
      %s172 = sphi 0, %s171
      %s186 = sphi 0, %s172
      %s192 = sphi 0, %s194
      %s195 = sphi 0, %s192
      %s196 = sphi 0, %s195
      %s212 = sphi 0, %s196
    $region4: #{stnkd_forward.2} parent=1 // loop_header_branch
      %19 = sbr.rel (%p17) target = $region8
    $region5: #{stnkd_forward.2} parent=1 // loop_body
      %s21 = ssub.s32 %s16, 1
      %s22 = ssub.s32 %s16, 2
      %s29 = sadd.s32 1, %s24
      %p30 = scmp.ge.s32.totalorder %s29, 1
      %s31 = scalar_select %p30, 0, %s29
      %s32 = sadd.s32 1, %s23
      %s33 = scalar_select %p30, %s32, %s23
      %p34 = scmp.ge.s32.totalorder %s33, 2
      %s35 = scalar_select %p34, 0, %s33
      %s36 = ssub.s32 %s23, %s35
      %s37 = ssub.s32 %s24, %s31
      %s38 = sor.u32 %s36, %s37
      %p39 = scmp.eq.s32.totalorder %s38, 0
      %s41 = sadd.s32 %s40, 1
      %s42 = scalar_select %p39, %s40, %s41
      %p45 = pneg %p39
      %p46 = scmp.eq.s32.totalorder %s16, 1
      %p47 = por %p45, %p46
      %p48 = scmp.ne.s32.totalorder %s40, %s43
      %p49 = scmp.eq.s32.totalorder %s16, 0
      %p50 = por %p48, %p49
      %p51 = scmp.ne.s32.totalorder %s40, %s43
      %p52 = scmp.eq.s32.totalorder %s21, 1
      %p53 = por %p51, %p52
      %p54 = scmp.ne.s32.totalorder %s43, %s44
      %p55 = scmp.eq.s32.totalorder %s21, 0
      %p56 = por %p54, %p55
      %p57 = scmp.ne.s32.totalorder %s43, %s44
      %p58 = scmp.eq.s32.totalorder %s22, 1
      %p59 = por %p57, %p58
      %p61 = scmp.ne.s32.totalorder %s44, %s60
      %p62 = scmp.eq.s32.totalorder %s22, 0
      %p63 = por %p61, %p62
      %s65 = sadd.s32 %s64, 1
      %p68 = scmp.eq.s32.totalorder %s16, 1
      %p69 = scmp.ne.s32.totalorder %s64, %s66
      %p70 = scmp.eq.s32.totalorder %s16, 0
      %p71 = por %p69, %p70
      %p72 = scmp.ne.s32.totalorder %s64, %s66
      %p73 = scmp.eq.s32.totalorder %s21, 1
      %p74 = por %p72, %p73
      %p75 = scmp.ne.s32.totalorder %s66, %s67
      %p76 = scmp.eq.s32.totalorder %s21, 0
      %p77 = por %p75, %p76
      %p78 = scmp.ne.s32.totalorder %s66, %s67
      %p79 = scmp.eq.s32.totalorder %s22, 1
      %p80 = por %p78, %p79
      %p82 = scmp.ne.s32.totalorder %s67, %s81
      %p83 = scmp.eq.s32.totalorder %s22, 0
      %p84 = por %p82, %p83
      %s86 = sadd.s32 %s85, 1
      %p89 = scmp.eq.s32.totalorder %s16, 1
      %p90 = scmp.ne.s32.totalorder %s85, %s87
      %p91 = scmp.eq.s32.totalorder %s16, 0
      %p92 = por %p90, %p91
      %p93 = scmp.ne.s32.totalorder %s85, %s87
      %p94 = scmp.eq.s32.totalorder %s21, 1
      %p95 = por %p93, %p94
      %p96 = scmp.ne.s32.totalorder %s87, %s88
      %p97 = scmp.eq.s32.totalorder %s21, 0
      %p98 = por %p96, %p97
      %p99 = scmp.ne.s32.totalorder %s87, %s88
      %p100 = scmp.eq.s32.totalorder %s22, 1
      %p101 = por %p99, %p100
      %p103 = scmp.ne.s32.totalorder %s88, %s102
      %p104 = scmp.eq.s32.totalorder %s22, 0
      %p105 = por %p103, %p104
      %s107 = sadd.s32 %s106, 1
      %p110 = scmp.eq.s32.totalorder %s16, 1
      %p111 = scmp.ne.s32.totalorder %s106, %s108
      %p112 = scmp.eq.s32.totalorder %s16, 0
      %p113 = por %p111, %p112
      %p114 = scmp.ne.s32.totalorder %s106, %s108
      %p115 = scmp.eq.s32.totalorder %s21, 1
      %p116 = por %p114, %p115
      %p117 = scmp.ne.s32.totalorder %s108, %s109
      %p118 = scmp.eq.s32.totalorder %s21, 0
      %p119 = por %p117, %p118
      %p120 = scmp.ne.s32.totalorder %s108, %s109
      %p121 = scmp.eq.s32.totalorder %s22, 1
      %p122 = por %p120, %p121
      %p124 = scmp.ne.s32.totalorder %s109, %s123
      %p125 = scmp.eq.s32.totalorder %s22, 0
      %p126 = por %p124, %p125
      %s128 = sadd.s32 %s127, 1
      %p131 = scmp.eq.s32.totalorder %s16, 1
      %p132 = scmp.ne.s32.totalorder %s127, %s129
      %p133 = scmp.eq.s32.totalorder %s16, 0
      %p134 = por %p132, %p133
      %p135 = scmp.ne.s32.totalorder %s127, %s129
      %p136 = scmp.eq.s32.totalorder %s21, 1
      %p137 = por %p135, %p136
      %p138 = scmp.ne.s32.totalorder %s129, %s130
      %p139 = scmp.eq.s32.totalorder %s21, 0
      %p140 = por %p138, %p139
      %p141 = scmp.ne.s32.totalorder %s129, %s130
      %p142 = scmp.eq.s32.totalorder %s22, 1
      %p143 = por %p141, %p142
      %p145 = scmp.ne.s32.totalorder %s130, %s144
      %p146 = scmp.eq.s32.totalorder %s22, 0
      %p147 = por %p145, %p146
      %s149 = sadd.s32 %s148, 1
      %p152 = scmp.eq.s32.totalorder %s16, 1
      %p153 = scmp.ne.s32.totalorder %s148, %s150
      %p154 = scmp.eq.s32.totalorder %s16, 0
      %p155 = por %p153, %p154
      %p156 = scmp.ne.s32.totalorder %s148, %s150
      %p157 = scmp.eq.s32.totalorder %s21, 1
      %p158 = por %p156, %p157
      %p159 = scmp.ne.s32.totalorder %s150, %s151
      %p160 = scmp.eq.s32.totalorder %s21, 0
      %p161 = por %p159, %p160
      %p162 = scmp.ne.s32.totalorder %s150, %s151
      %p163 = scmp.eq.s32.totalorder %s22, 1
      %p164 = por %p162, %p163
      %p166 = scmp.ne.s32.totalorder %s151, %s165
      %p167 = scmp.eq.s32.totalorder %s22, 0
      %p168 = por %p166, %p167
      %s170 = sadd.s32 %s169, 1
      %p173 = scmp.eq.s32.totalorder %s16, 1
      %p174 = scmp.ne.s32.totalorder %s169, %s171
      %p175 = scmp.eq.s32.totalorder %s16, 0
      %p176 = por %p174, %p175
      %p177 = scmp.ne.s32.totalorder %s169, %s171
      %p178 = scmp.eq.s32.totalorder %s21, 1
      %p179 = por %p177, %p178
      %p180 = scmp.ne.s32.totalorder %s171, %s172
      %p181 = scmp.eq.s32.totalorder %s21, 0
      %p182 = por %p180, %p181
      %p183 = scmp.ne.s32.totalorder %s171, %s172
      %p184 = scmp.eq.s32.totalorder %s22, 1
      %p185 = por %p183, %p184
      %p187 = scmp.ne.s32.totalorder %s172, %s186
      %p188 = scmp.eq.s32.totalorder %s22, 0
      %p189 = por %p187, %p188
      %s190 = ssub.s32 %s23, %s35
      %p191 = scmp.eq.s32.totalorder %s190, 0
      %s193 = sadd.s32 %s192, 1
      %s194 = scalar_select %p191, %s192, %s193
      %p197 = pneg %p191
      %p198 = scmp.eq.s32.totalorder %s16, 1
      %p199 = por %p197, %p198
      %p200 = scmp.ne.s32.totalorder %s192, %s195
      %p201 = scmp.eq.s32.totalorder %s16, 0
      %p202 = por %p200, %p201
      %p203 = scmp.ne.s32.totalorder %s192, %s195
      %p204 = scmp.eq.s32.totalorder %s21, 1
      %p205 = por %p203, %p204
      %p206 = scmp.ne.s32.totalorder %s195, %s196
      %p207 = scmp.eq.s32.totalorder %s21, 0
      %p208 = por %p206, %p207
      %p209 = scmp.ne.s32.totalorder %s195, %s196
      %p210 = scmp.eq.s32.totalorder %s22, 1
      %p211 = por %p209, %p210
      %p213 = scmp.ne.s32.totalorder %s196, %s212
      %p214 = scmp.eq.s32.totalorder %s22, 0
      %p215 = por %p213, %p214
      %p216 = scmp.le.s32.totalorder 1, %s16
      %p217 = scmp.lt.s32.totalorder %s16, 3
      %p218 = pnand %p216, %p217
      %p219 = pneg %p218
      // Predicated region
      $region9: #{stnkd_forward.2} parent=5 // pred_check
        _
      $region10: #{stnkd_forward.2} parent=5 // pred_check_branch
        %221 = sbr.rel (%p218) target = $region12
      $region11: #{stnkd_forward.2} parent=5 // pred_region
        %s222 = ssub.s32 %s16, 1
        // Predicated region
        $region13: #{stnkd_forward.2} parent=11 // pred_check
          %p223 = pneg %p77
        $region14: #{stnkd_forward.2} parent=11 // pred_check_branch
          %225 = sbr.rel (%p223) target = $region16
        $region15: #{stnkd_forward.2} parent=11 // pred_region
          _
        $region16: #{stnkd_forward.2} parent=11 // pred_fallthru
          _
        // Predicated region
        $region17: #{stnkd_forward.2} parent=11 // pred_check
          %p226 = pneg %p98
        $region18: #{stnkd_forward.2} parent=11 // pred_check_branch
          %228 = sbr.rel (%p226) target = $region20
        $region19: #{stnkd_forward.2} parent=11 // pred_region
          _
        $region20: #{stnkd_forward.2} parent=11 // pred_fallthru
          _
        // Predicated region
        $region21: #{stnkd_forward.2} parent=11 // pred_check
          %p229 = pneg %p119
        $region22: #{stnkd_forward.2} parent=11 // pred_check_branch
          %231 = sbr.rel (%p229) target = $region24
        $region23: #{stnkd_forward.2} parent=11 // pred_region
          _
        $region24: #{stnkd_forward.2} parent=11 // pred_fallthru
          _
        // Predicated region
        $region25: #{stnkd_forward.2} parent=11 // pred_check
          %p232 = pneg %p140
        $region26: #{stnkd_forward.2} parent=11 // pred_check_branch
          %234 = sbr.rel (%p232) target = $region28
        $region27: #{stnkd_forward.2} parent=11 // pred_region
          _
        $region28: #{stnkd_forward.2} parent=11 // pred_fallthru
          _
        // Predicated region
        $region29: #{stnkd_forward.2} parent=11 // pred_check
          %p235 = pneg %p161
        $region30: #{stnkd_forward.2} parent=11 // pred_check_branch
          %237 = sbr.rel (%p235) target = $region32
        $region31: #{stnkd_forward.2} parent=11 // pred_region
          _
        $region32: #{stnkd_forward.2} parent=11 // pred_fallthru
          _
        // Predicated region
        $region33: #{stnkd_forward.2} parent=11 // pred_check
          %p238 = pneg %p182
        $region34: #{stnkd_forward.2} parent=11 // pred_check_branch
          %240 = sbr.rel (%p238) target = $region36
        $region35: #{stnkd_forward.2} parent=11 // pred_region
          _
        $region36: #{stnkd_forward.2} parent=11 // pred_fallthru
          _
      $region12: #{stnkd_forward.2} parent=5 // pred_fallthru
        _
      %p241 = scmp.lt.s32.totalorder %s16, 2
      // Predicated region
      $region37: #{stnkd_forward.2} parent=5 // pred_check
        %p242 = pneg %p241
      $region38: #{stnkd_forward.2} parent=5 // pred_check_branch
        %244 = sbr.rel (%p242) target = $region40
      $region39: #{stnkd_forward.2} parent=5 // pred_region
        // Predicated region
        $region41: #{stnkd_forward.2} parent=39 // pred_check
          %p245 = pneg %p50
        $region42: #{stnkd_forward.2} parent=39 // pred_check_branch
          %247 = sbr.rel (%p245) target = $region44
        $region43: #{stnkd_forward.2} parent=39 // pred_region
          %s248 = sand.u32 %s40, 1
          %s249 = scalar_lea.sflag [#allocation3], %s248
          %s250 = sand.u32 %s40, 1
          %s251 = smul.addr %s250, 32
          %s252 = scalar_lea.vmem [#allocation2], %s251
          %s253 = smul.u32 2, %s24
          %255 = vsyncadd %s249, 0
          %s256 = smul.addr %s23, 4
          %s257 = sadd.s32 %s253, %s256
          %s258 = smul.addr %s257, 8
          %s259 = scalar_lea.hbm %s0, %s258
          %s260 = sshll.u32 %s259, 4
          %s261 = int_to_ptr.hbm [resolvable:$true] %s260
          %s262 = sshll.u32 %s252, 4
          %s263 = int_to_ptr.vmem [resolvable:$true] %s262
          %268 = dma.hbm_to_vmem [thread:$0]  %s261, 512, %s263, %s249, 256, 256, 16
        $region44: #{stnkd_forward.2} parent=39 // pred_fallthru
          _
      $region40: #{stnkd_forward.2} parent=5 // pred_fallthru
        _
      %p269 = scmp.le.s32.totalorder 1, %s16
      %p270 = scmp.lt.s32.totalorder %s16, 3
      %p271 = pnand %p269, %p270
      %p272 = pneg %p271
      // Predicated region
      $region45: #{stnkd_forward.2} parent=5 // pred_check
        _
      $region46: #{stnkd_forward.2} parent=5 // pred_check_branch
        %274 = sbr.rel (%p271) target = $region48
      $region47: #{stnkd_forward.2} parent=5 // pred_region
        %s275 = ssub.s32 %s16, 1
        %s276 = sand.u32 %s43, 1
        %s277 = scalar_lea.sflag [#allocation3], %s276
        %s278 = sand.u32 %s43, 1
        %s279 = smul.addr %s278, 32
        %s280 = scalar_lea.vmem [#allocation2], %s279
        // Predicated region
        $region49: #{stnkd_forward.2} parent=47 // pred_check
          %p281 = pneg %p56
        $region50: #{stnkd_forward.2} parent=47 // pred_check_branch
          %283 = sbr.rel (%p281) target = $region52
        $region51: #{stnkd_forward.2} parent=47 // pred_region
          %285 = dma.done %s277, 512
        $region52: #{stnkd_forward.2} parent=47 // pred_fallthru
          _
        %s286 = sand.u32 %s43, 1
        %s287 = scalar_lea.sflag [#allocation3], %s286
        %s288 = sand.u32 %s43, 1
        %s289 = smul.addr %s288, 32
        %s290 = scalar_lea.vmem [#allocation2], %s289
        %p291 = pneg %p56
        %p292 = pneg %p53
        %p293 = pneg %p77
        %p294 = pneg %p74
        %p295 = pneg %p98
        %p296 = pneg %p95
        %p297 = pneg %p119
        %p298 = pneg %p116
        %p299 = pneg %p140
        %p300 = pneg %p137
        %p301 = pneg %p161
        %p302 = pneg %p158
        %p303 = pneg %p182
        %p304 = pneg %p179
        %p305 = pneg %p208
        %p306 = pneg %p205
        %p307 = scmp.lt.s32.totalorder %s25, 1
        %s308 = scalar_select %p307, %s25, 1
        %s309 = smul.addr %s308, 128
        %s310 = smul.addr %s309, 8
        %s311 = scalar_lea.vmem %s7, %s310
        %s312 = smul.u32 2, %s26
        %p313 = scmp.lt.s32.totalorder %s25, 1
        %s314 = scalar_select %p313, %s25, 1
        %s315 = smul.addr %s314, 128
        %s316 = smul.addr %s315, 8
        %s317 = scalar_lea.vmem %s7, %s316
        %p319 = scmp.eq.s32.totalorder %s26, 0
        // Predicated region
        $region53: #{stnkd_forward.2} parent=47 // pred_check
          %p320 = pneg %p319
        $region54: #{stnkd_forward.2} parent=47 // pred_check_branch
          %322 = sbr.rel (%p320) target = $region56
        $region55: #{stnkd_forward.2} parent=47 // pred_region
          %vm323 = vcmask 7168
          %324 = vst.msk [vmem:[%s317] sm:$0xff] %vm323, -inf
          %325 = vst.msk [vmem:[%s317 + $0x8] sm:$0xff] %vm323, -inf
          %326 = vst.msk [vmem:[%s317 + $0x10] sm:$0xff] %vm323, -inf
          %327 = vst.msk [vmem:[%s317 + $0x18] sm:$0xff] %vm323, -inf
          %328 = vst.msk [vmem:[%s317 + $0x20] sm:$0xff] %vm323, -inf
          %329 = vst.msk [vmem:[%s317 + $0x28] sm:$0xff] %vm323, -inf
          %330 = vst.msk [vmem:[%s317 + $0x30] sm:$0xff] %vm323, -inf
          %331 = vst.msk [vmem:[%s317 + $0x38] sm:$0xff] %vm323, -inf
          %332 = vst.msk [vmem:[%s317 + $0x40] sm:$0xff] %vm323, -inf
          %333 = vst.msk [vmem:[%s317 + $0x48] sm:$0xff] %vm323, -inf
          %334 = vst.msk [vmem:[%s317 + $0x50] sm:$0xff] %vm323, -inf
          %335 = vst.msk [vmem:[%s317 + $0x58] sm:$0xff] %vm323, -inf
          %336 = vst.msk [vmem:[%s317 + $0x60] sm:$0xff] %vm323, -inf
          %337 = vst.msk [vmem:[%s317 + $0x68] sm:$0xff] %vm323, -inf
          %338 = vst.msk [vmem:[%s317 + $0x70] sm:$0xff] %vm323, -inf
          %339 = vst.msk [vmem:[%s317 + $0x78] sm:$0xff] %vm323, -inf
          %340 = vst.msk [vmem:[%s317 + $0x80] sm:$0xff] %vm323, -inf
          %341 = vst.msk [vmem:[%s317 + $0x88] sm:$0xff] %vm323, -inf
          %342 = vst.msk [vmem:[%s317 + $0x90] sm:$0xff] %vm323, -inf
          %343 = vst.msk [vmem:[%s317 + $0x98] sm:$0xff] %vm323, -inf
          %344 = vst.msk [vmem:[%s317 + $0xa0] sm:$0xff] %vm323, -inf
          %345 = vst.msk [vmem:[%s317 + $0xa8] sm:$0xff] %vm323, -inf
          %346 = vst.msk [vmem:[%s317 + $0xb0] sm:$0xff] %vm323, -inf
          %347 = vst.msk [vmem:[%s317 + $0xb8] sm:$0xff] %vm323, -inf
          %348 = vst.msk [vmem:[%s317 + $0xc0] sm:$0xff] %vm323, -inf
          %349 = vst.msk [vmem:[%s317 + $0xc8] sm:$0xff] %vm323, -inf
          %350 = vst.msk [vmem:[%s317 + $0xd0] sm:$0xff] %vm323, -inf
          %351 = vst.msk [vmem:[%s317 + $0xd8] sm:$0xff] %vm323, -inf
          %352 = vst.msk [vmem:[%s317 + $0xe0] sm:$0xff] %vm323, -inf
          %353 = vst.msk [vmem:[%s317 + $0xe8] sm:$0xff] %vm323, -inf
          %354 = vst.msk [vmem:[%s317 + $0xf0] sm:$0xff] %vm323, -inf
          %355 = vst.msk [vmem:[%s317 + $0xf8] sm:$0xff] %vm323, -inf
          %356 = vst.msk [vmem:[%s317 + $0x100] sm:$0xff] %vm323, -inf
          %357 = vst.msk [vmem:[%s317 + $0x108] sm:$0xff] %vm323, -inf
          %358 = vst.msk [vmem:[%s317 + $0x110] sm:$0xff] %vm323, -inf
          %359 = vst.msk [vmem:[%s317 + $0x118] sm:$0xff] %vm323, -inf
          %360 = vst.msk [vmem:[%s317 + $0x120] sm:$0xff] %vm323, -inf
          %361 = vst.msk [vmem:[%s317 + $0x128] sm:$0xff] %vm323, -inf
          %362 = vst.msk [vmem:[%s317 + $0x130] sm:$0xff] %vm323, -inf
          %363 = vst.msk [vmem:[%s317 + $0x138] sm:$0xff] %vm323, -inf
          %364 = vst.msk [vmem:[%s317 + $0x140] sm:$0xff] %vm323, -inf
          %365 = vst.msk [vmem:[%s317 + $0x148] sm:$0xff] %vm323, -inf
          %366 = vst.msk [vmem:[%s317 + $0x150] sm:$0xff] %vm323, -inf
          %367 = vst.msk [vmem:[%s317 + $0x158] sm:$0xff] %vm323, -inf
          %368 = vst.msk [vmem:[%s317 + $0x160] sm:$0xff] %vm323, -inf
          %369 = vst.msk [vmem:[%s317 + $0x168] sm:$0xff] %vm323, -inf
          %370 = vst.msk [vmem:[%s317 + $0x170] sm:$0xff] %vm323, -inf
          %371 = vst.msk [vmem:[%s317 + $0x178] sm:$0xff] %vm323, -inf
          %372 = vst.msk [vmem:[%s317 + $0x180] sm:$0xff] %vm323, -inf
          %373 = vst.msk [vmem:[%s317 + $0x188] sm:$0xff] %vm323, -inf
          %374 = vst.msk [vmem:[%s317 + $0x190] sm:$0xff] %vm323, -inf
          %375 = vst.msk [vmem:[%s317 + $0x198] sm:$0xff] %vm323, -inf
          %376 = vst.msk [vmem:[%s317 + $0x1a0] sm:$0xff] %vm323, -inf
          %377 = vst.msk [vmem:[%s317 + $0x1a8] sm:$0xff] %vm323, -inf
          %378 = vst.msk [vmem:[%s317 + $0x1b0] sm:$0xff] %vm323, -inf
          %379 = vst.msk [vmem:[%s317 + $0x1b8] sm:$0xff] %vm323, -inf
          %380 = vst.msk [vmem:[%s317 + $0x1c0] sm:$0xff] %vm323, -inf
          %381 = vst.msk [vmem:[%s317 + $0x1c8] sm:$0xff] %vm323, -inf
          %382 = vst.msk [vmem:[%s317 + $0x1d0] sm:$0xff] %vm323, -inf
          %383 = vst.msk [vmem:[%s317 + $0x1d8] sm:$0xff] %vm323, -inf
          %384 = vst.msk [vmem:[%s317 + $0x1e0] sm:$0xff] %vm323, -inf
          %385 = vst.msk [vmem:[%s317 + $0x1e8] sm:$0xff] %vm323, -inf
          %386 = vst.msk [vmem:[%s317 + $0x1f0] sm:$0xff] %vm323, -inf
          %387 = vst.msk [vmem:[%s317 + $0x1f8] sm:$0xff] %vm323, -inf
          %388 = vst.msk [vmem:[%s317 + $0x200] sm:$0xff] %vm323, -inf
          %389 = vst.msk [vmem:[%s317 + $0x208] sm:$0xff] %vm323, -inf
          %390 = vst.msk [vmem:[%s317 + $0x210] sm:$0xff] %vm323, -inf
          %391 = vst.msk [vmem:[%s317 + $0x218] sm:$0xff] %vm323, -inf
          %392 = vst.msk [vmem:[%s317 + $0x220] sm:$0xff] %vm323, -inf
          %393 = vst.msk [vmem:[%s317 + $0x228] sm:$0xff] %vm323, -inf
          %394 = vst.msk [vmem:[%s317 + $0x230] sm:$0xff] %vm323, -inf
          %395 = vst.msk [vmem:[%s317 + $0x238] sm:$0xff] %vm323, -inf
          %396 = vst.msk [vmem:[%s317 + $0x240] sm:$0xff] %vm323, -inf
          %397 = vst.msk [vmem:[%s317 + $0x248] sm:$0xff] %vm323, -inf
          %398 = vst.msk [vmem:[%s317 + $0x250] sm:$0xff] %vm323, -inf
          %399 = vst.msk [vmem:[%s317 + $0x258] sm:$0xff] %vm323, -inf
          %400 = vst.msk [vmem:[%s317 + $0x260] sm:$0xff] %vm323, -inf
          %401 = vst.msk [vmem:[%s317 + $0x268] sm:$0xff] %vm323, -inf
          %402 = vst.msk [vmem:[%s317 + $0x270] sm:$0xff] %vm323, -inf
          %403 = vst.msk [vmem:[%s317 + $0x278] sm:$0xff] %vm323, -inf
          %404 = vst.msk [vmem:[%s317 + $0x280] sm:$0xff] %vm323, -inf
          %405 = vst.msk [vmem:[%s317 + $0x288] sm:$0xff] %vm323, -inf
          %406 = vst.msk [vmem:[%s317 + $0x290] sm:$0xff] %vm323, -inf
          %407 = vst.msk [vmem:[%s317 + $0x298] sm:$0xff] %vm323, -inf
          %408 = vst.msk [vmem:[%s317 + $0x2a0] sm:$0xff] %vm323, -inf
          %409 = vst.msk [vmem:[%s317 + $0x2a8] sm:$0xff] %vm323, -inf
          %410 = vst.msk [vmem:[%s317 + $0x2b0] sm:$0xff] %vm323, -inf
          %411 = vst.msk [vmem:[%s317 + $0x2b8] sm:$0xff] %vm323, -inf
          %412 = vst.msk [vmem:[%s317 + $0x2c0] sm:$0xff] %vm323, -inf
          %413 = vst.msk [vmem:[%s317 + $0x2c8] sm:$0xff] %vm323, -inf
          %414 = vst.msk [vmem:[%s317 + $0x2d0] sm:$0xff] %vm323, -inf
          %415 = vst.msk [vmem:[%s317 + $0x2d8] sm:$0xff] %vm323, -inf
          %416 = vst.msk [vmem:[%s317 + $0x2e0] sm:$0xff] %vm323, -inf
          %417 = vst.msk [vmem:[%s317 + $0x2e8] sm:$0xff] %vm323, -inf
          %418 = vst.msk [vmem:[%s317 + $0x2f0] sm:$0xff] %vm323, -inf
          %419 = vst.msk [vmem:[%s317 + $0x2f8] sm:$0xff] %vm323, -inf
          %420 = vst.msk [vmem:[%s317 + $0x300] sm:$0xff] %vm323, -inf
          %421 = vst.msk [vmem:[%s317 + $0x308] sm:$0xff] %vm323, -inf
          %422 = vst.msk [vmem:[%s317 + $0x310] sm:$0xff] %vm323, -inf
          %423 = vst.msk [vmem:[%s317 + $0x318] sm:$0xff] %vm323, -inf
          %424 = vst.msk [vmem:[%s317 + $0x320] sm:$0xff] %vm323, -inf
          %425 = vst.msk [vmem:[%s317 + $0x328] sm:$0xff] %vm323, -inf
          %426 = vst.msk [vmem:[%s317 + $0x330] sm:$0xff] %vm323, -inf
          %427 = vst.msk [vmem:[%s317 + $0x338] sm:$0xff] %vm323, -inf
          %428 = vst.msk [vmem:[%s317 + $0x340] sm:$0xff] %vm323, -inf
          %429 = vst.msk [vmem:[%s317 + $0x348] sm:$0xff] %vm323, -inf
          %430 = vst.msk [vmem:[%s317 + $0x350] sm:$0xff] %vm323, -inf
          %431 = vst.msk [vmem:[%s317 + $0x358] sm:$0xff] %vm323, -inf
          %432 = vst.msk [vmem:[%s317 + $0x360] sm:$0xff] %vm323, -inf
          %433 = vst.msk [vmem:[%s317 + $0x368] sm:$0xff] %vm323, -inf
          %434 = vst.msk [vmem:[%s317 + $0x370] sm:$0xff] %vm323, -inf
          %435 = vst.msk [vmem:[%s317 + $0x378] sm:$0xff] %vm323, -inf
          %436 = vst.msk [vmem:[%s317 + $0x380] sm:$0xff] %vm323, -inf
          %437 = vst.msk [vmem:[%s317 + $0x388] sm:$0xff] %vm323, -inf
          %438 = vst.msk [vmem:[%s317 + $0x390] sm:$0xff] %vm323, -inf
          %439 = vst.msk [vmem:[%s317 + $0x398] sm:$0xff] %vm323, -inf
          %440 = vst.msk [vmem:[%s317 + $0x3a0] sm:$0xff] %vm323, -inf
          %441 = vst.msk [vmem:[%s317 + $0x3a8] sm:$0xff] %vm323, -inf
          %442 = vst.msk [vmem:[%s317 + $0x3b0] sm:$0xff] %vm323, -inf
          %443 = vst.msk [vmem:[%s317 + $0x3b8] sm:$0xff] %vm323, -inf
          %444 = vst.msk [vmem:[%s317 + $0x3c0] sm:$0xff] %vm323, -inf
          %445 = vst.msk [vmem:[%s317 + $0x3c8] sm:$0xff] %vm323, -inf
          %446 = vst.msk [vmem:[%s317 + $0x3d0] sm:$0xff] %vm323, -inf
          %447 = vst.msk [vmem:[%s317 + $0x3d8] sm:$0xff] %vm323, -inf
          %448 = vst.msk [vmem:[%s317 + $0x3e0] sm:$0xff] %vm323, -inf
          %449 = vst.msk [vmem:[%s317 + $0x3e8] sm:$0xff] %vm323, -inf
          %450 = vst.msk [vmem:[%s317 + $0x3f0] sm:$0xff] %vm323, -inf
          %451 = vst.msk [vmem:[%s317 + $0x3f8] sm:$0xff] %vm323, -inf
        $region56: #{stnkd_forward.2} parent=47 // pred_fallthru
          _
        %v452 = vld [vmem:[%s280] sm:$0xff]
        %v453 = vld [vmem:[%s280 + $0x8] sm:$0xff]
        %v454 = vld [vmem:[%s280 + $0x10] sm:$0xff]
        %v455 = vld [vmem:[%s280 + $0x18] sm:$0xff]
        %v456 = vpack.c.bf16 %v454, %v452
        %v457 = vpack.c.bf16 %v455, %v453
        %v458 = vld [vmem:[%s1] sm:$0xf]
        %v459 = vld [vmem:[%s1 + $0x4] sm:$0xf]
        %v460 = vld [vmem:[%s1 + $0x8] sm:$0xf]
        %v461 = vld [vmem:[%s1 + $0xc] sm:$0xf]
        %v462 = vld [vmem:[%s1 + $0x10] sm:$0xf]
        %v463 = vld [vmem:[%s1 + $0x14] sm:$0xf]
        %v464 = vld [vmem:[%s1 + $0x18] sm:$0xf]
        %v465 = vld [vmem:[%s1 + $0x1c] sm:$0xf]
        %v466 = vld [vmem:[%s2] sm:$0xff]
        %v467 = vld [vmem:[%s2 + $0x8] sm:$0xff]
        %v468 = vld [vmem:[%s2 + $0x10] sm:$0xff]
        %v469 = vld [vmem:[%s2 + $0x18] sm:$0xff]
        %v470 = vld [vmem:[%s2 + $0x20] sm:$0xff]
        %v471 = vld [vmem:[%s2 + $0x28] sm:$0xff]
        %v472 = vld [vmem:[%s2 + $0x30] sm:$0xff]
        %v473 = vld [vmem:[%s2 + $0x38] sm:$0xff]
        %475 = vset.pattern.permute.xlu0 0
        %476 = vperm.xlu0 %475, %v466
        %v477 = vpop.permute.xlu0 %476
        %480 = vset.pattern.permute.xlu0 0
        %481 = vperm.xlu0 %480, %v467
        %v482 = vpop.permute.xlu0 %481
        %485 = vset.pattern.permute.xlu0 0
        %486 = vperm.xlu0 %485, %v468
        %v487 = vpop.permute.xlu0 %486
        %490 = vset.pattern.permute.xlu0 0
        %491 = vperm.xlu0 %490, %v469
        %v492 = vpop.permute.xlu0 %491
        %495 = vset.pattern.permute.xlu0 0
        %496 = vperm.xlu0 %495, %v470
        %v497 = vpop.permute.xlu0 %496
        %500 = vset.pattern.permute.xlu0 0
        %501 = vperm.xlu0 %500, %v471
        %v502 = vpop.permute.xlu0 %501
        %505 = vset.pattern.permute.xlu0 0
        %506 = vperm.xlu0 %505, %v472
        %v507 = vpop.permute.xlu0 %506
        %510 = vset.pattern.permute.xlu0 0
        %511 = vperm.xlu0 %510, %v473
        %v512 = vpop.permute.xlu0 %511
        %v522 = vunpack.c.l.b16 %v458
        %v523 = vunpack.c.l.b16 %v459
        %v524 = vunpack.c.l.b16 %v460
        %v525 = vunpack.c.l.b16 %v461
        %v526 = vunpack.c.l.b16 %v462
        %v527 = vunpack.c.l.b16 %v463
        %v528 = vunpack.c.l.b16 %v464
        %v529 = vunpack.c.l.b16 %v465
        %v530 = vpack.c.b16 %v523, %v522
        %v531 = vpack.c.b16 %v525, %v524
        %v532 = vpack.c.b16 %v527, %v526
        %v533 = vpack.c.b16 %v529, %v528
        %vm534 = vcmask 130048
        %v536 = vsel %vm534, %v530, 0
        %v539 = vsel %vm534, %v531, 0
        %v542 = vsel %vm534, %v532, 0
        %v545 = vsel %vm534, %v533, 0
        %547 = vmatpush.bf16.msra.mxu0 0
        %548 = vmatpush.bf16.msra.mxu0 0
        %549 = vmatpush.bf16.msra.mxu0 0
        %550 = vmatpush.bf16.msra.mxu0 0
        %551 = vmatpush.bf16.msra.mxu0 0
        %552 = vmatpush.bf16.msra.mxu0 0
        %553 = vmatpush.bf16.msra.mxu0 0
        %554 = vmatpush.bf16.msra.mxu0 %v456
        %555 = vmatmul.bf16.gmra.mxu0 %v536
        %v556 = vpop.f32.mrf.mxu0
        %v557 = vadd.f32 %v477, %v556
        %v558 = vpop.f32.mrf.mxu0
        %v559 = vadd.f32 %v482, %v558
        %560 = vmatmul.bf16.gmra.mxu0 %v539
        %v561 = vpop.f32.mrf.mxu0
        %v562 = vadd.f32 %v487, %v561
        %v563 = vpop.f32.mrf.mxu0
        %v564 = vadd.f32 %v492, %v563
        %565 = vmatmul.bf16.gmra.mxu0 %v542
        %v566 = vpop.f32.mrf.mxu0
        %v567 = vadd.f32 %v497, %v566
        %v568 = vpop.f32.mrf.mxu0
        %v569 = vadd.f32 %v502, %v568
        %570 = vmatmul.bf16.gmra.mxu0 %v545
        %v571 = vpop.f32.mrf.mxu0
        %v572 = vadd.f32 %v507, %v571
        %v573 = vpop.f32.mrf.mxu0
        %v574 = vadd.f32 %v512, %v573
        %575 = vdwg.mxu0
        %576 = vmatpush.bf16.msra.mxu0 0
        %577 = vmatpush.bf16.msra.mxu0 0
        %578 = vmatpush.bf16.msra.mxu0 0
        %579 = vmatpush.bf16.msra.mxu0 0
        %580 = vmatpush.bf16.msra.mxu0 0
        %581 = vmatpush.bf16.msra.mxu0 0
        %582 = vmatpush.bf16.msra.mxu0 0
        %583 = vmatpush.bf16.msra.mxu0 %v457
        %584 = vmatmul.bf16.gmra.mxu0 %v536
        %v585 = vpop.f32.mrf.mxu0
        %v586 = vadd.f32 %v477, %v585
        %v587 = vpop.f32.mrf.mxu0
        %v588 = vadd.f32 %v482, %v587
        %589 = vmatmul.bf16.gmra.mxu0 %v539
        %v590 = vpop.f32.mrf.mxu0
        %v591 = vadd.f32 %v487, %v590
        %v592 = vpop.f32.mrf.mxu0
        %v593 = vadd.f32 %v492, %v592
        %594 = vmatmul.bf16.gmra.mxu0 %v542
        %v595 = vpop.f32.mrf.mxu0
        %v596 = vadd.f32 %v497, %v595
        %v597 = vpop.f32.mrf.mxu0
        %v598 = vadd.f32 %v502, %v597
        %599 = vmatmul.bf16.gmra.mxu0 %v545
        %v600 = vpop.f32.mrf.mxu0
        %v601 = vadd.f32 %v507, %v600
        %v602 = vpop.f32.mrf.mxu0
        %v603 = vadd.f32 %v512, %v602
        %604 = vdwg.mxu0
        %v605 = vmax.f32 %v557, 0.0
        %v606 = vmax.f32 %v586, 0.0
        %v607 = vmax.f32 %v559, 0.0
        %v608 = vmax.f32 %v588, 0.0
        %v609 = vmax.f32 %v562, 0.0
        %v610 = vmax.f32 %v591, 0.0
        %v611 = vmax.f32 %v564, 0.0
        %v612 = vmax.f32 %v593, 0.0
        %v613 = vmax.f32 %v567, 0.0
        %v614 = vmax.f32 %v596, 0.0
        %v615 = vmax.f32 %v569, 0.0
        %v616 = vmax.f32 %v598, 0.0
        %v617 = vmax.f32 %v572, 0.0
        %v618 = vmax.f32 %v601, 0.0
        %v619 = vmax.f32 %v574, 0.0
        %v620 = vmax.f32 %v603, 0.0
        %v621 = vld [vmem:[%s3] sm:$0xf]
        %v622 = vld [vmem:[%s3 + $0x4] sm:$0xf]
        %v623 = vld [vmem:[%s3 + $0x8] sm:$0xf]
        %v624 = vld [vmem:[%s3 + $0xc] sm:$0xf]
        %v625 = vld [vmem:[%s3 + $0x10] sm:$0xf]
        %v626 = vld [vmem:[%s3 + $0x14] sm:$0xf]
        %v627 = vld [vmem:[%s3 + $0x18] sm:$0xf]
        %v628 = vld [vmem:[%s3 + $0x1c] sm:$0xf]
        %v629 = vld [vmem:[%s3 + $0x20] sm:$0xf]
        %v630 = vld [vmem:[%s3 + $0x24] sm:$0xf]
        %v631 = vld [vmem:[%s3 + $0x28] sm:$0xf]
        %v632 = vld [vmem:[%s3 + $0x2c] sm:$0xf]
        %v633 = vld [vmem:[%s3 + $0x30] sm:$0xf]
        %v634 = vld [vmem:[%s3 + $0x34] sm:$0xf]
        %v635 = vld [vmem:[%s3 + $0x38] sm:$0xf]
        %v636 = vld [vmem:[%s3 + $0x3c] sm:$0xf]
        %v637 = vpack.c.bf16 %v607, %v605
        %v638 = vpack.c.bf16 %v608, %v606
        %v639 = vpack.c.bf16 %v611, %v609
        %v640 = vpack.c.bf16 %v612, %v610
        %v641 = vpack.c.bf16 %v615, %v613
        %v642 = vpack.c.bf16 %v616, %v614
        %v643 = vpack.c.bf16 %v619, %v617
        %v644 = vpack.c.bf16 %v620, %v618
        %v645 = vld [vmem:[%s4] sm:$0xff]
        %v646 = vld [vmem:[%s4 + $0x8] sm:$0xff]
        %v647 = vld [vmem:[%s4 + $0x10] sm:$0xff]
        %v648 = vld [vmem:[%s4 + $0x18] sm:$0xff]
        %v649 = vld [vmem:[%s4 + $0x20] sm:$0xff]
        %v650 = vld [vmem:[%s4 + $0x28] sm:$0xff]
        %v651 = vld [vmem:[%s4 + $0x30] sm:$0xff]
        %v652 = vld [vmem:[%s4 + $0x38] sm:$0xff]
        %v653 = vld [vmem:[%s4 + $0x40] sm:$0xff]
        %v654 = vld [vmem:[%s4 + $0x48] sm:$0xff]
        %v655 = vld [vmem:[%s4 + $0x50] sm:$0xff]
        %v656 = vld [vmem:[%s4 + $0x58] sm:$0xff]
        %v657 = vld [vmem:[%s4 + $0x60] sm:$0xff]
        %v658 = vld [vmem:[%s4 + $0x68] sm:$0xff]
        %v659 = vld [vmem:[%s4 + $0x70] sm:$0xff]
        %v660 = vld [vmem:[%s4 + $0x78] sm:$0xff]
        %662 = vset.pattern.permute.xlu0 0
        %663 = vperm.xlu0 %662, %v645
        %v664 = vpop.permute.xlu0 %663
        %667 = vset.pattern.permute.xlu0 0
        %668 = vperm.xlu0 %667, %v646
        %v669 = vpop.permute.xlu0 %668
        %672 = vset.pattern.permute.xlu0 0
        %673 = vperm.xlu0 %672, %v647
        %v674 = vpop.permute.xlu0 %673
        %677 = vset.pattern.permute.xlu0 0
        %678 = vperm.xlu0 %677, %v648
        %v679 = vpop.permute.xlu0 %678
        %682 = vset.pattern.permute.xlu0 0
        %683 = vperm.xlu0 %682, %v649
        %v684 = vpop.permute.xlu0 %683
        %687 = vset.pattern.permute.xlu0 0
        %688 = vperm.xlu0 %687, %v650
        %v689 = vpop.permute.xlu0 %688
        %692 = vset.pattern.permute.xlu0 0
        %693 = vperm.xlu0 %692, %v651
        %v694 = vpop.permute.xlu0 %693
        %697 = vset.pattern.permute.xlu0 0
        %698 = vperm.xlu0 %697, %v652
        %v699 = vpop.permute.xlu0 %698
        %702 = vset.pattern.permute.xlu0 0
        %703 = vperm.xlu0 %702, %v653
        %v704 = vpop.permute.xlu0 %703
        %707 = vset.pattern.permute.xlu0 0
        %708 = vperm.xlu0 %707, %v654
        %v709 = vpop.permute.xlu0 %708
        %712 = vset.pattern.permute.xlu0 0
        %713 = vperm.xlu0 %712, %v655
        %v714 = vpop.permute.xlu0 %713
        %717 = vset.pattern.permute.xlu0 0
        %718 = vperm.xlu0 %717, %v656
        %v719 = vpop.permute.xlu0 %718
        %722 = vset.pattern.permute.xlu0 0
        %723 = vperm.xlu0 %722, %v657
        %v724 = vpop.permute.xlu0 %723
        %727 = vset.pattern.permute.xlu0 0
        %728 = vperm.xlu0 %727, %v658
        %v729 = vpop.permute.xlu0 %728
        %732 = vset.pattern.permute.xlu0 0
        %733 = vperm.xlu0 %732, %v659
        %v734 = vpop.permute.xlu0 %733
        %737 = vset.pattern.permute.xlu0 0
        %738 = vperm.xlu0 %737, %v660
        %v739 = vpop.permute.xlu0 %738
        %v757 = vunpack.c.l.b16 %v621
        %v758 = vunpack.c.l.b16 %v622
        %v759 = vunpack.c.l.b16 %v623
        %v760 = vunpack.c.l.b16 %v624
        %v761 = vunpack.c.l.b16 %v625
        %v762 = vunpack.c.l.b16 %v626
        %v763 = vunpack.c.l.b16 %v627
        %v764 = vunpack.c.l.b16 %v628
        %v765 = vunpack.c.l.b16 %v629
        %v766 = vunpack.c.l.b16 %v630
        %v767 = vunpack.c.l.b16 %v631
        %v768 = vunpack.c.l.b16 %v632
        %v769 = vunpack.c.l.b16 %v633
        %v770 = vunpack.c.l.b16 %v634
        %v771 = vunpack.c.l.b16 %v635
        %v772 = vunpack.c.l.b16 %v636
        %v773 = vpack.c.b16 %v758, %v757
        %v774 = vpack.c.b16 %v760, %v759
        %v775 = vpack.c.b16 %v762, %v761
        %v776 = vpack.c.b16 %v764, %v763
        %v777 = vpack.c.b16 %v766, %v765
        %v778 = vpack.c.b16 %v768, %v767
        %v779 = vpack.c.b16 %v770, %v769
        %v780 = vpack.c.b16 %v772, %v771
        %vm781 = vcmask 523264
        %v783 = vsel %vm781, %v773, 0
        %v786 = vsel %vm781, %v774, 0
        %v789 = vsel %vm781, %v775, 0
        %v792 = vsel %vm781, %v776, 0
        %v795 = vsel %vm781, %v777, 0
        %v798 = vsel %vm781, %v778, 0
        %v801 = vsel %vm781, %v779, 0
        %v804 = vsel %vm781, %v780, 0
        %806 = vmatpush.bf16.msra.mxu0 0
        %807 = vmatpush.bf16.msra.mxu0 0
        %808 = vmatpush.bf16.msra.mxu0 0
        %809 = vmatpush.bf16.msra.mxu0 0
        %810 = vmatpush.bf16.msra.mxu0 %v643
        %811 = vmatpush.bf16.msra.mxu0 %v641
        %812 = vmatpush.bf16.msra.mxu0 %v639
        %813 = vmatpush.bf16.msra.mxu0 %v637
        %814 = vmatmul.bf16.gmra.mxu0 %v783
        %v815 = vpop.f32.mrf.mxu0
        %v816 = vadd.f32 %v664, %v815
        %v817 = vpop.f32.mrf.mxu0
        %v818 = vadd.f32 %v669, %v817
        %819 = vmatmul.bf16.gmra.mxu0 %v786
        %v820 = vpop.f32.mrf.mxu0
        %v821 = vadd.f32 %v674, %v820
        %v822 = vpop.f32.mrf.mxu0
        %v823 = vadd.f32 %v679, %v822
        %824 = vmatmul.bf16.gmra.mxu0 %v789
        %v825 = vpop.f32.mrf.mxu0
        %v826 = vadd.f32 %v684, %v825
        %v827 = vpop.f32.mrf.mxu0
        %v828 = vadd.f32 %v689, %v827
        %829 = vmatmul.bf16.gmra.mxu0 %v792
        %v830 = vpop.f32.mrf.mxu0
        %v831 = vadd.f32 %v694, %v830
        %v832 = vpop.f32.mrf.mxu0
        %v833 = vadd.f32 %v699, %v832
        %834 = vmatmul.bf16.gmra.mxu0 %v795
        %v835 = vpop.f32.mrf.mxu0
        %v836 = vadd.f32 %v704, %v835
        %v837 = vpop.f32.mrf.mxu0
        %v838 = vadd.f32 %v709, %v837
        %839 = vmatmul.bf16.gmra.mxu0 %v798
        %v840 = vpop.f32.mrf.mxu0
        %v841 = vadd.f32 %v714, %v840
        %v842 = vpop.f32.mrf.mxu0
        %v843 = vadd.f32 %v719, %v842
        %844 = vmatmul.bf16.gmra.mxu0 %v801
        %v845 = vpop.f32.mrf.mxu0
        %v846 = vadd.f32 %v724, %v845
        %v847 = vpop.f32.mrf.mxu0
        %v848 = vadd.f32 %v729, %v847
        %849 = vmatmul.bf16.gmra.mxu0 %v804
        %v850 = vpop.f32.mrf.mxu0
        %v851 = vadd.f32 %v734, %v850
        %v852 = vpop.f32.mrf.mxu0
        %v853 = vadd.f32 %v739, %v852
        %854 = vdwg.mxu0
        %855 = vmatpush.bf16.msra.mxu0 0
        %856 = vmatpush.bf16.msra.mxu0 0
        %857 = vmatpush.bf16.msra.mxu0 0
        %858 = vmatpush.bf16.msra.mxu0 0
        %859 = vmatpush.bf16.msra.mxu0 %v644
        %860 = vmatpush.bf16.msra.mxu0 %v642
        %861 = vmatpush.bf16.msra.mxu0 %v640
        %862 = vmatpush.bf16.msra.mxu0 %v638
        %863 = vmatmul.bf16.gmra.mxu0 %v783
        %v864 = vpop.f32.mrf.mxu0
        %v865 = vadd.f32 %v664, %v864
        %v866 = vpop.f32.mrf.mxu0
        %v867 = vadd.f32 %v669, %v866
        %868 = vmatmul.bf16.gmra.mxu0 %v786
        %v869 = vpop.f32.mrf.mxu0
        %v870 = vadd.f32 %v674, %v869
        %v871 = vpop.f32.mrf.mxu0
        %v872 = vadd.f32 %v679, %v871
        %873 = vmatmul.bf16.gmra.mxu0 %v789
        %v874 = vpop.f32.mrf.mxu0
        %v875 = vadd.f32 %v684, %v874
        %v876 = vpop.f32.mrf.mxu0
        %v877 = vadd.f32 %v689, %v876
        %878 = vmatmul.bf16.gmra.mxu0 %v792
        %v879 = vpop.f32.mrf.mxu0
        %v880 = vadd.f32 %v694, %v879
        %v881 = vpop.f32.mrf.mxu0
        %v882 = vadd.f32 %v699, %v881
        %883 = vmatmul.bf16.gmra.mxu0 %v795
        %v884 = vpop.f32.mrf.mxu0
        %v885 = vadd.f32 %v704, %v884
        %v886 = vpop.f32.mrf.mxu0
        %v887 = vadd.f32 %v709, %v886
        %888 = vmatmul.bf16.gmra.mxu0 %v798
        %v889 = vpop.f32.mrf.mxu0
        %v890 = vadd.f32 %v714, %v889
        %v891 = vpop.f32.mrf.mxu0
        %v892 = vadd.f32 %v719, %v891
        %893 = vmatmul.bf16.gmra.mxu0 %v801
        %v894 = vpop.f32.mrf.mxu0
        %v895 = vadd.f32 %v724, %v894
        %v896 = vpop.f32.mrf.mxu0
        %v897 = vadd.f32 %v729, %v896
        %898 = vmatmul.bf16.gmra.mxu0 %v804
        %v899 = vpop.f32.mrf.mxu0
        %v900 = vadd.f32 %v734, %v899
        %v901 = vpop.f32.mrf.mxu0
        %v902 = vadd.f32 %v739, %v901
        %903 = vdwg.mxu0
        %v904 = vmax.f32 %v816, 0.0
        %v905 = vmax.f32 %v865, 0.0
        %v906 = vmax.f32 %v818, 0.0
        %v907 = vmax.f32 %v867, 0.0
        %v908 = vmax.f32 %v821, 0.0
        %v909 = vmax.f32 %v870, 0.0
        %v910 = vmax.f32 %v823, 0.0
        %v911 = vmax.f32 %v872, 0.0
        %v912 = vmax.f32 %v826, 0.0
        %v913 = vmax.f32 %v875, 0.0
        %v914 = vmax.f32 %v828, 0.0
        %v915 = vmax.f32 %v877, 0.0
        %v916 = vmax.f32 %v831, 0.0
        %v917 = vmax.f32 %v880, 0.0
        %v918 = vmax.f32 %v833, 0.0
        %v919 = vmax.f32 %v882, 0.0
        %v920 = vmax.f32 %v836, 0.0
        %v921 = vmax.f32 %v885, 0.0
        %v922 = vmax.f32 %v838, 0.0
        %v923 = vmax.f32 %v887, 0.0
        %v924 = vmax.f32 %v841, 0.0
        %v925 = vmax.f32 %v890, 0.0
        %v926 = vmax.f32 %v843, 0.0
        %v927 = vmax.f32 %v892, 0.0
        %v928 = vmax.f32 %v846, 0.0
        %v929 = vmax.f32 %v895, 0.0
        %v930 = vmax.f32 %v848, 0.0
        %v931 = vmax.f32 %v897, 0.0
        %v932 = vmax.f32 %v851, 0.0
        %v933 = vmax.f32 %v900, 0.0
        %v934 = vmax.f32 %v853, 0.0
        %v935 = vmax.f32 %v902, 0.0
        %v936 = vld [vmem:[%s5] sm:$0xf]
        %v937 = vld [vmem:[%s5 + $0x4] sm:$0xf]
        %v938 = vld [vmem:[%s5 + $0x8] sm:$0xf]
        %v939 = vld [vmem:[%s5 + $0xc] sm:$0xf]
        %v940 = vld [vmem:[%s5 + $0x10] sm:$0xf]
        %v941 = vld [vmem:[%s5 + $0x14] sm:$0xf]
        %v942 = vld [vmem:[%s5 + $0x18] sm:$0xf]
        %v943 = vld [vmem:[%s5 + $0x1c] sm:$0xf]
        %v944 = vld [vmem:[%s5 + $0x20] sm:$0xf]
        %v945 = vld [vmem:[%s5 + $0x24] sm:$0xf]
        %v946 = vld [vmem:[%s5 + $0x28] sm:$0xf]
        %v947 = vld [vmem:[%s5 + $0x2c] sm:$0xf]
        %v948 = vld [vmem:[%s5 + $0x30] sm:$0xf]
        %v949 = vld [vmem:[%s5 + $0x34] sm:$0xf]
        %v950 = vld [vmem:[%s5 + $0x38] sm:$0xf]
        %v951 = vld [vmem:[%s5 + $0x3c] sm:$0xf]
        %v952 = vld [vmem:[%s5 + $0x40] sm:$0xf]
        %v953 = vld [vmem:[%s5 + $0x44] sm:$0xf]
        %v954 = vld [vmem:[%s5 + $0x48] sm:$0xf]
        %v955 = vld [vmem:[%s5 + $0x4c] sm:$0xf]
        %v956 = vld [vmem:[%s5 + $0x50] sm:$0xf]
        %v957 = vld [vmem:[%s5 + $0x54] sm:$0xf]
        %v958 = vld [vmem:[%s5 + $0x58] sm:$0xf]
        %v959 = vld [vmem:[%s5 + $0x5c] sm:$0xf]
        %v960 = vld [vmem:[%s5 + $0x60] sm:$0xf]
        %v961 = vld [vmem:[%s5 + $0x64] sm:$0xf]
        %v962 = vld [vmem:[%s5 + $0x68] sm:$0xf]
        %v963 = vld [vmem:[%s5 + $0x6c] sm:$0xf]
        %v964 = vld [vmem:[%s5 + $0x70] sm:$0xf]
        %v965 = vld [vmem:[%s5 + $0x74] sm:$0xf]
        %v966 = vld [vmem:[%s5 + $0x78] sm:$0xf]
        %v967 = vld [vmem:[%s5 + $0x7c] sm:$0xf]
        %v968 = vld [vmem:[%s5 + $0x80] sm:$0xf]
        %v969 = vld [vmem:[%s5 + $0x84] sm:$0xf]
        %v970 = vld [vmem:[%s5 + $0x88] sm:$0xf]
        %v971 = vld [vmem:[%s5 + $0x8c] sm:$0xf]
        %v972 = vld [vmem:[%s5 + $0x90] sm:$0xf]
        %v973 = vld [vmem:[%s5 + $0x94] sm:$0xf]
        %v974 = vld [vmem:[%s5 + $0x98] sm:$0xf]
        %v975 = vld [vmem:[%s5 + $0x9c] sm:$0xf]
        %v976 = vld [vmem:[%s5 + $0xa0] sm:$0xf]
        %v977 = vld [vmem:[%s5 + $0xa4] sm:$0xf]
        %v978 = vld [vmem:[%s5 + $0xa8] sm:$0xf]
        %v979 = vld [vmem:[%s5 + $0xac] sm:$0xf]
        %v980 = vld [vmem:[%s5 + $0xb0] sm:$0xf]
        %v981 = vld [vmem:[%s5 + $0xb4] sm:$0xf]
        %v982 = vld [vmem:[%s5 + $0xb8] sm:$0xf]
        %v983 = vld [vmem:[%s5 + $0xbc] sm:$0xf]
        %v984 = vld [vmem:[%s5 + $0xc0] sm:$0xf]
        %v985 = vld [vmem:[%s5 + $0xc4] sm:$0xf]
        %v986 = vld [vmem:[%s5 + $0xc8] sm:$0xf]
        %v987 = vld [vmem:[%s5 + $0xcc] sm:$0xf]
        %v988 = vld [vmem:[%s5 + $0xd0] sm:$0xf]
        %v989 = vld [vmem:[%s5 + $0xd4] sm:$0xf]
        %v990 = vld [vmem:[%s5 + $0xd8] sm:$0xf]
        %v991 = vld [vmem:[%s5 + $0xdc] sm:$0xf]
        %v992 = vld [vmem:[%s5 + $0xe0] sm:$0xf]
        %v993 = vld [vmem:[%s5 + $0xe4] sm:$0xf]
        %v994 = vld [vmem:[%s5 + $0xe8] sm:$0xf]
        %v995 = vld [vmem:[%s5 + $0xec] sm:$0xf]
        %v996 = vld [vmem:[%s5 + $0xf0] sm:$0xf]
        %v997 = vld [vmem:[%s5 + $0xf4] sm:$0xf]
        %v998 = vld [vmem:[%s5 + $0xf8] sm:$0xf]
        %v999 = vld [vmem:[%s5 + $0xfc] sm:$0xf]
        %v1000 = vld [vmem:[%s5 + $0x100] sm:$0xf]
        %v1001 = vld [vmem:[%s5 + $0x104] sm:$0xf]
        %v1002 = vld [vmem:[%s5 + $0x108] sm:$0xf]
        %v1003 = vld [vmem:[%s5 + $0x10c] sm:$0xf]
        %v1004 = vld [vmem:[%s5 + $0x110] sm:$0xf]
        %v1005 = vld [vmem:[%s5 + $0x114] sm:$0xf]
        %v1006 = vld [vmem:[%s5 + $0x118] sm:$0xf]
        %v1007 = vld [vmem:[%s5 + $0x11c] sm:$0xf]
        %v1008 = vld [vmem:[%s5 + $0x120] sm:$0xf]
        %v1009 = vld [vmem:[%s5 + $0x124] sm:$0xf]
        %v1010 = vld [vmem:[%s5 + $0x128] sm:$0xf]
        %v1011 = vld [vmem:[%s5 + $0x12c] sm:$0xf]
        %v1012 = vld [vmem:[%s5 + $0x130] sm:$0xf]
        %v1013 = vld [vmem:[%s5 + $0x134] sm:$0xf]
        %v1014 = vld [vmem:[%s5 + $0x138] sm:$0xf]
        %v1015 = vld [vmem:[%s5 + $0x13c] sm:$0xf]
        %v1016 = vld [vmem:[%s5 + $0x140] sm:$0xf]
        %v1017 = vld [vmem:[%s5 + $0x144] sm:$0xf]
        %v1018 = vld [vmem:[%s5 + $0x148] sm:$0xf]
        %v1019 = vld [vmem:[%s5 + $0x14c] sm:$0xf]
        %v1020 = vld [vmem:[%s5 + $0x150] sm:$0xf]
        %v1021 = vld [vmem:[%s5 + $0x154] sm:$0xf]
        %v1022 = vld [vmem:[%s5 + $0x158] sm:$0xf]
        %v1023 = vld [vmem:[%s5 + $0x15c] sm:$0xf]
        %v1024 = vld [vmem:[%s5 + $0x160] sm:$0xf]
        %v1025 = vld [vmem:[%s5 + $0x164] sm:$0xf]
        %v1026 = vld [vmem:[%s5 + $0x168] sm:$0xf]
        %v1027 = vld [vmem:[%s5 + $0x16c] sm:$0xf]
        %v1028 = vld [vmem:[%s5 + $0x170] sm:$0xf]
        %v1029 = vld [vmem:[%s5 + $0x174] sm:$0xf]
        %v1030 = vld [vmem:[%s5 + $0x178] sm:$0xf]
        %v1031 = vld [vmem:[%s5 + $0x17c] sm:$0xf]
        %v1032 = vld [vmem:[%s5 + $0x180] sm:$0xf]
        %v1033 = vld [vmem:[%s5 + $0x184] sm:$0xf]
        %v1034 = vld [vmem:[%s5 + $0x188] sm:$0xf]
        %v1035 = vld [vmem:[%s5 + $0x18c] sm:$0xf]
        %v1036 = vld [vmem:[%s5 + $0x190] sm:$0xf]
        %v1037 = vld [vmem:[%s5 + $0x194] sm:$0xf]
        %v1038 = vld [vmem:[%s5 + $0x198] sm:$0xf]
        %v1039 = vld [vmem:[%s5 + $0x19c] sm:$0xf]
        %v1040 = vld [vmem:[%s5 + $0x1a0] sm:$0xf]
        %v1041 = vld [vmem:[%s5 + $0x1a4] sm:$0xf]
        %v1042 = vld [vmem:[%s5 + $0x1a8] sm:$0xf]
        %v1043 = vld [vmem:[%s5 + $0x1ac] sm:$0xf]
        %v1044 = vld [vmem:[%s5 + $0x1b0] sm:$0xf]
        %v1045 = vld [vmem:[%s5 + $0x1b4] sm:$0xf]
        %v1046 = vld [vmem:[%s5 + $0x1b8] sm:$0xf]
        %v1047 = vld [vmem:[%s5 + $0x1bc] sm:$0xf]
        %v1048 = vld [vmem:[%s5 + $0x1c0] sm:$0xf]
        %v1049 = vld [vmem:[%s5 + $0x1c4] sm:$0xf]
        %v1050 = vld [vmem:[%s5 + $0x1c8] sm:$0xf]
        %v1051 = vld [vmem:[%s5 + $0x1cc] sm:$0xf]
        %v1052 = vld [vmem:[%s5 + $0x1d0] sm:$0xf]
        %v1053 = vld [vmem:[%s5 + $0x1d4] sm:$0xf]
        %v1054 = vld [vmem:[%s5 + $0x1d8] sm:$0xf]
        %v1055 = vld [vmem:[%s5 + $0x1dc] sm:$0xf]
        %v1056 = vld [vmem:[%s5 + $0x1e0] sm:$0xf]
        %v1057 = vld [vmem:[%s5 + $0x1e4] sm:$0xf]
        %v1058 = vld [vmem:[%s5 + $0x1e8] sm:$0xf]
        %v1059 = vld [vmem:[%s5 + $0x1ec] sm:$0xf]
        %v1060 = vld [vmem:[%s5 + $0x1f0] sm:$0xf]
        %v1061 = vld [vmem:[%s5 + $0x1f4] sm:$0xf]
        %v1062 = vld [vmem:[%s5 + $0x1f8] sm:$0xf]
        %v1063 = vld [vmem:[%s5 + $0x1fc] sm:$0xf]
        %v1064 = vpack.c.bf16 %v906, %v904
        %v1065 = vpack.c.bf16 %v907, %v905
        %v1066 = vpack.c.bf16 %v910, %v908
        %v1067 = vpack.c.bf16 %v911, %v909
        %v1068 = vpack.c.bf16 %v914, %v912
        %v1069 = vpack.c.bf16 %v915, %v913
        %v1070 = vpack.c.bf16 %v918, %v916
        %v1071 = vpack.c.bf16 %v919, %v917
        %v1072 = vpack.c.bf16 %v922, %v920
        %v1073 = vpack.c.bf16 %v923, %v921
        %v1074 = vpack.c.bf16 %v926, %v924
        %v1075 = vpack.c.bf16 %v927, %v925
        %v1076 = vpack.c.bf16 %v930, %v928
        %v1077 = vpack.c.bf16 %v931, %v929
        %v1078 = vpack.c.bf16 %v934, %v932
        %v1079 = vpack.c.bf16 %v935, %v933
        %v1080 = vld [vmem:[%s6] sm:$0xff]
        %v1081 = vld [vmem:[%s6 + $0x8] sm:$0xff]
        %v1082 = vld [vmem:[%s6 + $0x10] sm:$0xff]
        %v1083 = vld [vmem:[%s6 + $0x18] sm:$0xff]
        %v1084 = vld [vmem:[%s6 + $0x20] sm:$0xff]
        %v1085 = vld [vmem:[%s6 + $0x28] sm:$0xff]
        %v1086 = vld [vmem:[%s6 + $0x30] sm:$0xff]
        %v1087 = vld [vmem:[%s6 + $0x38] sm:$0xff]
        %v1088 = vld [vmem:[%s6 + $0x40] sm:$0xff]
        %v1089 = vld [vmem:[%s6 + $0x48] sm:$0xff]
        %v1090 = vld [vmem:[%s6 + $0x50] sm:$0xff]
        %v1091 = vld [vmem:[%s6 + $0x58] sm:$0xff]
        %v1092 = vld [vmem:[%s6 + $0x60] sm:$0xff]
        %v1093 = vld [vmem:[%s6 + $0x68] sm:$0xff]
        %v1094 = vld [vmem:[%s6 + $0x70] sm:$0xff]
        %v1095 = vld [vmem:[%s6 + $0x78] sm:$0xff]
        %v1096 = vld [vmem:[%s6 + $0x80] sm:$0xff]
        %v1097 = vld [vmem:[%s6 + $0x88] sm:$0xff]
        %v1098 = vld [vmem:[%s6 + $0x90] sm:$0xff]
        %v1099 = vld [vmem:[%s6 + $0x98] sm:$0xff]
        %v1100 = vld [vmem:[%s6 + $0xa0] sm:$0xff]
        %v1101 = vld [vmem:[%s6 + $0xa8] sm:$0xff]
        %v1102 = vld [vmem:[%s6 + $0xb0] sm:$0xff]
        %v1103 = vld [vmem:[%s6 + $0xb8] sm:$0xff]
        %v1104 = vld [vmem:[%s6 + $0xc0] sm:$0xff]
        %v1105 = vld [vmem:[%s6 + $0xc8] sm:$0xff]
        %v1106 = vld [vmem:[%s6 + $0xd0] sm:$0xff]
        %v1107 = vld [vmem:[%s6 + $0xd8] sm:$0xff]
        %v1108 = vld [vmem:[%s6 + $0xe0] sm:$0xff]
        %v1109 = vld [vmem:[%s6 + $0xe8] sm:$0xff]
        %v1110 = vld [vmem:[%s6 + $0xf0] sm:$0xff]
        %v1111 = vld [vmem:[%s6 + $0xf8] sm:$0xff]
        %v1112 = vld [vmem:[%s6 + $0x100] sm:$0xff]
        %v1113 = vld [vmem:[%s6 + $0x108] sm:$0xff]
        %v1114 = vld [vmem:[%s6 + $0x110] sm:$0xff]
        %v1115 = vld [vmem:[%s6 + $0x118] sm:$0xff]
        %v1116 = vld [vmem:[%s6 + $0x120] sm:$0xff]
        %v1117 = vld [vmem:[%s6 + $0x128] sm:$0xff]
        %v1118 = vld [vmem:[%s6 + $0x130] sm:$0xff]
        %v1119 = vld [vmem:[%s6 + $0x138] sm:$0xff]
        %v1120 = vld [vmem:[%s6 + $0x140] sm:$0xff]
        %v1121 = vld [vmem:[%s6 + $0x148] sm:$0xff]
        %v1122 = vld [vmem:[%s6 + $0x150] sm:$0xff]
        %v1123 = vld [vmem:[%s6 + $0x158] sm:$0xff]
        %v1124 = vld [vmem:[%s6 + $0x160] sm:$0xff]
        %v1125 = vld [vmem:[%s6 + $0x168] sm:$0xff]
        %v1126 = vld [vmem:[%s6 + $0x170] sm:$0xff]
        %v1127 = vld [vmem:[%s6 + $0x178] sm:$0xff]
        %v1128 = vld [vmem:[%s6 + $0x180] sm:$0xff]
        %v1129 = vld [vmem:[%s6 + $0x188] sm:$0xff]
        %v1130 = vld [vmem:[%s6 + $0x190] sm:$0xff]
        %v1131 = vld [vmem:[%s6 + $0x198] sm:$0xff]
        %v1132 = vld [vmem:[%s6 + $0x1a0] sm:$0xff]
        %v1133 = vld [vmem:[%s6 + $0x1a8] sm:$0xff]
        %v1134 = vld [vmem:[%s6 + $0x1b0] sm:$0xff]
        %v1135 = vld [vmem:[%s6 + $0x1b8] sm:$0xff]
        %v1136 = vld [vmem:[%s6 + $0x1c0] sm:$0xff]
        %v1137 = vld [vmem:[%s6 + $0x1c8] sm:$0xff]
        %v1138 = vld [vmem:[%s6 + $0x1d0] sm:$0xff]
        %v1139 = vld [vmem:[%s6 + $0x1d8] sm:$0xff]
        %v1140 = vld [vmem:[%s6 + $0x1e0] sm:$0xff]
        %v1141 = vld [vmem:[%s6 + $0x1e8] sm:$0xff]
        %v1142 = vld [vmem:[%s6 + $0x1f0] sm:$0xff]
        %v1143 = vld [vmem:[%s6 + $0x1f8] sm:$0xff]
        %v1144 = vld [vmem:[%s6 + $0x200] sm:$0xff]
        %v1145 = vld [vmem:[%s6 + $0x208] sm:$0xff]
        %v1146 = vld [vmem:[%s6 + $0x210] sm:$0xff]
        %v1147 = vld [vmem:[%s6 + $0x218] sm:$0xff]
        %v1148 = vld [vmem:[%s6 + $0x220] sm:$0xff]
        %v1149 = vld [vmem:[%s6 + $0x228] sm:$0xff]
        %v1150 = vld [vmem:[%s6 + $0x230] sm:$0xff]
        %v1151 = vld [vmem:[%s6 + $0x238] sm:$0xff]
        %v1152 = vld [vmem:[%s6 + $0x240] sm:$0xff]
        %v1153 = vld [vmem:[%s6 + $0x248] sm:$0xff]
        %v1154 = vld [vmem:[%s6 + $0x250] sm:$0xff]
        %v1155 = vld [vmem:[%s6 + $0x258] sm:$0xff]
        %v1156 = vld [vmem:[%s6 + $0x260] sm:$0xff]
        %v1157 = vld [vmem:[%s6 + $0x268] sm:$0xff]
        %v1158 = vld [vmem:[%s6 + $0x270] sm:$0xff]
        %v1159 = vld [vmem:[%s6 + $0x278] sm:$0xff]
        %v1160 = vld [vmem:[%s6 + $0x280] sm:$0xff]
        %v1161 = vld [vmem:[%s6 + $0x288] sm:$0xff]
        %v1162 = vld [vmem:[%s6 + $0x290] sm:$0xff]
        %v1163 = vld [vmem:[%s6 + $0x298] sm:$0xff]
        %v1164 = vld [vmem:[%s6 + $0x2a0] sm:$0xff]
        %v1165 = vld [vmem:[%s6 + $0x2a8] sm:$0xff]
        %v1166 = vld [vmem:[%s6 + $0x2b0] sm:$0xff]
        %v1167 = vld [vmem:[%s6 + $0x2b8] sm:$0xff]
        %v1168 = vld [vmem:[%s6 + $0x2c0] sm:$0xff]
        %v1169 = vld [vmem:[%s6 + $0x2c8] sm:$0xff]
        %v1170 = vld [vmem:[%s6 + $0x2d0] sm:$0xff]
        %v1171 = vld [vmem:[%s6 + $0x2d8] sm:$0xff]
        %v1172 = vld [vmem:[%s6 + $0x2e0] sm:$0xff]
        %v1173 = vld [vmem:[%s6 + $0x2e8] sm:$0xff]
        %v1174 = vld [vmem:[%s6 + $0x2f0] sm:$0xff]
        %v1175 = vld [vmem:[%s6 + $0x2f8] sm:$0xff]
        %v1176 = vld [vmem:[%s6 + $0x300] sm:$0xff]
        %v1177 = vld [vmem:[%s6 + $0x308] sm:$0xff]
        %v1178 = vld [vmem:[%s6 + $0x310] sm:$0xff]
        %v1179 = vld [vmem:[%s6 + $0x318] sm:$0xff]
        %v1180 = vld [vmem:[%s6 + $0x320] sm:$0xff]
        %v1181 = vld [vmem:[%s6 + $0x328] sm:$0xff]
        %v1182 = vld [vmem:[%s6 + $0x330] sm:$0xff]
        %v1183 = vld [vmem:[%s6 + $0x338] sm:$0xff]
        %v1184 = vld [vmem:[%s6 + $0x340] sm:$0xff]
        %v1185 = vld [vmem:[%s6 + $0x348] sm:$0xff]
        %v1186 = vld [vmem:[%s6 + $0x350] sm:$0xff]
        %v1187 = vld [vmem:[%s6 + $0x358] sm:$0xff]
        %v1188 = vld [vmem:[%s6 + $0x360] sm:$0xff]
        %v1189 = vld [vmem:[%s6 + $0x368] sm:$0xff]
        %v1190 = vld [vmem:[%s6 + $0x370] sm:$0xff]
        %v1191 = vld [vmem:[%s6 + $0x378] sm:$0xff]
        %v1192 = vld [vmem:[%s6 + $0x380] sm:$0xff]
        %v1193 = vld [vmem:[%s6 + $0x388] sm:$0xff]
        %v1194 = vld [vmem:[%s6 + $0x390] sm:$0xff]
        %v1195 = vld [vmem:[%s6 + $0x398] sm:$0xff]
        %v1196 = vld [vmem:[%s6 + $0x3a0] sm:$0xff]
        %v1197 = vld [vmem:[%s6 + $0x3a8] sm:$0xff]
        %v1198 = vld [vmem:[%s6 + $0x3b0] sm:$0xff]
        %v1199 = vld [vmem:[%s6 + $0x3b8] sm:$0xff]
        %v1200 = vld [vmem:[%s6 + $0x3c0] sm:$0xff]
        %v1201 = vld [vmem:[%s6 + $0x3c8] sm:$0xff]
        %v1202 = vld [vmem:[%s6 + $0x3d0] sm:$0xff]
        %v1203 = vld [vmem:[%s6 + $0x3d8] sm:$0xff]
        %v1204 = vld [vmem:[%s6 + $0x3e0] sm:$0xff]
        %v1205 = vld [vmem:[%s6 + $0x3e8] sm:$0xff]
        %v1206 = vld [vmem:[%s6 + $0x3f0] sm:$0xff]
        %v1207 = vld [vmem:[%s6 + $0x3f8] sm:$0xff]
        %1209 = vset.pattern.permute.xlu0 0
        %1210 = vperm.xlu0 %1209, %v1080
        %v1211 = vpop.permute.xlu0 %1210
        %1214 = vset.pattern.permute.xlu0 0
        %1215 = vperm.xlu0 %1214, %v1081
        %v1216 = vpop.permute.xlu0 %1215
        %1219 = vset.pattern.permute.xlu0 0
        %1220 = vperm.xlu0 %1219, %v1082
        %v1221 = vpop.permute.xlu0 %1220
        %1224 = vset.pattern.permute.xlu0 0
        %1225 = vperm.xlu0 %1224, %v1083
        %v1226 = vpop.permute.xlu0 %1225
        %1229 = vset.pattern.permute.xlu0 0
        %1230 = vperm.xlu0 %1229, %v1084
        %v1231 = vpop.permute.xlu0 %1230
        %1234 = vset.pattern.permute.xlu0 0
        %1235 = vperm.xlu0 %1234, %v1085
        %v1236 = vpop.permute.xlu0 %1235
        %1239 = vset.pattern.permute.xlu0 0
        %1240 = vperm.xlu0 %1239, %v1086
        %v1241 = vpop.permute.xlu0 %1240
        %1244 = vset.pattern.permute.xlu0 0
        %1245 = vperm.xlu0 %1244, %v1087
        %v1246 = vpop.permute.xlu0 %1245
        %1249 = vset.pattern.permute.xlu0 0
        %1250 = vperm.xlu0 %1249, %v1088
        %v1251 = vpop.permute.xlu0 %1250
        %1254 = vset.pattern.permute.xlu0 0
        %1255 = vperm.xlu0 %1254, %v1089
        %v1256 = vpop.permute.xlu0 %1255
        %1259 = vset.pattern.permute.xlu0 0
        %1260 = vperm.xlu0 %1259, %v1090
        %v1261 = vpop.permute.xlu0 %1260
        %1264 = vset.pattern.permute.xlu0 0
        %1265 = vperm.xlu0 %1264, %v1091
        %v1266 = vpop.permute.xlu0 %1265
        %1269 = vset.pattern.permute.xlu0 0
        %1270 = vperm.xlu0 %1269, %v1092
        %v1271 = vpop.permute.xlu0 %1270
        %1274 = vset.pattern.permute.xlu0 0
        %1275 = vperm.xlu0 %1274, %v1093
        %v1276 = vpop.permute.xlu0 %1275
        %1279 = vset.pattern.permute.xlu0 0
        %1280 = vperm.xlu0 %1279, %v1094
        %v1281 = vpop.permute.xlu0 %1280
        %1284 = vset.pattern.permute.xlu0 0
        %1285 = vperm.xlu0 %1284, %v1095
        %v1286 = vpop.permute.xlu0 %1285
        %1289 = vset.pattern.permute.xlu0 0
        %1290 = vperm.xlu0 %1289, %v1096
        %v1291 = vpop.permute.xlu0 %1290
        %1294 = vset.pattern.permute.xlu0 0
        %1295 = vperm.xlu0 %1294, %v1097
        %v1296 = vpop.permute.xlu0 %1295
        %1299 = vset.pattern.permute.xlu0 0
        %1300 = vperm.xlu0 %1299, %v1098
        %v1301 = vpop.permute.xlu0 %1300
        %1304 = vset.pattern.permute.xlu0 0
        %1305 = vperm.xlu0 %1304, %v1099
        %v1306 = vpop.permute.xlu0 %1305
        %1309 = vset.pattern.permute.xlu0 0
        %1310 = vperm.xlu0 %1309, %v1100
        %v1311 = vpop.permute.xlu0 %1310
        %1314 = vset.pattern.permute.xlu0 0
        %1315 = vperm.xlu0 %1314, %v1101
        %v1316 = vpop.permute.xlu0 %1315
        %1319 = vset.pattern.permute.xlu0 0
        %1320 = vperm.xlu0 %1319, %v1102
        %v1321 = vpop.permute.xlu0 %1320
        %1324 = vset.pattern.permute.xlu0 0
        %1325 = vperm.xlu0 %1324, %v1103
        %v1326 = vpop.permute.xlu0 %1325
        %1329 = vset.pattern.permute.xlu0 0
        %1330 = vperm.xlu0 %1329, %v1104
        %v1331 = vpop.permute.xlu0 %1330
        %1334 = vset.pattern.permute.xlu0 0
        %1335 = vperm.xlu0 %1334, %v1105
        %v1336 = vpop.permute.xlu0 %1335
        %1339 = vset.pattern.permute.xlu0 0
        %1340 = vperm.xlu0 %1339, %v1106
        %v1341 = vpop.permute.xlu0 %1340
        %1344 = vset.pattern.permute.xlu0 0
        %1345 = vperm.xlu0 %1344, %v1107
        %v1346 = vpop.permute.xlu0 %1345
        %1349 = vset.pattern.permute.xlu0 0
        %1350 = vperm.xlu0 %1349, %v1108
        %v1351 = vpop.permute.xlu0 %1350
        %1354 = vset.pattern.permute.xlu0 0
        %1355 = vperm.xlu0 %1354, %v1109
        %v1356 = vpop.permute.xlu0 %1355
        %1359 = vset.pattern.permute.xlu0 0
        %1360 = vperm.xlu0 %1359, %v1110
        %v1361 = vpop.permute.xlu0 %1360
        %1364 = vset.pattern.permute.xlu0 0
        %1365 = vperm.xlu0 %1364, %v1111
        %v1366 = vpop.permute.xlu0 %1365
        %1369 = vset.pattern.permute.xlu0 0
        %1370 = vperm.xlu0 %1369, %v1112
        %v1371 = vpop.permute.xlu0 %1370
        %1374 = vset.pattern.permute.xlu0 0
        %1375 = vperm.xlu0 %1374, %v1113
        %v1376 = vpop.permute.xlu0 %1375
        %1379 = vset.pattern.permute.xlu0 0
        %1380 = vperm.xlu0 %1379, %v1114
        %v1381 = vpop.permute.xlu0 %1380
        %1384 = vset.pattern.permute.xlu0 0
        %1385 = vperm.xlu0 %1384, %v1115
        %v1386 = vpop.permute.xlu0 %1385
        %1389 = vset.pattern.permute.xlu0 0
        %1390 = vperm.xlu0 %1389, %v1116
        %v1391 = vpop.permute.xlu0 %1390
        %1394 = vset.pattern.permute.xlu0 0
        %1395 = vperm.xlu0 %1394, %v1117
        %v1396 = vpop.permute.xlu0 %1395
        %1399 = vset.pattern.permute.xlu0 0
        %1400 = vperm.xlu0 %1399, %v1118
        %v1401 = vpop.permute.xlu0 %1400
        %1404 = vset.pattern.permute.xlu0 0
        %1405 = vperm.xlu0 %1404, %v1119
        %v1406 = vpop.permute.xlu0 %1405
        %1409 = vset.pattern.permute.xlu0 0
        %1410 = vperm.xlu0 %1409, %v1120
        %v1411 = vpop.permute.xlu0 %1410
        %1414 = vset.pattern.permute.xlu0 0
        %1415 = vperm.xlu0 %1414, %v1121
        %v1416 = vpop.permute.xlu0 %1415
        %1419 = vset.pattern.permute.xlu0 0
        %1420 = vperm.xlu0 %1419, %v1122
        %v1421 = vpop.permute.xlu0 %1420
        %1424 = vset.pattern.permute.xlu0 0
        %1425 = vperm.xlu0 %1424, %v1123
        %v1426 = vpop.permute.xlu0 %1425
        %1429 = vset.pattern.permute.xlu0 0
        %1430 = vperm.xlu0 %1429, %v1124
        %v1431 = vpop.permute.xlu0 %1430
        %1434 = vset.pattern.permute.xlu0 0
        %1435 = vperm.xlu0 %1434, %v1125
        %v1436 = vpop.permute.xlu0 %1435
        %1439 = vset.pattern.permute.xlu0 0
        %1440 = vperm.xlu0 %1439, %v1126
        %v1441 = vpop.permute.xlu0 %1440
        %1444 = vset.pattern.permute.xlu0 0
        %1445 = vperm.xlu0 %1444, %v1127
        %v1446 = vpop.permute.xlu0 %1445
        %1449 = vset.pattern.permute.xlu0 0
        %1450 = vperm.xlu0 %1449, %v1128
        %v1451 = vpop.permute.xlu0 %1450
        %1454 = vset.pattern.permute.xlu0 0
        %1455 = vperm.xlu0 %1454, %v1129
        %v1456 = vpop.permute.xlu0 %1455
        %1459 = vset.pattern.permute.xlu0 0
        %1460 = vperm.xlu0 %1459, %v1130
        %v1461 = vpop.permute.xlu0 %1460
        %1464 = vset.pattern.permute.xlu0 0
        %1465 = vperm.xlu0 %1464, %v1131
        %v1466 = vpop.permute.xlu0 %1465
        %1469 = vset.pattern.permute.xlu0 0
        %1470 = vperm.xlu0 %1469, %v1132
        %v1471 = vpop.permute.xlu0 %1470
        %1474 = vset.pattern.permute.xlu0 0
        %1475 = vperm.xlu0 %1474, %v1133
        %v1476 = vpop.permute.xlu0 %1475
        %1479 = vset.pattern.permute.xlu0 0
        %1480 = vperm.xlu0 %1479, %v1134
        %v1481 = vpop.permute.xlu0 %1480
        %1484 = vset.pattern.permute.xlu0 0
        %1485 = vperm.xlu0 %1484, %v1135
        %v1486 = vpop.permute.xlu0 %1485
        %1489 = vset.pattern.permute.xlu0 0
        %1490 = vperm.xlu0 %1489, %v1136
        %v1491 = vpop.permute.xlu0 %1490
        %1494 = vset.pattern.permute.xlu0 0
        %1495 = vperm.xlu0 %1494, %v1137
        %v1496 = vpop.permute.xlu0 %1495
        %1499 = vset.pattern.permute.xlu0 0
        %1500 = vperm.xlu0 %1499, %v1138
        %v1501 = vpop.permute.xlu0 %1500
        %1504 = vset.pattern.permute.xlu0 0
        %1505 = vperm.xlu0 %1504, %v1139
        %v1506 = vpop.permute.xlu0 %1505
        %1509 = vset.pattern.permute.xlu0 0
        %1510 = vperm.xlu0 %1509, %v1140
        %v1511 = vpop.permute.xlu0 %1510
        %1514 = vset.pattern.permute.xlu0 0
        %1515 = vperm.xlu0 %1514, %v1141
        %v1516 = vpop.permute.xlu0 %1515
        %1519 = vset.pattern.permute.xlu0 0
        %1520 = vperm.xlu0 %1519, %v1142
        %v1521 = vpop.permute.xlu0 %1520
        %1524 = vset.pattern.permute.xlu0 0
        %1525 = vperm.xlu0 %1524, %v1143
        %v1526 = vpop.permute.xlu0 %1525
        %1529 = vset.pattern.permute.xlu0 0
        %1530 = vperm.xlu0 %1529, %v1144
        %v1531 = vpop.permute.xlu0 %1530
        %1534 = vset.pattern.permute.xlu0 0
        %1535 = vperm.xlu0 %1534, %v1145
        %v1536 = vpop.permute.xlu0 %1535
        %1539 = vset.pattern.permute.xlu0 0
        %1540 = vperm.xlu0 %1539, %v1146
        %v1541 = vpop.permute.xlu0 %1540
        %1544 = vset.pattern.permute.xlu0 0
        %1545 = vperm.xlu0 %1544, %v1147
        %v1546 = vpop.permute.xlu0 %1545
        %1549 = vset.pattern.permute.xlu0 0
        %1550 = vperm.xlu0 %1549, %v1148
        %v1551 = vpop.permute.xlu0 %1550
        %1554 = vset.pattern.permute.xlu0 0
        %1555 = vperm.xlu0 %1554, %v1149
        %v1556 = vpop.permute.xlu0 %1555
        %1559 = vset.pattern.permute.xlu0 0
        %1560 = vperm.xlu0 %1559, %v1150
        %v1561 = vpop.permute.xlu0 %1560
        %1564 = vset.pattern.permute.xlu0 0
        %1565 = vperm.xlu0 %1564, %v1151
        %v1566 = vpop.permute.xlu0 %1565
        %1569 = vset.pattern.permute.xlu0 0
        %1570 = vperm.xlu0 %1569, %v1152
        %v1571 = vpop.permute.xlu0 %1570
        %1574 = vset.pattern.permute.xlu0 0
        %1575 = vperm.xlu0 %1574, %v1153
        %v1576 = vpop.permute.xlu0 %1575
        %1579 = vset.pattern.permute.xlu0 0
        %1580 = vperm.xlu0 %1579, %v1154
        %v1581 = vpop.permute.xlu0 %1580
        %1584 = vset.pattern.permute.xlu0 0
        %1585 = vperm.xlu0 %1584, %v1155
        %v1586 = vpop.permute.xlu0 %1585
        %1589 = vset.pattern.permute.xlu0 0
        %1590 = vperm.xlu0 %1589, %v1156
        %v1591 = vpop.permute.xlu0 %1590
        %1594 = vset.pattern.permute.xlu0 0
        %1595 = vperm.xlu0 %1594, %v1157
        %v1596 = vpop.permute.xlu0 %1595
        %1599 = vset.pattern.permute.xlu0 0
        %1600 = vperm.xlu0 %1599, %v1158
        %v1601 = vpop.permute.xlu0 %1600
        %1604 = vset.pattern.permute.xlu0 0
        %1605 = vperm.xlu0 %1604, %v1159
        %v1606 = vpop.permute.xlu0 %1605
        %1609 = vset.pattern.permute.xlu0 0
        %1610 = vperm.xlu0 %1609, %v1160
        %v1611 = vpop.permute.xlu0 %1610
        %1614 = vset.pattern.permute.xlu0 0
        %1615 = vperm.xlu0 %1614, %v1161
        %v1616 = vpop.permute.xlu0 %1615
        %1619 = vset.pattern.permute.xlu0 0
        %1620 = vperm.xlu0 %1619, %v1162
        %v1621 = vpop.permute.xlu0 %1620
        %1624 = vset.pattern.permute.xlu0 0
        %1625 = vperm.xlu0 %1624, %v1163
        %v1626 = vpop.permute.xlu0 %1625
        %1629 = vset.pattern.permute.xlu0 0
        %1630 = vperm.xlu0 %1629, %v1164
        %v1631 = vpop.permute.xlu0 %1630
        %1634 = vset.pattern.permute.xlu0 0
        %1635 = vperm.xlu0 %1634, %v1165
        %v1636 = vpop.permute.xlu0 %1635
        %1639 = vset.pattern.permute.xlu0 0
        %1640 = vperm.xlu0 %1639, %v1166
        %v1641 = vpop.permute.xlu0 %1640
        %1644 = vset.pattern.permute.xlu0 0
        %1645 = vperm.xlu0 %1644, %v1167
        %v1646 = vpop.permute.xlu0 %1645
        %1649 = vset.pattern.permute.xlu0 0
        %1650 = vperm.xlu0 %1649, %v1168
        %v1651 = vpop.permute.xlu0 %1650
        %1654 = vset.pattern.permute.xlu0 0
        %1655 = vperm.xlu0 %1654, %v1169
        %v1656 = vpop.permute.xlu0 %1655
        %1659 = vset.pattern.permute.xlu0 0
        %1660 = vperm.xlu0 %1659, %v1170
        %v1661 = vpop.permute.xlu0 %1660
        %1664 = vset.pattern.permute.xlu0 0
        %1665 = vperm.xlu0 %1664, %v1171
        %v1666 = vpop.permute.xlu0 %1665
        %1669 = vset.pattern.permute.xlu0 0
        %1670 = vperm.xlu0 %1669, %v1172
        %v1671 = vpop.permute.xlu0 %1670
        %1674 = vset.pattern.permute.xlu0 0
        %1675 = vperm.xlu0 %1674, %v1173
        %v1676 = vpop.permute.xlu0 %1675
        %1679 = vset.pattern.permute.xlu0 0
        %1680 = vperm.xlu0 %1679, %v1174
        %v1681 = vpop.permute.xlu0 %1680
        %1684 = vset.pattern.permute.xlu0 0
        %1685 = vperm.xlu0 %1684, %v1175
        %v1686 = vpop.permute.xlu0 %1685
        %1689 = vset.pattern.permute.xlu0 0
        %1690 = vperm.xlu0 %1689, %v1176
        %v1691 = vpop.permute.xlu0 %1690
        %1694 = vset.pattern.permute.xlu0 0
        %1695 = vperm.xlu0 %1694, %v1177
        %v1696 = vpop.permute.xlu0 %1695
        %1699 = vset.pattern.permute.xlu0 0
        %1700 = vperm.xlu0 %1699, %v1178
        %v1701 = vpop.permute.xlu0 %1700
        %1704 = vset.pattern.permute.xlu0 0
        %1705 = vperm.xlu0 %1704, %v1179
        %v1706 = vpop.permute.xlu0 %1705
        %1709 = vset.pattern.permute.xlu0 0
        %1710 = vperm.xlu0 %1709, %v1180
        %v1711 = vpop.permute.xlu0 %1710
        %1714 = vset.pattern.permute.xlu0 0
        %1715 = vperm.xlu0 %1714, %v1181
        %v1716 = vpop.permute.xlu0 %1715
        %1719 = vset.pattern.permute.xlu0 0
        %1720 = vperm.xlu0 %1719, %v1182
        %v1721 = vpop.permute.xlu0 %1720
        %1724 = vset.pattern.permute.xlu0 0
        %1725 = vperm.xlu0 %1724, %v1183
        %v1726 = vpop.permute.xlu0 %1725
        %1729 = vset.pattern.permute.xlu0 0
        %1730 = vperm.xlu0 %1729, %v1184
        %v1731 = vpop.permute.xlu0 %1730
        %1734 = vset.pattern.permute.xlu0 0
        %1735 = vperm.xlu0 %1734, %v1185
        %v1736 = vpop.permute.xlu0 %1735
        %1739 = vset.pattern.permute.xlu0 0
        %1740 = vperm.xlu0 %1739, %v1186
        %v1741 = vpop.permute.xlu0 %1740
        %1744 = vset.pattern.permute.xlu0 0
        %1745 = vperm.xlu0 %1744, %v1187
        %v1746 = vpop.permute.xlu0 %1745
        %1749 = vset.pattern.permute.xlu0 0
        %1750 = vperm.xlu0 %1749, %v1188
        %v1751 = vpop.permute.xlu0 %1750
        %1754 = vset.pattern.permute.xlu0 0
        %1755 = vperm.xlu0 %1754, %v1189
        %v1756 = vpop.permute.xlu0 %1755
        %1759 = vset.pattern.permute.xlu0 0
        %1760 = vperm.xlu0 %1759, %v1190
        %v1761 = vpop.permute.xlu0 %1760
        %1764 = vset.pattern.permute.xlu0 0
        %1765 = vperm.xlu0 %1764, %v1191
        %v1766 = vpop.permute.xlu0 %1765
        %1769 = vset.pattern.permute.xlu0 0
        %1770 = vperm.xlu0 %1769, %v1192
        %v1771 = vpop.permute.xlu0 %1770
        %1774 = vset.pattern.permute.xlu0 0
        %1775 = vperm.xlu0 %1774, %v1193
        %v1776 = vpop.permute.xlu0 %1775
        %1779 = vset.pattern.permute.xlu0 0
        %1780 = vperm.xlu0 %1779, %v1194
        %v1781 = vpop.permute.xlu0 %1780
        %1784 = vset.pattern.permute.xlu0 0
        %1785 = vperm.xlu0 %1784, %v1195
        %v1786 = vpop.permute.xlu0 %1785
        %1789 = vset.pattern.permute.xlu0 0
        %1790 = vperm.xlu0 %1789, %v1196
        %v1791 = vpop.permute.xlu0 %1790
        %1794 = vset.pattern.permute.xlu0 0
        %1795 = vperm.xlu0 %1794, %v1197
        %v1796 = vpop.permute.xlu0 %1795
        %1799 = vset.pattern.permute.xlu0 0
        %1800 = vperm.xlu0 %1799, %v1198
        %v1801 = vpop.permute.xlu0 %1800
        %1804 = vset.pattern.permute.xlu0 0
        %1805 = vperm.xlu0 %1804, %v1199
        %v1806 = vpop.permute.xlu0 %1805
        %1809 = vset.pattern.permute.xlu0 0
        %1810 = vperm.xlu0 %1809, %v1200
        %v1811 = vpop.permute.xlu0 %1810
        %1814 = vset.pattern.permute.xlu0 0
        %1815 = vperm.xlu0 %1814, %v1201
        %v1816 = vpop.permute.xlu0 %1815
        %1819 = vset.pattern.permute.xlu0 0
        %1820 = vperm.xlu0 %1819, %v1202
        %v1821 = vpop.permute.xlu0 %1820
        %1824 = vset.pattern.permute.xlu0 0
        %1825 = vperm.xlu0 %1824, %v1203
        %v1826 = vpop.permute.xlu0 %1825
        %1829 = vset.pattern.permute.xlu0 0
        %1830 = vperm.xlu0 %1829, %v1204
        %v1831 = vpop.permute.xlu0 %1830
        %1834 = vset.pattern.permute.xlu0 0
        %1835 = vperm.xlu0 %1834, %v1205
        %v1836 = vpop.permute.xlu0 %1835
        %1839 = vset.pattern.permute.xlu0 0
        %1840 = vperm.xlu0 %1839, %v1206
        %v1841 = vpop.permute.xlu0 %1840
        %1844 = vset.pattern.permute.xlu0 0
        %1845 = vperm.xlu0 %1844, %v1207
        %v1846 = vpop.permute.xlu0 %1845
        %v1976 = vunpack.c.l.b16 %v936
        %v1977 = vunpack.c.l.b16 %v937
        %v1978 = vunpack.c.l.b16 %v938
        %v1979 = vunpack.c.l.b16 %v939
        %v1980 = vunpack.c.l.b16 %v940
        %v1981 = vunpack.c.l.b16 %v941
        %v1982 = vunpack.c.l.b16 %v942
        %v1983 = vunpack.c.l.b16 %v943
        %v1984 = vunpack.c.l.b16 %v944
        %v1985 = vunpack.c.l.b16 %v945
        %v1986 = vunpack.c.l.b16 %v946
        %v1987 = vunpack.c.l.b16 %v947
        %v1988 = vunpack.c.l.b16 %v948
        %v1989 = vunpack.c.l.b16 %v949
        %v1990 = vunpack.c.l.b16 %v950
        %v1991 = vunpack.c.l.b16 %v951
        %v1992 = vunpack.c.l.b16 %v952
        %v1993 = vunpack.c.l.b16 %v953
        %v1994 = vunpack.c.l.b16 %v954
        %v1995 = vunpack.c.l.b16 %v955
        %v1996 = vunpack.c.l.b16 %v956
        %v1997 = vunpack.c.l.b16 %v957
        %v1998 = vunpack.c.l.b16 %v958
        %v1999 = vunpack.c.l.b16 %v959
        %v2000 = vunpack.c.l.b16 %v960
        %v2001 = vunpack.c.l.b16 %v961
        %v2002 = vunpack.c.l.b16 %v962
        %v2003 = vunpack.c.l.b16 %v963
        %v2004 = vunpack.c.l.b16 %v964
        %v2005 = vunpack.c.l.b16 %v965
        %v2006 = vunpack.c.l.b16 %v966
        %v2007 = vunpack.c.l.b16 %v967
        %v2008 = vunpack.c.l.b16 %v968
        %v2009 = vunpack.c.l.b16 %v969
        %v2010 = vunpack.c.l.b16 %v970
        %v2011 = vunpack.c.l.b16 %v971
        %v2012 = vunpack.c.l.b16 %v972
        %v2013 = vunpack.c.l.b16 %v973
        %v2014 = vunpack.c.l.b16 %v974
        %v2015 = vunpack.c.l.b16 %v975
        %v2016 = vunpack.c.l.b16 %v976
        %v2017 = vunpack.c.l.b16 %v977
        %v2018 = vunpack.c.l.b16 %v978
        %v2019 = vunpack.c.l.b16 %v979
        %v2020 = vunpack.c.l.b16 %v980
        %v2021 = vunpack.c.l.b16 %v981
        %v2022 = vunpack.c.l.b16 %v982
        %v2023 = vunpack.c.l.b16 %v983
        %v2024 = vunpack.c.l.b16 %v984
        %v2025 = vunpack.c.l.b16 %v985
        %v2026 = vunpack.c.l.b16 %v986
        %v2027 = vunpack.c.l.b16 %v987
        %v2028 = vunpack.c.l.b16 %v988
        %v2029 = vunpack.c.l.b16 %v989
        %v2030 = vunpack.c.l.b16 %v990
        %v2031 = vunpack.c.l.b16 %v991
        %v2032 = vunpack.c.l.b16 %v992
        %v2033 = vunpack.c.l.b16 %v993
        %v2034 = vunpack.c.l.b16 %v994
        %v2035 = vunpack.c.l.b16 %v995
        %v2036 = vunpack.c.l.b16 %v996
        %v2037 = vunpack.c.l.b16 %v997
        %v2038 = vunpack.c.l.b16 %v998
        %v2039 = vunpack.c.l.b16 %v999
        %v2040 = vunpack.c.l.b16 %v1000
        %v2041 = vunpack.c.l.b16 %v1001
        %v2042 = vunpack.c.l.b16 %v1002
        %v2043 = vunpack.c.l.b16 %v1003
        %v2044 = vunpack.c.l.b16 %v1004
        %v2045 = vunpack.c.l.b16 %v1005
        %v2046 = vunpack.c.l.b16 %v1006
        %v2047 = vunpack.c.l.b16 %v1007
        %v2048 = vunpack.c.l.b16 %v1008
        %v2049 = vunpack.c.l.b16 %v1009
        %v2050 = vunpack.c.l.b16 %v1010
        %v2051 = vunpack.c.l.b16 %v1011
        %v2052 = vunpack.c.l.b16 %v1012
        %v2053 = vunpack.c.l.b16 %v1013
        %v2054 = vunpack.c.l.b16 %v1014
        %v2055 = vunpack.c.l.b16 %v1015
        %v2056 = vunpack.c.l.b16 %v1016
        %v2057 = vunpack.c.l.b16 %v1017
        %v2058 = vunpack.c.l.b16 %v1018
        %v2059 = vunpack.c.l.b16 %v1019
        %v2060 = vunpack.c.l.b16 %v1020
        %v2061 = vunpack.c.l.b16 %v1021
        %v2062 = vunpack.c.l.b16 %v1022
        %v2063 = vunpack.c.l.b16 %v1023
        %v2064 = vunpack.c.l.b16 %v1024
        %v2065 = vunpack.c.l.b16 %v1025
        %v2066 = vunpack.c.l.b16 %v1026
        %v2067 = vunpack.c.l.b16 %v1027
        %v2068 = vunpack.c.l.b16 %v1028
        %v2069 = vunpack.c.l.b16 %v1029
        %v2070 = vunpack.c.l.b16 %v1030
        %v2071 = vunpack.c.l.b16 %v1031
        %v2072 = vunpack.c.l.b16 %v1032
        %v2073 = vunpack.c.l.b16 %v1033
        %v2074 = vunpack.c.l.b16 %v1034
        %v2075 = vunpack.c.l.b16 %v1035
        %v2076 = vunpack.c.l.b16 %v1036
        %v2077 = vunpack.c.l.b16 %v1037
        %v2078 = vunpack.c.l.b16 %v1038
        %v2079 = vunpack.c.l.b16 %v1039
        %v2080 = vunpack.c.l.b16 %v1040
        %v2081 = vunpack.c.l.b16 %v1041
        %v2082 = vunpack.c.l.b16 %v1042
        %v2083 = vunpack.c.l.b16 %v1043
        %v2084 = vunpack.c.l.b16 %v1044
        %v2085 = vunpack.c.l.b16 %v1045
        %v2086 = vunpack.c.l.b16 %v1046
        %v2087 = vunpack.c.l.b16 %v1047
        %v2088 = vunpack.c.l.b16 %v1048
        %v2089 = vunpack.c.l.b16 %v1049
        %v2090 = vunpack.c.l.b16 %v1050
        %v2091 = vunpack.c.l.b16 %v1051
        %v2092 = vunpack.c.l.b16 %v1052
        %v2093 = vunpack.c.l.b16 %v1053
        %v2094 = vunpack.c.l.b16 %v1054
        %v2095 = vunpack.c.l.b16 %v1055
        %v2096 = vunpack.c.l.b16 %v1056
        %v2097 = vunpack.c.l.b16 %v1057
        %v2098 = vunpack.c.l.b16 %v1058
        %v2099 = vunpack.c.l.b16 %v1059
        %v2100 = vunpack.c.l.b16 %v1060
        %v2101 = vunpack.c.l.b16 %v1061
        %v2102 = vunpack.c.l.b16 %v1062
        %v2103 = vunpack.c.l.b16 %v1063
        %v2104 = vpack.c.b16 %v1977, %v1976
        %v2105 = vpack.c.b16 %v1979, %v1978
        %v2106 = vpack.c.b16 %v1981, %v1980
        %v2107 = vpack.c.b16 %v1983, %v1982
        %v2108 = vpack.c.b16 %v1985, %v1984
        %v2109 = vpack.c.b16 %v1987, %v1986
        %v2110 = vpack.c.b16 %v1989, %v1988
        %v2111 = vpack.c.b16 %v1991, %v1990
        %v2112 = vpack.c.b16 %v1993, %v1992
        %v2113 = vpack.c.b16 %v1995, %v1994
        %v2114 = vpack.c.b16 %v1997, %v1996
        %v2115 = vpack.c.b16 %v1999, %v1998
        %v2116 = vpack.c.b16 %v2001, %v2000
        %v2117 = vpack.c.b16 %v2003, %v2002
        %v2118 = vpack.c.b16 %v2005, %v2004
        %v2119 = vpack.c.b16 %v2007, %v2006
        %v2120 = vpack.c.b16 %v2009, %v2008
        %v2121 = vpack.c.b16 %v2011, %v2010
        %v2122 = vpack.c.b16 %v2013, %v2012
        %v2123 = vpack.c.b16 %v2015, %v2014
        %v2124 = vpack.c.b16 %v2017, %v2016
        %v2125 = vpack.c.b16 %v2019, %v2018
        %v2126 = vpack.c.b16 %v2021, %v2020
        %v2127 = vpack.c.b16 %v2023, %v2022
        %v2128 = vpack.c.b16 %v2025, %v2024
        %v2129 = vpack.c.b16 %v2027, %v2026
        %v2130 = vpack.c.b16 %v2029, %v2028
        %v2131 = vpack.c.b16 %v2031, %v2030
        %v2132 = vpack.c.b16 %v2033, %v2032
        %v2133 = vpack.c.b16 %v2035, %v2034
        %v2134 = vpack.c.b16 %v2037, %v2036
        %v2135 = vpack.c.b16 %v2039, %v2038
        %v2136 = vpack.c.b16 %v2041, %v2040
        %v2137 = vpack.c.b16 %v2043, %v2042
        %v2138 = vpack.c.b16 %v2045, %v2044
        %v2139 = vpack.c.b16 %v2047, %v2046
        %v2140 = vpack.c.b16 %v2049, %v2048
        %v2141 = vpack.c.b16 %v2051, %v2050
        %v2142 = vpack.c.b16 %v2053, %v2052
        %v2143 = vpack.c.b16 %v2055, %v2054
        %v2144 = vpack.c.b16 %v2057, %v2056
        %v2145 = vpack.c.b16 %v2059, %v2058
        %v2146 = vpack.c.b16 %v2061, %v2060
        %v2147 = vpack.c.b16 %v2063, %v2062
        %v2148 = vpack.c.b16 %v2065, %v2064
        %v2149 = vpack.c.b16 %v2067, %v2066
        %v2150 = vpack.c.b16 %v2069, %v2068
        %v2151 = vpack.c.b16 %v2071, %v2070
        %v2152 = vpack.c.b16 %v2073, %v2072
        %v2153 = vpack.c.b16 %v2075, %v2074
        %v2154 = vpack.c.b16 %v2077, %v2076
        %v2155 = vpack.c.b16 %v2079, %v2078
        %v2156 = vpack.c.b16 %v2081, %v2080
        %v2157 = vpack.c.b16 %v2083, %v2082
        %v2158 = vpack.c.b16 %v2085, %v2084
        %v2159 = vpack.c.b16 %v2087, %v2086
        %v2160 = vpack.c.b16 %v2089, %v2088
        %v2161 = vpack.c.b16 %v2091, %v2090
        %v2162 = vpack.c.b16 %v2093, %v2092
        %v2163 = vpack.c.b16 %v2095, %v2094
        %v2164 = vpack.c.b16 %v2097, %v2096
        %v2165 = vpack.c.b16 %v2099, %v2098
        %v2166 = vpack.c.b16 %v2101, %v2100
        %v2167 = vpack.c.b16 %v2103, %v2102
        %2232 = vmatpush.bf16.msra.mxu0 %v1078
        %2233 = vmatpush.bf16.msra.mxu0 %v1076
        %2234 = vmatpush.bf16.msra.mxu0 %v1074
        %2235 = vmatpush.bf16.msra.mxu0 %v1072
        %2236 = vmatpush.bf16.msra.mxu0 %v1070
        %2237 = vmatpush.bf16.msra.mxu0 %v1068
        %2238 = vmatpush.bf16.msra.mxu0 %v1066
        %2239 = vmatpush.bf16.msra.mxu0 %v1064
        %2240 = vmatmul.bf16.gmra.mxu0 %v2104
        %v2241 = vpop.f32.mrf.mxu0
        %v2242 = vadd.f32 %v1211, %v2241
        %v2243 = vpop.f32.mrf.mxu0
        %v2244 = vadd.f32 %v1216, %v2243
        %2245 = vmatmul.bf16.gmra.mxu0 %v2105
        %v2246 = vpop.f32.mrf.mxu0
        %v2247 = vadd.f32 %v1221, %v2246
        %v2248 = vpop.f32.mrf.mxu0
        %v2249 = vadd.f32 %v1226, %v2248
        %2250 = vmatmul.bf16.gmra.mxu0 %v2106
        %v2251 = vpop.f32.mrf.mxu0
        %v2252 = vadd.f32 %v1231, %v2251
        %v2253 = vpop.f32.mrf.mxu0
        %v2254 = vadd.f32 %v1236, %v2253
        %2255 = vmatmul.bf16.gmra.mxu0 %v2107
        %v2256 = vpop.f32.mrf.mxu0
        %v2257 = vadd.f32 %v1241, %v2256
        %v2258 = vpop.f32.mrf.mxu0
        %v2259 = vadd.f32 %v1246, %v2258
        %2260 = vmatmul.bf16.gmra.mxu0 %v2108
        %v2261 = vpop.f32.mrf.mxu0
        %v2262 = vadd.f32 %v1251, %v2261
        %v2263 = vpop.f32.mrf.mxu0
        %v2264 = vadd.f32 %v1256, %v2263
        %2265 = vmatmul.bf16.gmra.mxu0 %v2109
        %v2266 = vpop.f32.mrf.mxu0
        %v2267 = vadd.f32 %v1261, %v2266
        %v2268 = vpop.f32.mrf.mxu0
        %v2269 = vadd.f32 %v1266, %v2268
        %2270 = vmatmul.bf16.gmra.mxu0 %v2110
        %v2271 = vpop.f32.mrf.mxu0
        %v2272 = vadd.f32 %v1271, %v2271
        %v2273 = vpop.f32.mrf.mxu0
        %v2274 = vadd.f32 %v1276, %v2273
        %2275 = vmatmul.bf16.gmra.mxu0 %v2111
        %v2276 = vpop.f32.mrf.mxu0
        %v2277 = vadd.f32 %v1281, %v2276
        %v2278 = vpop.f32.mrf.mxu0
        %v2279 = vadd.f32 %v1286, %v2278
        %2280 = vmatmul.bf16.gmra.mxu0 %v2112
        %v2281 = vpop.f32.mrf.mxu0
        %v2282 = vadd.f32 %v1291, %v2281
        %v2283 = vpop.f32.mrf.mxu0
        %v2284 = vadd.f32 %v1296, %v2283
        %2285 = vmatmul.bf16.gmra.mxu0 %v2113
        %v2286 = vpop.f32.mrf.mxu0
        %v2287 = vadd.f32 %v1301, %v2286
        %v2288 = vpop.f32.mrf.mxu0
        %v2289 = vadd.f32 %v1306, %v2288
        %2290 = vmatmul.bf16.gmra.mxu0 %v2114
        %v2291 = vpop.f32.mrf.mxu0
        %v2292 = vadd.f32 %v1311, %v2291
        %v2293 = vpop.f32.mrf.mxu0
        %v2294 = vadd.f32 %v1316, %v2293
        %2295 = vmatmul.bf16.gmra.mxu0 %v2115
        %v2296 = vpop.f32.mrf.mxu0
        %v2297 = vadd.f32 %v1321, %v2296
        %v2298 = vpop.f32.mrf.mxu0
        %v2299 = vadd.f32 %v1326, %v2298
        %2300 = vmatmul.bf16.gmra.mxu0 %v2116
        %v2301 = vpop.f32.mrf.mxu0
        %v2302 = vadd.f32 %v1331, %v2301
        %v2303 = vpop.f32.mrf.mxu0
        %v2304 = vadd.f32 %v1336, %v2303
        %2305 = vmatmul.bf16.gmra.mxu0 %v2117
        %v2306 = vpop.f32.mrf.mxu0
        %v2307 = vadd.f32 %v1341, %v2306
        %v2308 = vpop.f32.mrf.mxu0
        %v2309 = vadd.f32 %v1346, %v2308
        %2310 = vmatmul.bf16.gmra.mxu0 %v2118
        %v2311 = vpop.f32.mrf.mxu0
        %v2312 = vadd.f32 %v1351, %v2311
        %v2313 = vpop.f32.mrf.mxu0
        %v2314 = vadd.f32 %v1356, %v2313
        %2315 = vmatmul.bf16.gmra.mxu0 %v2119
        %v2316 = vpop.f32.mrf.mxu0
        %v2317 = vadd.f32 %v1361, %v2316
        %v2318 = vpop.f32.mrf.mxu0
        %v2319 = vadd.f32 %v1366, %v2318
        %2320 = vmatmul.bf16.gmra.mxu0 %v2120
        %v2321 = vpop.f32.mrf.mxu0
        %v2322 = vadd.f32 %v1371, %v2321
        %v2323 = vpop.f32.mrf.mxu0
        %v2324 = vadd.f32 %v1376, %v2323
        %2325 = vmatmul.bf16.gmra.mxu0 %v2121
        %v2326 = vpop.f32.mrf.mxu0
        %v2327 = vadd.f32 %v1381, %v2326
        %v2328 = vpop.f32.mrf.mxu0
        %v2329 = vadd.f32 %v1386, %v2328
        %2330 = vmatmul.bf16.gmra.mxu0 %v2122
        %v2331 = vpop.f32.mrf.mxu0
        %v2332 = vadd.f32 %v1391, %v2331
        %v2333 = vpop.f32.mrf.mxu0
        %v2334 = vadd.f32 %v1396, %v2333
        %2335 = vmatmul.bf16.gmra.mxu0 %v2123
        %v2336 = vpop.f32.mrf.mxu0
        %v2337 = vadd.f32 %v1401, %v2336
        %v2338 = vpop.f32.mrf.mxu0
        %v2339 = vadd.f32 %v1406, %v2338
        %2340 = vmatmul.bf16.gmra.mxu0 %v2124
        %v2341 = vpop.f32.mrf.mxu0
        %v2342 = vadd.f32 %v1411, %v2341
        %v2343 = vpop.f32.mrf.mxu0
        %v2344 = vadd.f32 %v1416, %v2343
        %2345 = vmatmul.bf16.gmra.mxu0 %v2125
        %v2346 = vpop.f32.mrf.mxu0
        %v2347 = vadd.f32 %v1421, %v2346
        %v2348 = vpop.f32.mrf.mxu0
        %v2349 = vadd.f32 %v1426, %v2348
        %2350 = vmatmul.bf16.gmra.mxu0 %v2126
        %v2351 = vpop.f32.mrf.mxu0
        %v2352 = vadd.f32 %v1431, %v2351
        %v2353 = vpop.f32.mrf.mxu0
        %v2354 = vadd.f32 %v1436, %v2353
        %2355 = vmatmul.bf16.gmra.mxu0 %v2127
        %v2356 = vpop.f32.mrf.mxu0
        %v2357 = vadd.f32 %v1441, %v2356
        %v2358 = vpop.f32.mrf.mxu0
        %v2359 = vadd.f32 %v1446, %v2358
        %2360 = vmatmul.bf16.gmra.mxu0 %v2128
        %v2361 = vpop.f32.mrf.mxu0
        %v2362 = vadd.f32 %v1451, %v2361
        %v2363 = vpop.f32.mrf.mxu0
        %v2364 = vadd.f32 %v1456, %v2363
        %2365 = vmatmul.bf16.gmra.mxu0 %v2129
        %v2366 = vpop.f32.mrf.mxu0
        %v2367 = vadd.f32 %v1461, %v2366
        %v2368 = vpop.f32.mrf.mxu0
        %v2369 = vadd.f32 %v1466, %v2368
        %2370 = vmatmul.bf16.gmra.mxu0 %v2130
        %v2371 = vpop.f32.mrf.mxu0
        %v2372 = vadd.f32 %v1471, %v2371
        %v2373 = vpop.f32.mrf.mxu0
        %v2374 = vadd.f32 %v1476, %v2373
        %2375 = vmatmul.bf16.gmra.mxu0 %v2131
        %v2376 = vpop.f32.mrf.mxu0
        %v2377 = vadd.f32 %v1481, %v2376
        %v2378 = vpop.f32.mrf.mxu0
        %v2379 = vadd.f32 %v1486, %v2378
        %2380 = vmatmul.bf16.gmra.mxu0 %v2132
        %v2381 = vpop.f32.mrf.mxu0
        %v2382 = vadd.f32 %v1491, %v2381
        %v2383 = vpop.f32.mrf.mxu0
        %v2384 = vadd.f32 %v1496, %v2383
        %2385 = vmatmul.bf16.gmra.mxu0 %v2133
        %v2386 = vpop.f32.mrf.mxu0
        %v2387 = vadd.f32 %v1501, %v2386
        %v2388 = vpop.f32.mrf.mxu0
        %v2389 = vadd.f32 %v1506, %v2388
        %2390 = vmatmul.bf16.gmra.mxu0 %v2134
        %v2391 = vpop.f32.mrf.mxu0
        %v2392 = vadd.f32 %v1511, %v2391
        %v2393 = vpop.f32.mrf.mxu0
        %v2394 = vadd.f32 %v1516, %v2393
        %2395 = vmatmul.bf16.gmra.mxu0 %v2135
        %v2396 = vpop.f32.mrf.mxu0
        %v2397 = vadd.f32 %v1521, %v2396
        %v2398 = vpop.f32.mrf.mxu0
        %v2399 = vadd.f32 %v1526, %v2398
        %2400 = vmatmul.bf16.gmra.mxu0 %v2136
        %v2401 = vpop.f32.mrf.mxu0
        %v2402 = vadd.f32 %v1531, %v2401
        %v2403 = vpop.f32.mrf.mxu0
        %v2404 = vadd.f32 %v1536, %v2403
        %2405 = vmatmul.bf16.gmra.mxu0 %v2137
        %v2406 = vpop.f32.mrf.mxu0
        %v2407 = vadd.f32 %v1541, %v2406
        %v2408 = vpop.f32.mrf.mxu0
        %v2409 = vadd.f32 %v1546, %v2408
        %2410 = vmatmul.bf16.gmra.mxu0 %v2138
        %v2411 = vpop.f32.mrf.mxu0
        %v2412 = vadd.f32 %v1551, %v2411
        %v2413 = vpop.f32.mrf.mxu0
        %v2414 = vadd.f32 %v1556, %v2413
        %2415 = vmatmul.bf16.gmra.mxu0 %v2139
        %v2416 = vpop.f32.mrf.mxu0
        %v2417 = vadd.f32 %v1561, %v2416
        %v2418 = vpop.f32.mrf.mxu0
        %v2419 = vadd.f32 %v1566, %v2418
        %2420 = vmatmul.bf16.gmra.mxu0 %v2140
        %v2421 = vpop.f32.mrf.mxu0
        %v2422 = vadd.f32 %v1571, %v2421
        %v2423 = vpop.f32.mrf.mxu0
        %v2424 = vadd.f32 %v1576, %v2423
        %2425 = vmatmul.bf16.gmra.mxu0 %v2141
        %v2426 = vpop.f32.mrf.mxu0
        %v2427 = vadd.f32 %v1581, %v2426
        %v2428 = vpop.f32.mrf.mxu0
        %v2429 = vadd.f32 %v1586, %v2428
        %2430 = vmatmul.bf16.gmra.mxu0 %v2142
        %v2431 = vpop.f32.mrf.mxu0
        %v2432 = vadd.f32 %v1591, %v2431
        %v2433 = vpop.f32.mrf.mxu0
        %v2434 = vadd.f32 %v1596, %v2433
        %2435 = vmatmul.bf16.gmra.mxu0 %v2143
        %v2436 = vpop.f32.mrf.mxu0
        %v2437 = vadd.f32 %v1601, %v2436
        %v2438 = vpop.f32.mrf.mxu0
        %v2439 = vadd.f32 %v1606, %v2438
        %2440 = vmatmul.bf16.gmra.mxu0 %v2144
        %v2441 = vpop.f32.mrf.mxu0
        %v2442 = vadd.f32 %v1611, %v2441
        %v2443 = vpop.f32.mrf.mxu0
        %v2444 = vadd.f32 %v1616, %v2443
        %2445 = vmatmul.bf16.gmra.mxu0 %v2145
        %v2446 = vpop.f32.mrf.mxu0
        %v2447 = vadd.f32 %v1621, %v2446
        %v2448 = vpop.f32.mrf.mxu0
        %v2449 = vadd.f32 %v1626, %v2448
        %2450 = vmatmul.bf16.gmra.mxu0 %v2146
        %v2451 = vpop.f32.mrf.mxu0
        %v2452 = vadd.f32 %v1631, %v2451
        %v2453 = vpop.f32.mrf.mxu0
        %v2454 = vadd.f32 %v1636, %v2453
        %2455 = vmatmul.bf16.gmra.mxu0 %v2147
        %v2456 = vpop.f32.mrf.mxu0
        %v2457 = vadd.f32 %v1641, %v2456
        %v2458 = vpop.f32.mrf.mxu0
        %v2459 = vadd.f32 %v1646, %v2458
        %2460 = vmatmul.bf16.gmra.mxu0 %v2148
        %v2461 = vpop.f32.mrf.mxu0
        %v2462 = vadd.f32 %v1651, %v2461
        %v2463 = vpop.f32.mrf.mxu0
        %v2464 = vadd.f32 %v1656, %v2463
        %2465 = vmatmul.bf16.gmra.mxu0 %v2149
        %v2466 = vpop.f32.mrf.mxu0
        %v2467 = vadd.f32 %v1661, %v2466
        %v2468 = vpop.f32.mrf.mxu0
        %v2469 = vadd.f32 %v1666, %v2468
        %2470 = vmatmul.bf16.gmra.mxu0 %v2150
        %v2471 = vpop.f32.mrf.mxu0
        %v2472 = vadd.f32 %v1671, %v2471
        %v2473 = vpop.f32.mrf.mxu0
        %v2474 = vadd.f32 %v1676, %v2473
        %2475 = vmatmul.bf16.gmra.mxu0 %v2151
        %v2476 = vpop.f32.mrf.mxu0
        %v2477 = vadd.f32 %v1681, %v2476
        %v2478 = vpop.f32.mrf.mxu0
        %v2479 = vadd.f32 %v1686, %v2478
        %2480 = vmatmul.bf16.gmra.mxu0 %v2152
        %v2481 = vpop.f32.mrf.mxu0
        %v2482 = vadd.f32 %v1691, %v2481
        %v2483 = vpop.f32.mrf.mxu0
        %v2484 = vadd.f32 %v1696, %v2483
        %2485 = vmatmul.bf16.gmra.mxu0 %v2153
        %v2486 = vpop.f32.mrf.mxu0
        %v2487 = vadd.f32 %v1701, %v2486
        %v2488 = vpop.f32.mrf.mxu0
        %v2489 = vadd.f32 %v1706, %v2488
        %2490 = vmatmul.bf16.gmra.mxu0 %v2154
        %v2491 = vpop.f32.mrf.mxu0
        %v2492 = vadd.f32 %v1711, %v2491
        %v2493 = vpop.f32.mrf.mxu0
        %v2494 = vadd.f32 %v1716, %v2493
        %2495 = vmatmul.bf16.gmra.mxu0 %v2155
        %v2496 = vpop.f32.mrf.mxu0
        %v2497 = vadd.f32 %v1721, %v2496
        %v2498 = vpop.f32.mrf.mxu0
        %v2499 = vadd.f32 %v1726, %v2498
        %2500 = vmatmul.bf16.gmra.mxu0 %v2156
        %v2501 = vpop.f32.mrf.mxu0
        %v2502 = vadd.f32 %v1731, %v2501
        %v2503 = vpop.f32.mrf.mxu0
        %v2504 = vadd.f32 %v1736, %v2503
        %2505 = vmatmul.bf16.gmra.mxu0 %v2157
        %v2506 = vpop.f32.mrf.mxu0
        %v2507 = vadd.f32 %v1741, %v2506
        %v2508 = vpop.f32.mrf.mxu0
        %v2509 = vadd.f32 %v1746, %v2508
        %2510 = vmatmul.bf16.gmra.mxu0 %v2158
        %v2511 = vpop.f32.mrf.mxu0
        %v2512 = vadd.f32 %v1751, %v2511
        %v2513 = vpop.f32.mrf.mxu0
        %v2514 = vadd.f32 %v1756, %v2513
        %2515 = vmatmul.bf16.gmra.mxu0 %v2159
        %v2516 = vpop.f32.mrf.mxu0
        %v2517 = vadd.f32 %v1761, %v2516
        %v2518 = vpop.f32.mrf.mxu0
        %v2519 = vadd.f32 %v1766, %v2518
        %2520 = vmatmul.bf16.gmra.mxu0 %v2160
        %v2521 = vpop.f32.mrf.mxu0
        %v2522 = vadd.f32 %v1771, %v2521
        %v2523 = vpop.f32.mrf.mxu0
        %v2524 = vadd.f32 %v1776, %v2523
        %2525 = vmatmul.bf16.gmra.mxu0 %v2161
        %v2526 = vpop.f32.mrf.mxu0
        %v2527 = vadd.f32 %v1781, %v2526
        %v2528 = vpop.f32.mrf.mxu0
        %v2529 = vadd.f32 %v1786, %v2528
        %2530 = vmatmul.bf16.gmra.mxu0 %v2162
        %v2531 = vpop.f32.mrf.mxu0
        %v2532 = vadd.f32 %v1791, %v2531
        %v2533 = vpop.f32.mrf.mxu0
        %v2534 = vadd.f32 %v1796, %v2533
        %2535 = vmatmul.bf16.gmra.mxu0 %v2163
        %v2536 = vpop.f32.mrf.mxu0
        %v2537 = vadd.f32 %v1801, %v2536
        %v2538 = vpop.f32.mrf.mxu0
        %v2539 = vadd.f32 %v1806, %v2538
        %2540 = vmatmul.bf16.gmra.mxu0 %v2164
        %v2541 = vpop.f32.mrf.mxu0
        %v2542 = vadd.f32 %v1811, %v2541
        %v2543 = vpop.f32.mrf.mxu0
        %v2544 = vadd.f32 %v1816, %v2543
        %2545 = vmatmul.bf16.gmra.mxu0 %v2165
        %v2546 = vpop.f32.mrf.mxu0
        %v2547 = vadd.f32 %v1821, %v2546
        %v2548 = vpop.f32.mrf.mxu0
        %v2549 = vadd.f32 %v1826, %v2548
        %2550 = vmatmul.bf16.gmra.mxu0 %v2166
        %v2551 = vpop.f32.mrf.mxu0
        %v2552 = vadd.f32 %v1831, %v2551
        %v2553 = vpop.f32.mrf.mxu0
        %v2554 = vadd.f32 %v1836, %v2553
        %2555 = vmatmul.bf16.gmra.mxu0 %v2167
        %v2556 = vpop.f32.mrf.mxu0
        %v2557 = vadd.f32 %v1841, %v2556
        %v2558 = vpop.f32.mrf.mxu0
        %v2559 = vadd.f32 %v1846, %v2558
        %2560 = vdwg.mxu0
        %2561 = vmatpush.bf16.msra.mxu0 %v1079
        %2562 = vmatpush.bf16.msra.mxu0 %v1077
        %2563 = vmatpush.bf16.msra.mxu0 %v1075
        %2564 = vmatpush.bf16.msra.mxu0 %v1073
        %2565 = vmatpush.bf16.msra.mxu0 %v1071
        %2566 = vmatpush.bf16.msra.mxu0 %v1069
        %2567 = vmatpush.bf16.msra.mxu0 %v1067
        %2568 = vmatpush.bf16.msra.mxu0 %v1065
        %2569 = vmatmul.bf16.gmra.mxu0 %v2104
        %v2570 = vpop.f32.mrf.mxu0
        %v2571 = vadd.f32 %v1211, %v2570
        %v2572 = vpop.f32.mrf.mxu0
        %v2573 = vadd.f32 %v1216, %v2572
        %2574 = vmatmul.bf16.gmra.mxu0 %v2105
        %v2575 = vpop.f32.mrf.mxu0
        %v2576 = vadd.f32 %v1221, %v2575
        %v2577 = vpop.f32.mrf.mxu0
        %v2578 = vadd.f32 %v1226, %v2577
        %2579 = vmatmul.bf16.gmra.mxu0 %v2106
        %v2580 = vpop.f32.mrf.mxu0
        %v2581 = vadd.f32 %v1231, %v2580
        %v2582 = vpop.f32.mrf.mxu0
        %v2583 = vadd.f32 %v1236, %v2582
        %2584 = vmatmul.bf16.gmra.mxu0 %v2107
        %v2585 = vpop.f32.mrf.mxu0
        %v2586 = vadd.f32 %v1241, %v2585
        %v2587 = vpop.f32.mrf.mxu0
        %v2588 = vadd.f32 %v1246, %v2587
        %2589 = vmatmul.bf16.gmra.mxu0 %v2108
        %v2590 = vpop.f32.mrf.mxu0
        %v2591 = vadd.f32 %v1251, %v2590
        %v2592 = vpop.f32.mrf.mxu0
        %v2593 = vadd.f32 %v1256, %v2592
        %2594 = vmatmul.bf16.gmra.mxu0 %v2109
        %v2595 = vpop.f32.mrf.mxu0
        %v2596 = vadd.f32 %v1261, %v2595
        %v2597 = vpop.f32.mrf.mxu0
        %v2598 = vadd.f32 %v1266, %v2597
        %2599 = vmatmul.bf16.gmra.mxu0 %v2110
        %v2600 = vpop.f32.mrf.mxu0
        %v2601 = vadd.f32 %v1271, %v2600
        %v2602 = vpop.f32.mrf.mxu0
        %v2603 = vadd.f32 %v1276, %v2602
        %2604 = vmatmul.bf16.gmra.mxu0 %v2111
        %v2605 = vpop.f32.mrf.mxu0
        %v2606 = vadd.f32 %v1281, %v2605
        %v2607 = vpop.f32.mrf.mxu0
        %v2608 = vadd.f32 %v1286, %v2607
        %2609 = vmatmul.bf16.gmra.mxu0 %v2112
        %v2610 = vpop.f32.mrf.mxu0
        %v2611 = vadd.f32 %v1291, %v2610
        %v2612 = vpop.f32.mrf.mxu0
        %v2613 = vadd.f32 %v1296, %v2612
        %2614 = vmatmul.bf16.gmra.mxu0 %v2113
        %v2615 = vpop.f32.mrf.mxu0
        %v2616 = vadd.f32 %v1301, %v2615
        %v2617 = vpop.f32.mrf.mxu0
        %v2618 = vadd.f32 %v1306, %v2617
        %2619 = vmatmul.bf16.gmra.mxu0 %v2114
        %v2620 = vpop.f32.mrf.mxu0
        %v2621 = vadd.f32 %v1311, %v2620
        %v2622 = vpop.f32.mrf.mxu0
        %v2623 = vadd.f32 %v1316, %v2622
        %2624 = vmatmul.bf16.gmra.mxu0 %v2115
        %v2625 = vpop.f32.mrf.mxu0
        %v2626 = vadd.f32 %v1321, %v2625
        %v2627 = vpop.f32.mrf.mxu0
        %v2628 = vadd.f32 %v1326, %v2627
        %2629 = vmatmul.bf16.gmra.mxu0 %v2116
        %v2630 = vpop.f32.mrf.mxu0
        %v2631 = vadd.f32 %v1331, %v2630
        %v2632 = vpop.f32.mrf.mxu0
        %v2633 = vadd.f32 %v1336, %v2632
        %2634 = vmatmul.bf16.gmra.mxu0 %v2117
        %v2635 = vpop.f32.mrf.mxu0
        %v2636 = vadd.f32 %v1341, %v2635
        %v2637 = vpop.f32.mrf.mxu0
        %v2638 = vadd.f32 %v1346, %v2637
        %2639 = vmatmul.bf16.gmra.mxu0 %v2118
        %v2640 = vpop.f32.mrf.mxu0
        %v2641 = vadd.f32 %v1351, %v2640
        %v2642 = vpop.f32.mrf.mxu0
        %v2643 = vadd.f32 %v1356, %v2642
        %2644 = vmatmul.bf16.gmra.mxu0 %v2119
        %v2645 = vpop.f32.mrf.mxu0
        %v2646 = vadd.f32 %v1361, %v2645
        %v2647 = vpop.f32.mrf.mxu0
        %v2648 = vadd.f32 %v1366, %v2647
        %2649 = vmatmul.bf16.gmra.mxu0 %v2120
        %v2650 = vpop.f32.mrf.mxu0
        %v2651 = vadd.f32 %v1371, %v2650
        %v2652 = vpop.f32.mrf.mxu0
        %v2653 = vadd.f32 %v1376, %v2652
        %2654 = vmatmul.bf16.gmra.mxu0 %v2121
        %v2655 = vpop.f32.mrf.mxu0
        %v2656 = vadd.f32 %v1381, %v2655
        %v2657 = vpop.f32.mrf.mxu0
        %v2658 = vadd.f32 %v1386, %v2657
        %2659 = vmatmul.bf16.gmra.mxu0 %v2122
        %v2660 = vpop.f32.mrf.mxu0
        %v2661 = vadd.f32 %v1391, %v2660
        %v2662 = vpop.f32.mrf.mxu0
        %v2663 = vadd.f32 %v1396, %v2662
        %2664 = vmatmul.bf16.gmra.mxu0 %v2123
        %v2665 = vpop.f32.mrf.mxu0
        %v2666 = vadd.f32 %v1401, %v2665
        %v2667 = vpop.f32.mrf.mxu0
        %v2668 = vadd.f32 %v1406, %v2667
        %2669 = vmatmul.bf16.gmra.mxu0 %v2124
        %v2670 = vpop.f32.mrf.mxu0
        %v2671 = vadd.f32 %v1411, %v2670
        %v2672 = vpop.f32.mrf.mxu0
        %v2673 = vadd.f32 %v1416, %v2672
        %2674 = vmatmul.bf16.gmra.mxu0 %v2125
        %v2675 = vpop.f32.mrf.mxu0
        %v2676 = vadd.f32 %v1421, %v2675
        %v2677 = vpop.f32.mrf.mxu0
        %v2678 = vadd.f32 %v1426, %v2677
        %2679 = vmatmul.bf16.gmra.mxu0 %v2126
        %v2680 = vpop.f32.mrf.mxu0
        %v2681 = vadd.f32 %v1431, %v2680
        %v2682 = vpop.f32.mrf.mxu0
        %v2683 = vadd.f32 %v1436, %v2682
        %2684 = vmatmul.bf16.gmra.mxu0 %v2127
        %v2685 = vpop.f32.mrf.mxu0
        %v2686 = vadd.f32 %v1441, %v2685
        %v2687 = vpop.f32.mrf.mxu0
        %v2688 = vadd.f32 %v1446, %v2687
        %2689 = vmatmul.bf16.gmra.mxu0 %v2128
        %v2690 = vpop.f32.mrf.mxu0
        %v2691 = vadd.f32 %v1451, %v2690
        %v2692 = vpop.f32.mrf.mxu0
        %v2693 = vadd.f32 %v1456, %v2692
        %2694 = vmatmul.bf16.gmra.mxu0 %v2129
        %v2695 = vpop.f32.mrf.mxu0
        %v2696 = vadd.f32 %v1461, %v2695
        %v2697 = vpop.f32.mrf.mxu0
        %v2698 = vadd.f32 %v1466, %v2697
        %2699 = vmatmul.bf16.gmra.mxu0 %v2130
        %v2700 = vpop.f32.mrf.mxu0
        %v2701 = vadd.f32 %v1471, %v2700
        %v2702 = vpop.f32.mrf.mxu0
        %v2703 = vadd.f32 %v1476, %v2702
        %2704 = vmatmul.bf16.gmra.mxu0 %v2131
        %v2705 = vpop.f32.mrf.mxu0
        %v2706 = vadd.f32 %v1481, %v2705
        %v2707 = vpop.f32.mrf.mxu0
        %v2708 = vadd.f32 %v1486, %v2707
        %2709 = vmatmul.bf16.gmra.mxu0 %v2132
        %v2710 = vpop.f32.mrf.mxu0
        %v2711 = vadd.f32 %v1491, %v2710
        %v2712 = vpop.f32.mrf.mxu0
        %v2713 = vadd.f32 %v1496, %v2712
        %2714 = vmatmul.bf16.gmra.mxu0 %v2133
        %v2715 = vpop.f32.mrf.mxu0
        %v2716 = vadd.f32 %v1501, %v2715
        %v2717 = vpop.f32.mrf.mxu0
        %v2718 = vadd.f32 %v1506, %v2717
        %2719 = vmatmul.bf16.gmra.mxu0 %v2134
        %v2720 = vpop.f32.mrf.mxu0
        %v2721 = vadd.f32 %v1511, %v2720
        %v2722 = vpop.f32.mrf.mxu0
        %v2723 = vadd.f32 %v1516, %v2722
        %2724 = vmatmul.bf16.gmra.mxu0 %v2135
        %v2725 = vpop.f32.mrf.mxu0
        %v2726 = vadd.f32 %v1521, %v2725
        %v2727 = vpop.f32.mrf.mxu0
        %v2728 = vadd.f32 %v1526, %v2727
        %2729 = vmatmul.bf16.gmra.mxu0 %v2136
        %v2730 = vpop.f32.mrf.mxu0
        %v2731 = vadd.f32 %v1531, %v2730
        %v2732 = vpop.f32.mrf.mxu0
        %v2733 = vadd.f32 %v1536, %v2732
        %2734 = vmatmul.bf16.gmra.mxu0 %v2137
        %v2735 = vpop.f32.mrf.mxu0
        %v2736 = vadd.f32 %v1541, %v2735
        %v2737 = vpop.f32.mrf.mxu0
        %v2738 = vadd.f32 %v1546, %v2737
        %2739 = vmatmul.bf16.gmra.mxu0 %v2138
        %v2740 = vpop.f32.mrf.mxu0
        %v2741 = vadd.f32 %v1551, %v2740
        %v2742 = vpop.f32.mrf.mxu0
        %v2743 = vadd.f32 %v1556, %v2742
        %2744 = vmatmul.bf16.gmra.mxu0 %v2139
        %v2745 = vpop.f32.mrf.mxu0
        %v2746 = vadd.f32 %v1561, %v2745
        %v2747 = vpop.f32.mrf.mxu0
        %v2748 = vadd.f32 %v1566, %v2747
        %2749 = vmatmul.bf16.gmra.mxu0 %v2140
        %v2750 = vpop.f32.mrf.mxu0
        %v2751 = vadd.f32 %v1571, %v2750
        %v2752 = vpop.f32.mrf.mxu0
        %v2753 = vadd.f32 %v1576, %v2752
        %2754 = vmatmul.bf16.gmra.mxu0 %v2141
        %v2755 = vpop.f32.mrf.mxu0
        %v2756 = vadd.f32 %v1581, %v2755
        %v2757 = vpop.f32.mrf.mxu0
        %v2758 = vadd.f32 %v1586, %v2757
        %2759 = vmatmul.bf16.gmra.mxu0 %v2142
        %v2760 = vpop.f32.mrf.mxu0
        %v2761 = vadd.f32 %v1591, %v2760
        %v2762 = vpop.f32.mrf.mxu0
        %v2763 = vadd.f32 %v1596, %v2762
        %2764 = vmatmul.bf16.gmra.mxu0 %v2143
        %v2765 = vpop.f32.mrf.mxu0
        %v2766 = vadd.f32 %v1601, %v2765
        %v2767 = vpop.f32.mrf.mxu0
        %v2768 = vadd.f32 %v1606, %v2767
        %2769 = vmatmul.bf16.gmra.mxu0 %v2144
        %v2770 = vpop.f32.mrf.mxu0
        %v2771 = vadd.f32 %v1611, %v2770
        %v2772 = vpop.f32.mrf.mxu0
        %v2773 = vadd.f32 %v1616, %v2772
        %2774 = vmatmul.bf16.gmra.mxu0 %v2145
        %v2775 = vpop.f32.mrf.mxu0
        %v2776 = vadd.f32 %v1621, %v2775
        %v2777 = vpop.f32.mrf.mxu0
        %v2778 = vadd.f32 %v1626, %v2777
        %2779 = vmatmul.bf16.gmra.mxu0 %v2146
        %v2780 = vpop.f32.mrf.mxu0
        %v2781 = vadd.f32 %v1631, %v2780
        %v2782 = vpop.f32.mrf.mxu0
        %v2783 = vadd.f32 %v1636, %v2782
        %2784 = vmatmul.bf16.gmra.mxu0 %v2147
        %v2785 = vpop.f32.mrf.mxu0
        %v2786 = vadd.f32 %v1641, %v2785
        %v2787 = vpop.f32.mrf.mxu0
        %v2788 = vadd.f32 %v1646, %v2787
        %2789 = vmatmul.bf16.gmra.mxu0 %v2148
        %v2790 = vpop.f32.mrf.mxu0
        %v2791 = vadd.f32 %v1651, %v2790
        %v2792 = vpop.f32.mrf.mxu0
        %v2793 = vadd.f32 %v1656, %v2792
        %2794 = vmatmul.bf16.gmra.mxu0 %v2149
        %v2795 = vpop.f32.mrf.mxu0
        %v2796 = vadd.f32 %v1661, %v2795
        %v2797 = vpop.f32.mrf.mxu0
        %v2798 = vadd.f32 %v1666, %v2797
        %2799 = vmatmul.bf16.gmra.mxu0 %v2150
        %v2800 = vpop.f32.mrf.mxu0
        %v2801 = vadd.f32 %v1671, %v2800
        %v2802 = vpop.f32.mrf.mxu0
        %v2803 = vadd.f32 %v1676, %v2802
        %2804 = vmatmul.bf16.gmra.mxu0 %v2151
        %v2805 = vpop.f32.mrf.mxu0
        %v2806 = vadd.f32 %v1681, %v2805
        %v2807 = vpop.f32.mrf.mxu0
        %v2808 = vadd.f32 %v1686, %v2807
        %2809 = vmatmul.bf16.gmra.mxu0 %v2152
        %v2810 = vpop.f32.mrf.mxu0
        %v2811 = vadd.f32 %v1691, %v2810
        %v2812 = vpop.f32.mrf.mxu0
        %v2813 = vadd.f32 %v1696, %v2812
        %2814 = vmatmul.bf16.gmra.mxu0 %v2153
        %v2815 = vpop.f32.mrf.mxu0
        %v2816 = vadd.f32 %v1701, %v2815
        %v2817 = vpop.f32.mrf.mxu0
        %v2818 = vadd.f32 %v1706, %v2817
        %2819 = vmatmul.bf16.gmra.mxu0 %v2154
        %v2820 = vpop.f32.mrf.mxu0
        %v2821 = vadd.f32 %v1711, %v2820
        %v2822 = vpop.f32.mrf.mxu0
        %v2823 = vadd.f32 %v1716, %v2822
        %2824 = vmatmul.bf16.gmra.mxu0 %v2155
        %v2825 = vpop.f32.mrf.mxu0
        %v2826 = vadd.f32 %v1721, %v2825
        %v2827 = vpop.f32.mrf.mxu0
        %v2828 = vadd.f32 %v1726, %v2827
        %2829 = vmatmul.bf16.gmra.mxu0 %v2156
        %v2830 = vpop.f32.mrf.mxu0
        %v2831 = vadd.f32 %v1731, %v2830
        %v2832 = vpop.f32.mrf.mxu0
        %v2833 = vadd.f32 %v1736, %v2832
        %2834 = vmatmul.bf16.gmra.mxu0 %v2157
        %v2835 = vpop.f32.mrf.mxu0
        %v2836 = vadd.f32 %v1741, %v2835
        %v2837 = vpop.f32.mrf.mxu0
        %v2838 = vadd.f32 %v1746, %v2837
        %2839 = vmatmul.bf16.gmra.mxu0 %v2158
        %v2840 = vpop.f32.mrf.mxu0
        %v2841 = vadd.f32 %v1751, %v2840
        %v2842 = vpop.f32.mrf.mxu0
        %v2843 = vadd.f32 %v1756, %v2842
        %2844 = vmatmul.bf16.gmra.mxu0 %v2159
        %v2845 = vpop.f32.mrf.mxu0
        %v2846 = vadd.f32 %v1761, %v2845
        %v2847 = vpop.f32.mrf.mxu0
        %v2848 = vadd.f32 %v1766, %v2847
        %2849 = vmatmul.bf16.gmra.mxu0 %v2160
        %v2850 = vpop.f32.mrf.mxu0
        %v2851 = vadd.f32 %v1771, %v2850
        %v2852 = vpop.f32.mrf.mxu0
        %v2853 = vadd.f32 %v1776, %v2852
        %2854 = vmatmul.bf16.gmra.mxu0 %v2161
        %v2855 = vpop.f32.mrf.mxu0
        %v2856 = vadd.f32 %v1781, %v2855
        %v2857 = vpop.f32.mrf.mxu0
        %v2858 = vadd.f32 %v1786, %v2857
        %2859 = vmatmul.bf16.gmra.mxu0 %v2162
        %v2860 = vpop.f32.mrf.mxu0
        %v2861 = vadd.f32 %v1791, %v2860
        %v2862 = vpop.f32.mrf.mxu0
        %v2863 = vadd.f32 %v1796, %v2862
        %2864 = vmatmul.bf16.gmra.mxu0 %v2163
        %v2865 = vpop.f32.mrf.mxu0
        %v2866 = vadd.f32 %v1801, %v2865
        %v2867 = vpop.f32.mrf.mxu0
        %v2868 = vadd.f32 %v1806, %v2867
        %2869 = vmatmul.bf16.gmra.mxu0 %v2164
        %v2870 = vpop.f32.mrf.mxu0
        %v2871 = vadd.f32 %v1811, %v2870
        %v2872 = vpop.f32.mrf.mxu0
        %v2873 = vadd.f32 %v1816, %v2872
        %2874 = vmatmul.bf16.gmra.mxu0 %v2165
        %v2875 = vpop.f32.mrf.mxu0
        %v2876 = vadd.f32 %v1821, %v2875
        %v2877 = vpop.f32.mrf.mxu0
        %v2878 = vadd.f32 %v1826, %v2877
        %2879 = vmatmul.bf16.gmra.mxu0 %v2166
        %v2880 = vpop.f32.mrf.mxu0
        %v2881 = vadd.f32 %v1831, %v2880
        %v2882 = vpop.f32.mrf.mxu0
        %v2883 = vadd.f32 %v1836, %v2882
        %2884 = vmatmul.bf16.gmra.mxu0 %v2167
        %v2885 = vpop.f32.mrf.mxu0
        %v2886 = vadd.f32 %v1841, %v2885
        %v2887 = vpop.f32.mrf.mxu0
        %v2888 = vadd.f32 %v1846, %v2887
        %2889 = vdwg.mxu0
        %v2890 = vmax.f32 %v2242, 0.0
        %v2891 = vmax.f32 %v2571, 0.0
        %v2892 = vmax.f32 %v2244, 0.0
        %v2893 = vmax.f32 %v2573, 0.0
        %v2894 = vmax.f32 %v2247, 0.0
        %v2895 = vmax.f32 %v2576, 0.0
        %v2896 = vmax.f32 %v2249, 0.0
        %v2897 = vmax.f32 %v2578, 0.0
        %v2898 = vmax.f32 %v2252, 0.0
        %v2899 = vmax.f32 %v2581, 0.0
        %v2900 = vmax.f32 %v2254, 0.0
        %v2901 = vmax.f32 %v2583, 0.0
        %v2902 = vmax.f32 %v2257, 0.0
        %v2903 = vmax.f32 %v2586, 0.0
        %v2904 = vmax.f32 %v2259, 0.0
        %v2905 = vmax.f32 %v2588, 0.0
        %v2906 = vmax.f32 %v2262, 0.0
        %v2907 = vmax.f32 %v2591, 0.0
        %v2908 = vmax.f32 %v2264, 0.0
        %v2909 = vmax.f32 %v2593, 0.0
        %v2910 = vmax.f32 %v2267, 0.0
        %v2911 = vmax.f32 %v2596, 0.0
        %v2912 = vmax.f32 %v2269, 0.0
        %v2913 = vmax.f32 %v2598, 0.0
        %v2914 = vmax.f32 %v2272, 0.0
        %v2915 = vmax.f32 %v2601, 0.0
        %v2916 = vmax.f32 %v2274, 0.0
        %v2917 = vmax.f32 %v2603, 0.0
        %v2918 = vmax.f32 %v2277, 0.0
        %v2919 = vmax.f32 %v2606, 0.0
        %v2920 = vmax.f32 %v2279, 0.0
        %v2921 = vmax.f32 %v2608, 0.0
        %v2922 = vmax.f32 %v2282, 0.0
        %v2923 = vmax.f32 %v2611, 0.0
        %v2924 = vmax.f32 %v2284, 0.0
        %v2925 = vmax.f32 %v2613, 0.0
        %v2926 = vmax.f32 %v2287, 0.0
        %v2927 = vmax.f32 %v2616, 0.0
        %v2928 = vmax.f32 %v2289, 0.0
        %v2929 = vmax.f32 %v2618, 0.0
        %v2930 = vmax.f32 %v2292, 0.0
        %v2931 = vmax.f32 %v2621, 0.0
        %v2932 = vmax.f32 %v2294, 0.0
        %v2933 = vmax.f32 %v2623, 0.0
        %v2934 = vmax.f32 %v2297, 0.0
        %v2935 = vmax.f32 %v2626, 0.0
        %v2936 = vmax.f32 %v2299, 0.0
        %v2937 = vmax.f32 %v2628, 0.0
        %v2938 = vmax.f32 %v2302, 0.0
        %v2939 = vmax.f32 %v2631, 0.0
        %v2940 = vmax.f32 %v2304, 0.0
        %v2941 = vmax.f32 %v2633, 0.0
        %v2942 = vmax.f32 %v2307, 0.0
        %v2943 = vmax.f32 %v2636, 0.0
        %v2944 = vmax.f32 %v2309, 0.0
        %v2945 = vmax.f32 %v2638, 0.0
        %v2946 = vmax.f32 %v2312, 0.0
        %v2947 = vmax.f32 %v2641, 0.0
        %v2948 = vmax.f32 %v2314, 0.0
        %v2949 = vmax.f32 %v2643, 0.0
        %v2950 = vmax.f32 %v2317, 0.0
        %v2951 = vmax.f32 %v2646, 0.0
        %v2952 = vmax.f32 %v2319, 0.0
        %v2953 = vmax.f32 %v2648, 0.0
        %v2954 = vmax.f32 %v2322, 0.0
        %v2955 = vmax.f32 %v2651, 0.0
        %v2956 = vmax.f32 %v2324, 0.0
        %v2957 = vmax.f32 %v2653, 0.0
        %v2958 = vmax.f32 %v2327, 0.0
        %v2959 = vmax.f32 %v2656, 0.0
        %v2960 = vmax.f32 %v2329, 0.0
        %v2961 = vmax.f32 %v2658, 0.0
        %v2962 = vmax.f32 %v2332, 0.0
        %v2963 = vmax.f32 %v2661, 0.0
        %v2964 = vmax.f32 %v2334, 0.0
        %v2965 = vmax.f32 %v2663, 0.0
        %v2966 = vmax.f32 %v2337, 0.0
        %v2967 = vmax.f32 %v2666, 0.0
        %v2968 = vmax.f32 %v2339, 0.0
        %v2969 = vmax.f32 %v2668, 0.0
        %v2970 = vmax.f32 %v2342, 0.0
        %v2971 = vmax.f32 %v2671, 0.0
        %v2972 = vmax.f32 %v2344, 0.0
        %v2973 = vmax.f32 %v2673, 0.0
        %v2974 = vmax.f32 %v2347, 0.0
        %v2975 = vmax.f32 %v2676, 0.0
        %v2976 = vmax.f32 %v2349, 0.0
        %v2977 = vmax.f32 %v2678, 0.0
        %v2978 = vmax.f32 %v2352, 0.0
        %v2979 = vmax.f32 %v2681, 0.0
        %v2980 = vmax.f32 %v2354, 0.0
        %v2981 = vmax.f32 %v2683, 0.0
        %v2982 = vmax.f32 %v2357, 0.0
        %v2983 = vmax.f32 %v2686, 0.0
        %v2984 = vmax.f32 %v2359, 0.0
        %v2985 = vmax.f32 %v2688, 0.0
        %v2986 = vmax.f32 %v2362, 0.0
        %v2987 = vmax.f32 %v2691, 0.0
        %v2988 = vmax.f32 %v2364, 0.0
        %v2989 = vmax.f32 %v2693, 0.0
        %v2990 = vmax.f32 %v2367, 0.0
        %v2991 = vmax.f32 %v2696, 0.0
        %v2992 = vmax.f32 %v2369, 0.0
        %v2993 = vmax.f32 %v2698, 0.0
        %v2994 = vmax.f32 %v2372, 0.0
        %v2995 = vmax.f32 %v2701, 0.0
        %v2996 = vmax.f32 %v2374, 0.0
        %v2997 = vmax.f32 %v2703, 0.0
        %v2998 = vmax.f32 %v2377, 0.0
        %v2999 = vmax.f32 %v2706, 0.0
        %v3000 = vmax.f32 %v2379, 0.0
        %v3001 = vmax.f32 %v2708, 0.0
        %v3002 = vmax.f32 %v2382, 0.0
        %v3003 = vmax.f32 %v2711, 0.0
        %v3004 = vmax.f32 %v2384, 0.0
        %v3005 = vmax.f32 %v2713, 0.0
        %v3006 = vmax.f32 %v2387, 0.0
        %v3007 = vmax.f32 %v2716, 0.0
        %v3008 = vmax.f32 %v2389, 0.0
        %v3009 = vmax.f32 %v2718, 0.0
        %v3010 = vmax.f32 %v2392, 0.0
        %v3011 = vmax.f32 %v2721, 0.0
        %v3012 = vmax.f32 %v2394, 0.0
        %v3013 = vmax.f32 %v2723, 0.0
        %v3014 = vmax.f32 %v2397, 0.0
        %v3015 = vmax.f32 %v2726, 0.0
        %v3016 = vmax.f32 %v2399, 0.0
        %v3017 = vmax.f32 %v2728, 0.0
        %v3018 = vmax.f32 %v2402, 0.0
        %v3019 = vmax.f32 %v2731, 0.0
        %v3020 = vmax.f32 %v2404, 0.0
        %v3021 = vmax.f32 %v2733, 0.0
        %v3022 = vmax.f32 %v2407, 0.0
        %v3023 = vmax.f32 %v2736, 0.0
        %v3024 = vmax.f32 %v2409, 0.0
        %v3025 = vmax.f32 %v2738, 0.0
        %v3026 = vmax.f32 %v2412, 0.0
        %v3027 = vmax.f32 %v2741, 0.0
        %v3028 = vmax.f32 %v2414, 0.0
        %v3029 = vmax.f32 %v2743, 0.0
        %v3030 = vmax.f32 %v2417, 0.0
        %v3031 = vmax.f32 %v2746, 0.0
        %v3032 = vmax.f32 %v2419, 0.0
        %v3033 = vmax.f32 %v2748, 0.0
        %v3034 = vmax.f32 %v2422, 0.0
        %v3035 = vmax.f32 %v2751, 0.0
        %v3036 = vmax.f32 %v2424, 0.0
        %v3037 = vmax.f32 %v2753, 0.0
        %v3038 = vmax.f32 %v2427, 0.0
        %v3039 = vmax.f32 %v2756, 0.0
        %v3040 = vmax.f32 %v2429, 0.0
        %v3041 = vmax.f32 %v2758, 0.0
        %v3042 = vmax.f32 %v2432, 0.0
        %v3043 = vmax.f32 %v2761, 0.0
        %v3044 = vmax.f32 %v2434, 0.0
        %v3045 = vmax.f32 %v2763, 0.0
        %v3046 = vmax.f32 %v2437, 0.0
        %v3047 = vmax.f32 %v2766, 0.0
        %v3048 = vmax.f32 %v2439, 0.0
        %v3049 = vmax.f32 %v2768, 0.0
        %v3050 = vmax.f32 %v2442, 0.0
        %v3051 = vmax.f32 %v2771, 0.0
        %v3052 = vmax.f32 %v2444, 0.0
        %v3053 = vmax.f32 %v2773, 0.0
        %v3054 = vmax.f32 %v2447, 0.0
        %v3055 = vmax.f32 %v2776, 0.0
        %v3056 = vmax.f32 %v2449, 0.0
        %v3057 = vmax.f32 %v2778, 0.0
        %v3058 = vmax.f32 %v2452, 0.0
        %v3059 = vmax.f32 %v2781, 0.0
        %v3060 = vmax.f32 %v2454, 0.0
        %v3061 = vmax.f32 %v2783, 0.0
        %v3062 = vmax.f32 %v2457, 0.0
        %v3063 = vmax.f32 %v2786, 0.0
        %v3064 = vmax.f32 %v2459, 0.0
        %v3065 = vmax.f32 %v2788, 0.0
        %v3066 = vmax.f32 %v2462, 0.0
        %v3067 = vmax.f32 %v2791, 0.0
        %v3068 = vmax.f32 %v2464, 0.0
        %v3069 = vmax.f32 %v2793, 0.0
        %v3070 = vmax.f32 %v2467, 0.0
        %v3071 = vmax.f32 %v2796, 0.0
        %v3072 = vmax.f32 %v2469, 0.0
        %v3073 = vmax.f32 %v2798, 0.0
        %v3074 = vmax.f32 %v2472, 0.0
        %v3075 = vmax.f32 %v2801, 0.0
        %v3076 = vmax.f32 %v2474, 0.0
        %v3077 = vmax.f32 %v2803, 0.0
        %v3078 = vmax.f32 %v2477, 0.0
        %v3079 = vmax.f32 %v2806, 0.0
        %v3080 = vmax.f32 %v2479, 0.0
        %v3081 = vmax.f32 %v2808, 0.0
        %v3082 = vmax.f32 %v2482, 0.0
        %v3083 = vmax.f32 %v2811, 0.0
        %v3084 = vmax.f32 %v2484, 0.0
        %v3085 = vmax.f32 %v2813, 0.0
        %v3086 = vmax.f32 %v2487, 0.0
        %v3087 = vmax.f32 %v2816, 0.0
        %v3088 = vmax.f32 %v2489, 0.0
        %v3089 = vmax.f32 %v2818, 0.0
        %v3090 = vmax.f32 %v2492, 0.0
        %v3091 = vmax.f32 %v2821, 0.0
        %v3092 = vmax.f32 %v2494, 0.0
        %v3093 = vmax.f32 %v2823, 0.0
        %v3094 = vmax.f32 %v2497, 0.0
        %v3095 = vmax.f32 %v2826, 0.0
        %v3096 = vmax.f32 %v2499, 0.0
        %v3097 = vmax.f32 %v2828, 0.0
        %v3098 = vmax.f32 %v2502, 0.0
        %v3099 = vmax.f32 %v2831, 0.0
        %v3100 = vmax.f32 %v2504, 0.0
        %v3101 = vmax.f32 %v2833, 0.0
        %v3102 = vmax.f32 %v2507, 0.0
        %v3103 = vmax.f32 %v2836, 0.0
        %v3104 = vmax.f32 %v2509, 0.0
        %v3105 = vmax.f32 %v2838, 0.0
        %v3106 = vmax.f32 %v2512, 0.0
        %v3107 = vmax.f32 %v2841, 0.0
        %v3108 = vmax.f32 %v2514, 0.0
        %v3109 = vmax.f32 %v2843, 0.0
        %v3110 = vmax.f32 %v2517, 0.0
        %v3111 = vmax.f32 %v2846, 0.0
        %v3112 = vmax.f32 %v2519, 0.0
        %v3113 = vmax.f32 %v2848, 0.0
        %v3114 = vmax.f32 %v2522, 0.0
        %v3115 = vmax.f32 %v2851, 0.0
        %v3116 = vmax.f32 %v2524, 0.0
        %v3117 = vmax.f32 %v2853, 0.0
        %v3118 = vmax.f32 %v2527, 0.0
        %v3119 = vmax.f32 %v2856, 0.0
        %v3120 = vmax.f32 %v2529, 0.0
        %v3121 = vmax.f32 %v2858, 0.0
        %v3122 = vmax.f32 %v2532, 0.0
        %v3123 = vmax.f32 %v2861, 0.0
        %v3124 = vmax.f32 %v2534, 0.0
        %v3125 = vmax.f32 %v2863, 0.0
        %v3126 = vmax.f32 %v2537, 0.0
        %v3127 = vmax.f32 %v2866, 0.0
        %v3128 = vmax.f32 %v2539, 0.0
        %v3129 = vmax.f32 %v2868, 0.0
        %v3130 = vmax.f32 %v2542, 0.0
        %v3131 = vmax.f32 %v2871, 0.0
        %v3132 = vmax.f32 %v2544, 0.0
        %v3133 = vmax.f32 %v2873, 0.0
        %v3134 = vmax.f32 %v2547, 0.0
        %v3135 = vmax.f32 %v2876, 0.0
        %v3136 = vmax.f32 %v2549, 0.0
        %v3137 = vmax.f32 %v2878, 0.0
        %v3138 = vmax.f32 %v2552, 0.0
        %v3139 = vmax.f32 %v2881, 0.0
        %v3140 = vmax.f32 %v2554, 0.0
        %v3141 = vmax.f32 %v2883, 0.0
        %v3142 = vmax.f32 %v2557, 0.0
        %v3143 = vmax.f32 %v2886, 0.0
        %v3144 = vmax.f32 %v2559, 0.0
        %v3145 = vmax.f32 %v2888, 0.0
        %v3146 = vmax.f32 %v2890, %v2891
        %3147 = vmax.xlane.f32.xlu0 %v3146
        %v3148 = vpop.xlane.xlu0 %3147
        %v3149 = vmax.f32 %v2892, %v2893
        %3150 = vmax.xlane.f32.xlu0 %v3149
        %v3151 = vpop.xlane.xlu0 %3150
        %v3152 = vmax.f32 %v2894, %v2895
        %3153 = vmax.xlane.f32.xlu0 %v3152
        %v3154 = vpop.xlane.xlu0 %3153
        %v3155 = vmax.f32 %v2896, %v2897
        %3156 = vmax.xlane.f32.xlu0 %v3155
        %v3157 = vpop.xlane.xlu0 %3156
        %v3158 = vmax.f32 %v2898, %v2899
        %3159 = vmax.xlane.f32.xlu0 %v3158
        %v3160 = vpop.xlane.xlu0 %3159
        %v3161 = vmax.f32 %v2900, %v2901
        %3162 = vmax.xlane.f32.xlu0 %v3161
        %v3163 = vpop.xlane.xlu0 %3162
        %v3164 = vmax.f32 %v2902, %v2903
        %3165 = vmax.xlane.f32.xlu0 %v3164
        %v3166 = vpop.xlane.xlu0 %3165
        %v3167 = vmax.f32 %v2904, %v2905
        %3168 = vmax.xlane.f32.xlu0 %v3167
        %v3169 = vpop.xlane.xlu0 %3168
        %v3170 = vmax.f32 %v2906, %v2907
        %3171 = vmax.xlane.f32.xlu0 %v3170
        %v3172 = vpop.xlane.xlu0 %3171
        %v3173 = vmax.f32 %v2908, %v2909
        %3174 = vmax.xlane.f32.xlu0 %v3173
        %v3175 = vpop.xlane.xlu0 %3174
        %v3176 = vmax.f32 %v2910, %v2911
        %3177 = vmax.xlane.f32.xlu0 %v3176
        %v3178 = vpop.xlane.xlu0 %3177
        %v3179 = vmax.f32 %v2912, %v2913
        %3180 = vmax.xlane.f32.xlu0 %v3179
        %v3181 = vpop.xlane.xlu0 %3180
        %v3182 = vmax.f32 %v2914, %v2915
        %3183 = vmax.xlane.f32.xlu0 %v3182
        %v3184 = vpop.xlane.xlu0 %3183
        %v3185 = vmax.f32 %v2916, %v2917
        %3186 = vmax.xlane.f32.xlu0 %v3185
        %v3187 = vpop.xlane.xlu0 %3186
        %v3188 = vmax.f32 %v2918, %v2919
        %3189 = vmax.xlane.f32.xlu0 %v3188
        %v3190 = vpop.xlane.xlu0 %3189
        %v3191 = vmax.f32 %v2920, %v2921
        %3192 = vmax.xlane.f32.xlu0 %v3191
        %v3193 = vpop.xlane.xlu0 %3192
        %v3194 = vmax.f32 %v2922, %v2923
        %3195 = vmax.xlane.f32.xlu0 %v3194
        %v3196 = vpop.xlane.xlu0 %3195
        %v3197 = vmax.f32 %v2924, %v2925
        %3198 = vmax.xlane.f32.xlu0 %v3197
        %v3199 = vpop.xlane.xlu0 %3198
        %v3200 = vmax.f32 %v2926, %v2927
        %3201 = vmax.xlane.f32.xlu0 %v3200
        %v3202 = vpop.xlane.xlu0 %3201
        %v3203 = vmax.f32 %v2928, %v2929
        %3204 = vmax.xlane.f32.xlu0 %v3203
        %v3205 = vpop.xlane.xlu0 %3204
        %v3206 = vmax.f32 %v2930, %v2931
        %3207 = vmax.xlane.f32.xlu0 %v3206
        %v3208 = vpop.xlane.xlu0 %3207
        %v3209 = vmax.f32 %v2932, %v2933
        %3210 = vmax.xlane.f32.xlu0 %v3209
        %v3211 = vpop.xlane.xlu0 %3210
        %v3212 = vmax.f32 %v2934, %v2935
        %3213 = vmax.xlane.f32.xlu0 %v3212
        %v3214 = vpop.xlane.xlu0 %3213
        %v3215 = vmax.f32 %v2936, %v2937
        %3216 = vmax.xlane.f32.xlu0 %v3215
        %v3217 = vpop.xlane.xlu0 %3216
        %v3218 = vmax.f32 %v2938, %v2939
        %3219 = vmax.xlane.f32.xlu0 %v3218
        %v3220 = vpop.xlane.xlu0 %3219
        %v3221 = vmax.f32 %v2940, %v2941
        %3222 = vmax.xlane.f32.xlu0 %v3221
        %v3223 = vpop.xlane.xlu0 %3222
        %v3224 = vmax.f32 %v2942, %v2943
        %3225 = vmax.xlane.f32.xlu0 %v3224
        %v3226 = vpop.xlane.xlu0 %3225
        %v3227 = vmax.f32 %v2944, %v2945
        %3228 = vmax.xlane.f32.xlu0 %v3227
        %v3229 = vpop.xlane.xlu0 %3228
        %v3230 = vmax.f32 %v2946, %v2947
        %3231 = vmax.xlane.f32.xlu0 %v3230
        %v3232 = vpop.xlane.xlu0 %3231
        %v3233 = vmax.f32 %v2948, %v2949
        %3234 = vmax.xlane.f32.xlu0 %v3233
        %v3235 = vpop.xlane.xlu0 %3234
        %v3236 = vmax.f32 %v2950, %v2951
        %3237 = vmax.xlane.f32.xlu0 %v3236
        %v3238 = vpop.xlane.xlu0 %3237
        %v3239 = vmax.f32 %v2952, %v2953
        %3240 = vmax.xlane.f32.xlu0 %v3239
        %v3241 = vpop.xlane.xlu0 %3240
        %v3242 = vmax.f32 %v2954, %v2955
        %3243 = vmax.xlane.f32.xlu0 %v3242
        %v3244 = vpop.xlane.xlu0 %3243
        %v3245 = vmax.f32 %v2956, %v2957
        %3246 = vmax.xlane.f32.xlu0 %v3245
        %v3247 = vpop.xlane.xlu0 %3246
        %v3248 = vmax.f32 %v2958, %v2959
        %3249 = vmax.xlane.f32.xlu0 %v3248
        %v3250 = vpop.xlane.xlu0 %3249
        %v3251 = vmax.f32 %v2960, %v2961
        %3252 = vmax.xlane.f32.xlu0 %v3251
        %v3253 = vpop.xlane.xlu0 %3252
        %v3254 = vmax.f32 %v2962, %v2963
        %3255 = vmax.xlane.f32.xlu0 %v3254
        %v3256 = vpop.xlane.xlu0 %3255
        %v3257 = vmax.f32 %v2964, %v2965
        %3258 = vmax.xlane.f32.xlu0 %v3257
        %v3259 = vpop.xlane.xlu0 %3258
        %v3260 = vmax.f32 %v2966, %v2967
        %3261 = vmax.xlane.f32.xlu0 %v3260
        %v3262 = vpop.xlane.xlu0 %3261
        %v3263 = vmax.f32 %v2968, %v2969
        %3264 = vmax.xlane.f32.xlu0 %v3263
        %v3265 = vpop.xlane.xlu0 %3264
        %v3266 = vmax.f32 %v2970, %v2971
        %3267 = vmax.xlane.f32.xlu0 %v3266
        %v3268 = vpop.xlane.xlu0 %3267
        %v3269 = vmax.f32 %v2972, %v2973
        %3270 = vmax.xlane.f32.xlu0 %v3269
        %v3271 = vpop.xlane.xlu0 %3270
        %v3272 = vmax.f32 %v2974, %v2975
        %3273 = vmax.xlane.f32.xlu0 %v3272
        %v3274 = vpop.xlane.xlu0 %3273
        %v3275 = vmax.f32 %v2976, %v2977
        %3276 = vmax.xlane.f32.xlu0 %v3275
        %v3277 = vpop.xlane.xlu0 %3276
        %v3278 = vmax.f32 %v2978, %v2979
        %3279 = vmax.xlane.f32.xlu0 %v3278
        %v3280 = vpop.xlane.xlu0 %3279
        %v3281 = vmax.f32 %v2980, %v2981
        %3282 = vmax.xlane.f32.xlu0 %v3281
        %v3283 = vpop.xlane.xlu0 %3282
        %v3284 = vmax.f32 %v2982, %v2983
        %3285 = vmax.xlane.f32.xlu0 %v3284
        %v3286 = vpop.xlane.xlu0 %3285
        %v3287 = vmax.f32 %v2984, %v2985
        %3288 = vmax.xlane.f32.xlu0 %v3287
        %v3289 = vpop.xlane.xlu0 %3288
        %v3290 = vmax.f32 %v2986, %v2987
        %3291 = vmax.xlane.f32.xlu0 %v3290
        %v3292 = vpop.xlane.xlu0 %3291
        %v3293 = vmax.f32 %v2988, %v2989
        %3294 = vmax.xlane.f32.xlu0 %v3293
        %v3295 = vpop.xlane.xlu0 %3294
        %v3296 = vmax.f32 %v2990, %v2991
        %3297 = vmax.xlane.f32.xlu0 %v3296
        %v3298 = vpop.xlane.xlu0 %3297
        %v3299 = vmax.f32 %v2992, %v2993
        %3300 = vmax.xlane.f32.xlu0 %v3299
        %v3301 = vpop.xlane.xlu0 %3300
        %v3302 = vmax.f32 %v2994, %v2995
        %3303 = vmax.xlane.f32.xlu0 %v3302
        %v3304 = vpop.xlane.xlu0 %3303
        %v3305 = vmax.f32 %v2996, %v2997
        %3306 = vmax.xlane.f32.xlu0 %v3305
        %v3307 = vpop.xlane.xlu0 %3306
        %v3308 = vmax.f32 %v2998, %v2999
        %3309 = vmax.xlane.f32.xlu0 %v3308
        %v3310 = vpop.xlane.xlu0 %3309
        %v3311 = vmax.f32 %v3000, %v3001
        %3312 = vmax.xlane.f32.xlu0 %v3311
        %v3313 = vpop.xlane.xlu0 %3312
        %v3314 = vmax.f32 %v3002, %v3003
        %3315 = vmax.xlane.f32.xlu0 %v3314
        %v3316 = vpop.xlane.xlu0 %3315
        %v3317 = vmax.f32 %v3004, %v3005
        %3318 = vmax.xlane.f32.xlu0 %v3317
        %v3319 = vpop.xlane.xlu0 %3318
        %v3320 = vmax.f32 %v3006, %v3007
        %3321 = vmax.xlane.f32.xlu0 %v3320
        %v3322 = vpop.xlane.xlu0 %3321
        %v3323 = vmax.f32 %v3008, %v3009
        %3324 = vmax.xlane.f32.xlu0 %v3323
        %v3325 = vpop.xlane.xlu0 %3324
        %v3326 = vmax.f32 %v3010, %v3011
        %3327 = vmax.xlane.f32.xlu0 %v3326
        %v3328 = vpop.xlane.xlu0 %3327
        %v3329 = vmax.f32 %v3012, %v3013
        %3330 = vmax.xlane.f32.xlu0 %v3329
        %v3331 = vpop.xlane.xlu0 %3330
        %v3332 = vmax.f32 %v3014, %v3015
        %3333 = vmax.xlane.f32.xlu0 %v3332
        %v3334 = vpop.xlane.xlu0 %3333
        %v3335 = vmax.f32 %v3016, %v3017
        %3336 = vmax.xlane.f32.xlu0 %v3335
        %v3337 = vpop.xlane.xlu0 %3336
        %v3338 = vmax.f32 %v3018, %v3019
        %3339 = vmax.xlane.f32.xlu0 %v3338
        %v3340 = vpop.xlane.xlu0 %3339
        %v3341 = vmax.f32 %v3020, %v3021
        %3342 = vmax.xlane.f32.xlu0 %v3341
        %v3343 = vpop.xlane.xlu0 %3342
        %v3344 = vmax.f32 %v3022, %v3023
        %3345 = vmax.xlane.f32.xlu0 %v3344
        %v3346 = vpop.xlane.xlu0 %3345
        %v3347 = vmax.f32 %v3024, %v3025
        %3348 = vmax.xlane.f32.xlu0 %v3347
        %v3349 = vpop.xlane.xlu0 %3348
        %v3350 = vmax.f32 %v3026, %v3027
        %3351 = vmax.xlane.f32.xlu0 %v3350
        %v3352 = vpop.xlane.xlu0 %3351
        %v3353 = vmax.f32 %v3028, %v3029
        %3354 = vmax.xlane.f32.xlu0 %v3353
        %v3355 = vpop.xlane.xlu0 %3354
        %v3356 = vmax.f32 %v3030, %v3031
        %3357 = vmax.xlane.f32.xlu0 %v3356
        %v3358 = vpop.xlane.xlu0 %3357
        %v3359 = vmax.f32 %v3032, %v3033
        %3360 = vmax.xlane.f32.xlu0 %v3359
        %v3361 = vpop.xlane.xlu0 %3360
        %v3362 = vmax.f32 %v3034, %v3035
        %3363 = vmax.xlane.f32.xlu0 %v3362
        %v3364 = vpop.xlane.xlu0 %3363
        %v3365 = vmax.f32 %v3036, %v3037
        %3366 = vmax.xlane.f32.xlu0 %v3365
        %v3367 = vpop.xlane.xlu0 %3366
        %v3368 = vmax.f32 %v3038, %v3039
        %3369 = vmax.xlane.f32.xlu0 %v3368
        %v3370 = vpop.xlane.xlu0 %3369
        %v3371 = vmax.f32 %v3040, %v3041
        %3372 = vmax.xlane.f32.xlu0 %v3371
        %v3373 = vpop.xlane.xlu0 %3372
        %v3374 = vmax.f32 %v3042, %v3043
        %3375 = vmax.xlane.f32.xlu0 %v3374
        %v3376 = vpop.xlane.xlu0 %3375
        %v3377 = vmax.f32 %v3044, %v3045
        %3378 = vmax.xlane.f32.xlu0 %v3377
        %v3379 = vpop.xlane.xlu0 %3378
        %v3380 = vmax.f32 %v3046, %v3047
        %3381 = vmax.xlane.f32.xlu0 %v3380
        %v3382 = vpop.xlane.xlu0 %3381
        %v3383 = vmax.f32 %v3048, %v3049
        %3384 = vmax.xlane.f32.xlu0 %v3383
        %v3385 = vpop.xlane.xlu0 %3384
        %v3386 = vmax.f32 %v3050, %v3051
        %3387 = vmax.xlane.f32.xlu0 %v3386
        %v3388 = vpop.xlane.xlu0 %3387
        %v3389 = vmax.f32 %v3052, %v3053
        %3390 = vmax.xlane.f32.xlu0 %v3389
        %v3391 = vpop.xlane.xlu0 %3390
        %v3392 = vmax.f32 %v3054, %v3055
        %3393 = vmax.xlane.f32.xlu0 %v3392
        %v3394 = vpop.xlane.xlu0 %3393
        %v3395 = vmax.f32 %v3056, %v3057
        %3396 = vmax.xlane.f32.xlu0 %v3395
        %v3397 = vpop.xlane.xlu0 %3396
        %v3398 = vmax.f32 %v3058, %v3059
        %3399 = vmax.xlane.f32.xlu0 %v3398
        %v3400 = vpop.xlane.xlu0 %3399
        %v3401 = vmax.f32 %v3060, %v3061
        %3402 = vmax.xlane.f32.xlu0 %v3401
        %v3403 = vpop.xlane.xlu0 %3402
        %v3404 = vmax.f32 %v3062, %v3063
        %3405 = vmax.xlane.f32.xlu0 %v3404
        %v3406 = vpop.xlane.xlu0 %3405
        %v3407 = vmax.f32 %v3064, %v3065
        %3408 = vmax.xlane.f32.xlu0 %v3407
        %v3409 = vpop.xlane.xlu0 %3408
        %v3410 = vmax.f32 %v3066, %v3067
        %3411 = vmax.xlane.f32.xlu0 %v3410
        %v3412 = vpop.xlane.xlu0 %3411
        %v3413 = vmax.f32 %v3068, %v3069
        %3414 = vmax.xlane.f32.xlu0 %v3413
        %v3415 = vpop.xlane.xlu0 %3414
        %v3416 = vmax.f32 %v3070, %v3071
        %3417 = vmax.xlane.f32.xlu0 %v3416
        %v3418 = vpop.xlane.xlu0 %3417
        %v3419 = vmax.f32 %v3072, %v3073
        %3420 = vmax.xlane.f32.xlu0 %v3419
        %v3421 = vpop.xlane.xlu0 %3420
        %v3422 = vmax.f32 %v3074, %v3075
        %3423 = vmax.xlane.f32.xlu0 %v3422
        %v3424 = vpop.xlane.xlu0 %3423
        %v3425 = vmax.f32 %v3076, %v3077
        %3426 = vmax.xlane.f32.xlu0 %v3425
        %v3427 = vpop.xlane.xlu0 %3426
        %v3428 = vmax.f32 %v3078, %v3079
        %3429 = vmax.xlane.f32.xlu0 %v3428
        %v3430 = vpop.xlane.xlu0 %3429
        %v3431 = vmax.f32 %v3080, %v3081
        %3432 = vmax.xlane.f32.xlu0 %v3431
        %v3433 = vpop.xlane.xlu0 %3432
        %v3434 = vmax.f32 %v3082, %v3083
        %3435 = vmax.xlane.f32.xlu0 %v3434
        %v3436 = vpop.xlane.xlu0 %3435
        %v3437 = vmax.f32 %v3084, %v3085
        %3438 = vmax.xlane.f32.xlu0 %v3437
        %v3439 = vpop.xlane.xlu0 %3438
        %v3440 = vmax.f32 %v3086, %v3087
        %3441 = vmax.xlane.f32.xlu0 %v3440
        %v3442 = vpop.xlane.xlu0 %3441
        %v3443 = vmax.f32 %v3088, %v3089
        %3444 = vmax.xlane.f32.xlu0 %v3443
        %v3445 = vpop.xlane.xlu0 %3444
        %v3446 = vmax.f32 %v3090, %v3091
        %3447 = vmax.xlane.f32.xlu0 %v3446
        %v3448 = vpop.xlane.xlu0 %3447
        %v3449 = vmax.f32 %v3092, %v3093
        %3450 = vmax.xlane.f32.xlu0 %v3449
        %v3451 = vpop.xlane.xlu0 %3450
        %v3452 = vmax.f32 %v3094, %v3095
        %3453 = vmax.xlane.f32.xlu0 %v3452
        %v3454 = vpop.xlane.xlu0 %3453
        %v3455 = vmax.f32 %v3096, %v3097
        %3456 = vmax.xlane.f32.xlu0 %v3455
        %v3457 = vpop.xlane.xlu0 %3456
        %v3458 = vmax.f32 %v3098, %v3099
        %3459 = vmax.xlane.f32.xlu0 %v3458
        %v3460 = vpop.xlane.xlu0 %3459
        %v3461 = vmax.f32 %v3100, %v3101
        %3462 = vmax.xlane.f32.xlu0 %v3461
        %v3463 = vpop.xlane.xlu0 %3462
        %v3464 = vmax.f32 %v3102, %v3103
        %3465 = vmax.xlane.f32.xlu0 %v3464
        %v3466 = vpop.xlane.xlu0 %3465
        %v3467 = vmax.f32 %v3104, %v3105
        %3468 = vmax.xlane.f32.xlu0 %v3467
        %v3469 = vpop.xlane.xlu0 %3468
        %v3470 = vmax.f32 %v3106, %v3107
        %3471 = vmax.xlane.f32.xlu0 %v3470
        %v3472 = vpop.xlane.xlu0 %3471
        %v3473 = vmax.f32 %v3108, %v3109
        %3474 = vmax.xlane.f32.xlu0 %v3473
        %v3475 = vpop.xlane.xlu0 %3474
        %v3476 = vmax.f32 %v3110, %v3111
        %3477 = vmax.xlane.f32.xlu0 %v3476
        %v3478 = vpop.xlane.xlu0 %3477
        %v3479 = vmax.f32 %v3112, %v3113
        %3480 = vmax.xlane.f32.xlu0 %v3479
        %v3481 = vpop.xlane.xlu0 %3480
        %v3482 = vmax.f32 %v3114, %v3115
        %3483 = vmax.xlane.f32.xlu0 %v3482
        %v3484 = vpop.xlane.xlu0 %3483
        %v3485 = vmax.f32 %v3116, %v3117
        %3486 = vmax.xlane.f32.xlu0 %v3485
        %v3487 = vpop.xlane.xlu0 %3486
        %v3488 = vmax.f32 %v3118, %v3119
        %3489 = vmax.xlane.f32.xlu0 %v3488
        %v3490 = vpop.xlane.xlu0 %3489
        %v3491 = vmax.f32 %v3120, %v3121
        %3492 = vmax.xlane.f32.xlu0 %v3491
        %v3493 = vpop.xlane.xlu0 %3492
        %v3494 = vmax.f32 %v3122, %v3123
        %3495 = vmax.xlane.f32.xlu0 %v3494
        %v3496 = vpop.xlane.xlu0 %3495
        %v3497 = vmax.f32 %v3124, %v3125
        %3498 = vmax.xlane.f32.xlu0 %v3497
        %v3499 = vpop.xlane.xlu0 %3498
        %v3500 = vmax.f32 %v3126, %v3127
        %3501 = vmax.xlane.f32.xlu0 %v3500
        %v3502 = vpop.xlane.xlu0 %3501
        %v3503 = vmax.f32 %v3128, %v3129
        %3504 = vmax.xlane.f32.xlu0 %v3503
        %v3505 = vpop.xlane.xlu0 %3504
        %v3506 = vmax.f32 %v3130, %v3131
        %3507 = vmax.xlane.f32.xlu0 %v3506
        %v3508 = vpop.xlane.xlu0 %3507
        %v3509 = vmax.f32 %v3132, %v3133
        %3510 = vmax.xlane.f32.xlu0 %v3509
        %v3511 = vpop.xlane.xlu0 %3510
        %v3512 = vmax.f32 %v3134, %v3135
        %3513 = vmax.xlane.f32.xlu0 %v3512
        %v3514 = vpop.xlane.xlu0 %3513
        %v3515 = vmax.f32 %v3136, %v3137
        %3516 = vmax.xlane.f32.xlu0 %v3515
        %v3517 = vpop.xlane.xlu0 %3516
        %v3518 = vmax.f32 %v3138, %v3139
        %3519 = vmax.xlane.f32.xlu0 %v3518
        %v3520 = vpop.xlane.xlu0 %3519
        %v3521 = vmax.f32 %v3140, %v3141
        %3522 = vmax.xlane.f32.xlu0 %v3521
        %v3523 = vpop.xlane.xlu0 %3522
        %v3524 = vmax.f32 %v3142, %v3143
        %3525 = vmax.xlane.f32.xlu0 %v3524
        %v3526 = vpop.xlane.xlu0 %3525
        %v3527 = vmax.f32 %v3144, %v3145
        %3528 = vmax.xlane.f32.xlu0 %v3527
        %v3529 = vpop.xlane.xlu0 %3528
        %v3530 = vld [vmem:[%s317] sm:$0xff]
        %v3531 = vld [vmem:[%s317 + $0x8] sm:$0xff]
        %v3532 = vld [vmem:[%s317 + $0x10] sm:$0xff]
        %v3533 = vld [vmem:[%s317 + $0x18] sm:$0xff]
        %v3534 = vld [vmem:[%s317 + $0x20] sm:$0xff]
        %v3535 = vld [vmem:[%s317 + $0x28] sm:$0xff]
        %v3536 = vld [vmem:[%s317 + $0x30] sm:$0xff]
        %v3537 = vld [vmem:[%s317 + $0x38] sm:$0xff]
        %v3538 = vld [vmem:[%s317 + $0x40] sm:$0xff]
        %v3539 = vld [vmem:[%s317 + $0x48] sm:$0xff]
        %v3540 = vld [vmem:[%s317 + $0x50] sm:$0xff]
        %v3541 = vld [vmem:[%s317 + $0x58] sm:$0xff]
        %v3542 = vld [vmem:[%s317 + $0x60] sm:$0xff]
        %v3543 = vld [vmem:[%s317 + $0x68] sm:$0xff]
        %v3544 = vld [vmem:[%s317 + $0x70] sm:$0xff]
        %v3545 = vld [vmem:[%s317 + $0x78] sm:$0xff]
        %v3546 = vld [vmem:[%s317 + $0x80] sm:$0xff]
        %v3547 = vld [vmem:[%s317 + $0x88] sm:$0xff]
        %v3548 = vld [vmem:[%s317 + $0x90] sm:$0xff]
        %v3549 = vld [vmem:[%s317 + $0x98] sm:$0xff]
        %v3550 = vld [vmem:[%s317 + $0xa0] sm:$0xff]
        %v3551 = vld [vmem:[%s317 + $0xa8] sm:$0xff]
        %v3552 = vld [vmem:[%s317 + $0xb0] sm:$0xff]
        %v3553 = vld [vmem:[%s317 + $0xb8] sm:$0xff]
        %v3554 = vld [vmem:[%s317 + $0xc0] sm:$0xff]
        %v3555 = vld [vmem:[%s317 + $0xc8] sm:$0xff]
        %v3556 = vld [vmem:[%s317 + $0xd0] sm:$0xff]
        %v3557 = vld [vmem:[%s317 + $0xd8] sm:$0xff]
        %v3558 = vld [vmem:[%s317 + $0xe0] sm:$0xff]
        %v3559 = vld [vmem:[%s317 + $0xe8] sm:$0xff]
        %v3560 = vld [vmem:[%s317 + $0xf0] sm:$0xff]
        %v3561 = vld [vmem:[%s317 + $0xf8] sm:$0xff]
        %v3562 = vld [vmem:[%s317 + $0x100] sm:$0xff]
        %v3563 = vld [vmem:[%s317 + $0x108] sm:$0xff]
        %v3564 = vld [vmem:[%s317 + $0x110] sm:$0xff]
        %v3565 = vld [vmem:[%s317 + $0x118] sm:$0xff]
        %v3566 = vld [vmem:[%s317 + $0x120] sm:$0xff]
        %v3567 = vld [vmem:[%s317 + $0x128] sm:$0xff]
        %v3568 = vld [vmem:[%s317 + $0x130] sm:$0xff]
        %v3569 = vld [vmem:[%s317 + $0x138] sm:$0xff]
        %v3570 = vld [vmem:[%s317 + $0x140] sm:$0xff]
        %v3571 = vld [vmem:[%s317 + $0x148] sm:$0xff]
        %v3572 = vld [vmem:[%s317 + $0x150] sm:$0xff]
        %v3573 = vld [vmem:[%s317 + $0x158] sm:$0xff]
        %v3574 = vld [vmem:[%s317 + $0x160] sm:$0xff]
        %v3575 = vld [vmem:[%s317 + $0x168] sm:$0xff]
        %v3576 = vld [vmem:[%s317 + $0x170] sm:$0xff]
        %v3577 = vld [vmem:[%s317 + $0x178] sm:$0xff]
        %v3578 = vld [vmem:[%s317 + $0x180] sm:$0xff]
        %v3579 = vld [vmem:[%s317 + $0x188] sm:$0xff]
        %v3580 = vld [vmem:[%s317 + $0x190] sm:$0xff]
        %v3581 = vld [vmem:[%s317 + $0x198] sm:$0xff]
        %v3582 = vld [vmem:[%s317 + $0x1a0] sm:$0xff]
        %v3583 = vld [vmem:[%s317 + $0x1a8] sm:$0xff]
        %v3584 = vld [vmem:[%s317 + $0x1b0] sm:$0xff]
        %v3585 = vld [vmem:[%s317 + $0x1b8] sm:$0xff]
        %v3586 = vld [vmem:[%s317 + $0x1c0] sm:$0xff]
        %v3587 = vld [vmem:[%s317 + $0x1c8] sm:$0xff]
        %v3588 = vld [vmem:[%s317 + $0x1d0] sm:$0xff]
        %v3589 = vld [vmem:[%s317 + $0x1d8] sm:$0xff]
        %v3590 = vld [vmem:[%s317 + $0x1e0] sm:$0xff]
        %v3591 = vld [vmem:[%s317 + $0x1e8] sm:$0xff]
        %v3592 = vld [vmem:[%s317 + $0x1f0] sm:$0xff]
        %v3593 = vld [vmem:[%s317 + $0x1f8] sm:$0xff]
        %v3594 = vld [vmem:[%s317 + $0x200] sm:$0xff]
        %v3595 = vld [vmem:[%s317 + $0x208] sm:$0xff]
        %v3596 = vld [vmem:[%s317 + $0x210] sm:$0xff]
        %v3597 = vld [vmem:[%s317 + $0x218] sm:$0xff]
        %v3598 = vld [vmem:[%s317 + $0x220] sm:$0xff]
        %v3599 = vld [vmem:[%s317 + $0x228] sm:$0xff]
        %v3600 = vld [vmem:[%s317 + $0x230] sm:$0xff]
        %v3601 = vld [vmem:[%s317 + $0x238] sm:$0xff]
        %v3602 = vld [vmem:[%s317 + $0x240] sm:$0xff]
        %v3603 = vld [vmem:[%s317 + $0x248] sm:$0xff]
        %v3604 = vld [vmem:[%s317 + $0x250] sm:$0xff]
        %v3605 = vld [vmem:[%s317 + $0x258] sm:$0xff]
        %v3606 = vld [vmem:[%s317 + $0x260] sm:$0xff]
        %v3607 = vld [vmem:[%s317 + $0x268] sm:$0xff]
        %v3608 = vld [vmem:[%s317 + $0x270] sm:$0xff]
        %v3609 = vld [vmem:[%s317 + $0x278] sm:$0xff]
        %v3610 = vld [vmem:[%s317 + $0x280] sm:$0xff]
        %v3611 = vld [vmem:[%s317 + $0x288] sm:$0xff]
        %v3612 = vld [vmem:[%s317 + $0x290] sm:$0xff]
        %v3613 = vld [vmem:[%s317 + $0x298] sm:$0xff]
        %v3614 = vld [vmem:[%s317 + $0x2a0] sm:$0xff]
        %v3615 = vld [vmem:[%s317 + $0x2a8] sm:$0xff]
        %v3616 = vld [vmem:[%s317 + $0x2b0] sm:$0xff]
        %v3617 = vld [vmem:[%s317 + $0x2b8] sm:$0xff]
        %v3618 = vld [vmem:[%s317 + $0x2c0] sm:$0xff]
        %v3619 = vld [vmem:[%s317 + $0x2c8] sm:$0xff]
        %v3620 = vld [vmem:[%s317 + $0x2d0] sm:$0xff]
        %v3621 = vld [vmem:[%s317 + $0x2d8] sm:$0xff]
        %v3622 = vld [vmem:[%s317 + $0x2e0] sm:$0xff]
        %v3623 = vld [vmem:[%s317 + $0x2e8] sm:$0xff]
        %v3624 = vld [vmem:[%s317 + $0x2f0] sm:$0xff]
        %v3625 = vld [vmem:[%s317 + $0x2f8] sm:$0xff]
        %v3626 = vld [vmem:[%s317 + $0x300] sm:$0xff]
        %v3627 = vld [vmem:[%s317 + $0x308] sm:$0xff]
        %v3628 = vld [vmem:[%s317 + $0x310] sm:$0xff]
        %v3629 = vld [vmem:[%s317 + $0x318] sm:$0xff]
        %v3630 = vld [vmem:[%s317 + $0x320] sm:$0xff]
        %v3631 = vld [vmem:[%s317 + $0x328] sm:$0xff]
        %v3632 = vld [vmem:[%s317 + $0x330] sm:$0xff]
        %v3633 = vld [vmem:[%s317 + $0x338] sm:$0xff]
        %v3634 = vld [vmem:[%s317 + $0x340] sm:$0xff]
        %v3635 = vld [vmem:[%s317 + $0x348] sm:$0xff]
        %v3636 = vld [vmem:[%s317 + $0x350] sm:$0xff]
        %v3637 = vld [vmem:[%s317 + $0x358] sm:$0xff]
        %v3638 = vld [vmem:[%s317 + $0x360] sm:$0xff]
        %v3639 = vld [vmem:[%s317 + $0x368] sm:$0xff]
        %v3640 = vld [vmem:[%s317 + $0x370] sm:$0xff]
        %v3641 = vld [vmem:[%s317 + $0x378] sm:$0xff]
        %v3642 = vld [vmem:[%s317 + $0x380] sm:$0xff]
        %v3643 = vld [vmem:[%s317 + $0x388] sm:$0xff]
        %v3644 = vld [vmem:[%s317 + $0x390] sm:$0xff]
        %v3645 = vld [vmem:[%s317 + $0x398] sm:$0xff]
        %v3646 = vld [vmem:[%s317 + $0x3a0] sm:$0xff]
        %v3647 = vld [vmem:[%s317 + $0x3a8] sm:$0xff]
        %v3648 = vld [vmem:[%s317 + $0x3b0] sm:$0xff]
        %v3649 = vld [vmem:[%s317 + $0x3b8] sm:$0xff]
        %v3650 = vld [vmem:[%s317 + $0x3c0] sm:$0xff]
        %v3651 = vld [vmem:[%s317 + $0x3c8] sm:$0xff]
        %v3652 = vld [vmem:[%s317 + $0x3d0] sm:$0xff]
        %v3653 = vld [vmem:[%s317 + $0x3d8] sm:$0xff]
        %v3654 = vld [vmem:[%s317 + $0x3e0] sm:$0xff]
        %v3655 = vld [vmem:[%s317 + $0x3e8] sm:$0xff]
        %v3656 = vld [vmem:[%s317 + $0x3f0] sm:$0xff]
        %v3657 = vld [vmem:[%s317 + $0x3f8] sm:$0xff]
        %v3658 = vmax.f32 %v3530, %v3148
        %v3659 = vmax.f32 %v3531, %v3151
        %v3660 = vmax.f32 %v3532, %v3154
        %v3661 = vmax.f32 %v3533, %v3157
        %v3662 = vmax.f32 %v3534, %v3160
        %v3663 = vmax.f32 %v3535, %v3163
        %v3664 = vmax.f32 %v3536, %v3166
        %v3665 = vmax.f32 %v3537, %v3169
        %v3666 = vmax.f32 %v3538, %v3172
        %v3667 = vmax.f32 %v3539, %v3175
        %v3668 = vmax.f32 %v3540, %v3178
        %v3669 = vmax.f32 %v3541, %v3181
        %v3670 = vmax.f32 %v3542, %v3184
        %v3671 = vmax.f32 %v3543, %v3187
        %v3672 = vmax.f32 %v3544, %v3190
        %v3673 = vmax.f32 %v3545, %v3193
        %v3674 = vmax.f32 %v3546, %v3196
        %v3675 = vmax.f32 %v3547, %v3199
        %v3676 = vmax.f32 %v3548, %v3202
        %v3677 = vmax.f32 %v3549, %v3205
        %v3678 = vmax.f32 %v3550, %v3208
        %v3679 = vmax.f32 %v3551, %v3211
        %v3680 = vmax.f32 %v3552, %v3214
        %v3681 = vmax.f32 %v3553, %v3217
        %v3682 = vmax.f32 %v3554, %v3220
        %v3683 = vmax.f32 %v3555, %v3223
        %v3684 = vmax.f32 %v3556, %v3226
        %v3685 = vmax.f32 %v3557, %v3229
        %v3686 = vmax.f32 %v3558, %v3232
        %v3687 = vmax.f32 %v3559, %v3235
        %v3688 = vmax.f32 %v3560, %v3238
        %v3689 = vmax.f32 %v3561, %v3241
        %v3690 = vmax.f32 %v3562, %v3244
        %v3691 = vmax.f32 %v3563, %v3247
        %v3692 = vmax.f32 %v3564, %v3250
        %v3693 = vmax.f32 %v3565, %v3253
        %v3694 = vmax.f32 %v3566, %v3256
        %v3695 = vmax.f32 %v3567, %v3259
        %v3696 = vmax.f32 %v3568, %v3262
        %v3697 = vmax.f32 %v3569, %v3265
        %v3698 = vmax.f32 %v3570, %v3268
        %v3699 = vmax.f32 %v3571, %v3271
        %v3700 = vmax.f32 %v3572, %v3274
        %v3701 = vmax.f32 %v3573, %v3277
        %v3702 = vmax.f32 %v3574, %v3280
        %v3703 = vmax.f32 %v3575, %v3283
        %v3704 = vmax.f32 %v3576, %v3286
        %v3705 = vmax.f32 %v3577, %v3289
        %v3706 = vmax.f32 %v3578, %v3292
        %v3707 = vmax.f32 %v3579, %v3295
        %v3708 = vmax.f32 %v3580, %v3298
        %v3709 = vmax.f32 %v3581, %v3301
        %v3710 = vmax.f32 %v3582, %v3304
        %v3711 = vmax.f32 %v3583, %v3307
        %v3712 = vmax.f32 %v3584, %v3310
        %v3713 = vmax.f32 %v3585, %v3313
        %v3714 = vmax.f32 %v3586, %v3316
        %v3715 = vmax.f32 %v3587, %v3319
        %v3716 = vmax.f32 %v3588, %v3322
        %v3717 = vmax.f32 %v3589, %v3325
        %v3718 = vmax.f32 %v3590, %v3328
        %v3719 = vmax.f32 %v3591, %v3331
        %v3720 = vmax.f32 %v3592, %v3334
        %v3721 = vmax.f32 %v3593, %v3337
        %v3722 = vmax.f32 %v3594, %v3340
        %v3723 = vmax.f32 %v3595, %v3343
        %v3724 = vmax.f32 %v3596, %v3346
        %v3725 = vmax.f32 %v3597, %v3349
        %v3726 = vmax.f32 %v3598, %v3352
        %v3727 = vmax.f32 %v3599, %v3355
        %v3728 = vmax.f32 %v3600, %v3358
        %v3729 = vmax.f32 %v3601, %v3361
        %v3730 = vmax.f32 %v3602, %v3364
        %v3731 = vmax.f32 %v3603, %v3367
        %v3732 = vmax.f32 %v3604, %v3370
        %v3733 = vmax.f32 %v3605, %v3373
        %v3734 = vmax.f32 %v3606, %v3376
        %v3735 = vmax.f32 %v3607, %v3379
        %v3736 = vmax.f32 %v3608, %v3382
        %v3737 = vmax.f32 %v3609, %v3385
        %v3738 = vmax.f32 %v3610, %v3388
        %v3739 = vmax.f32 %v3611, %v3391
        %v3740 = vmax.f32 %v3612, %v3394
        %v3741 = vmax.f32 %v3613, %v3397
        %v3742 = vmax.f32 %v3614, %v3400
        %v3743 = vmax.f32 %v3615, %v3403
        %v3744 = vmax.f32 %v3616, %v3406
        %v3745 = vmax.f32 %v3617, %v3409
        %v3746 = vmax.f32 %v3618, %v3412
        %v3747 = vmax.f32 %v3619, %v3415
        %v3748 = vmax.f32 %v3620, %v3418
        %v3749 = vmax.f32 %v3621, %v3421
        %v3750 = vmax.f32 %v3622, %v3424
        %v3751 = vmax.f32 %v3623, %v3427
        %v3752 = vmax.f32 %v3624, %v3430
        %v3753 = vmax.f32 %v3625, %v3433
        %v3754 = vmax.f32 %v3626, %v3436
        %v3755 = vmax.f32 %v3627, %v3439
        %v3756 = vmax.f32 %v3628, %v3442
        %v3757 = vmax.f32 %v3629, %v3445
        %v3758 = vmax.f32 %v3630, %v3448
        %v3759 = vmax.f32 %v3631, %v3451
        %v3760 = vmax.f32 %v3632, %v3454
        %v3761 = vmax.f32 %v3633, %v3457
        %v3762 = vmax.f32 %v3634, %v3460
        %v3763 = vmax.f32 %v3635, %v3463
        %v3764 = vmax.f32 %v3636, %v3466
        %v3765 = vmax.f32 %v3637, %v3469
        %v3766 = vmax.f32 %v3638, %v3472
        %v3767 = vmax.f32 %v3639, %v3475
        %v3768 = vmax.f32 %v3640, %v3478
        %v3769 = vmax.f32 %v3641, %v3481
        %v3770 = vmax.f32 %v3642, %v3484
        %v3771 = vmax.f32 %v3643, %v3487
        %v3772 = vmax.f32 %v3644, %v3490
        %v3773 = vmax.f32 %v3645, %v3493
        %v3774 = vmax.f32 %v3646, %v3496
        %v3775 = vmax.f32 %v3647, %v3499
        %v3776 = vmax.f32 %v3648, %v3502
        %v3777 = vmax.f32 %v3649, %v3505
        %v3778 = vmax.f32 %v3650, %v3508
        %v3779 = vmax.f32 %v3651, %v3511
        %v3780 = vmax.f32 %v3652, %v3514
        %v3781 = vmax.f32 %v3653, %v3517
        %v3782 = vmax.f32 %v3654, %v3520
        %v3783 = vmax.f32 %v3655, %v3523
        %v3784 = vmax.f32 %v3656, %v3526
        %v3785 = vmax.f32 %v3657, %v3529
        %vm3786 = vcmask 7168
        %3787 = vst.msk [vmem:[%s317] sm:$0xff] %vm3786, %v3658
        %3788 = vst.msk [vmem:[%s317 + $0x8] sm:$0xff] %vm3786, %v3659
        %3789 = vst.msk [vmem:[%s317 + $0x10] sm:$0xff] %vm3786, %v3660
        %3790 = vst.msk [vmem:[%s317 + $0x18] sm:$0xff] %vm3786, %v3661
        %3791 = vst.msk [vmem:[%s317 + $0x20] sm:$0xff] %vm3786, %v3662
        %3792 = vst.msk [vmem:[%s317 + $0x28] sm:$0xff] %vm3786, %v3663
        %3793 = vst.msk [vmem:[%s317 + $0x30] sm:$0xff] %vm3786, %v3664
        %3794 = vst.msk [vmem:[%s317 + $0x38] sm:$0xff] %vm3786, %v3665
        %3795 = vst.msk [vmem:[%s317 + $0x40] sm:$0xff] %vm3786, %v3666
        %3796 = vst.msk [vmem:[%s317 + $0x48] sm:$0xff] %vm3786, %v3667
        %3797 = vst.msk [vmem:[%s317 + $0x50] sm:$0xff] %vm3786, %v3668
        %3798 = vst.msk [vmem:[%s317 + $0x58] sm:$0xff] %vm3786, %v3669
        %3799 = vst.msk [vmem:[%s317 + $0x60] sm:$0xff] %vm3786, %v3670
        %3800 = vst.msk [vmem:[%s317 + $0x68] sm:$0xff] %vm3786, %v3671
        %3801 = vst.msk [vmem:[%s317 + $0x70] sm:$0xff] %vm3786, %v3672
        %3802 = vst.msk [vmem:[%s317 + $0x78] sm:$0xff] %vm3786, %v3673
        %3803 = vst.msk [vmem:[%s317 + $0x80] sm:$0xff] %vm3786, %v3674
        %3804 = vst.msk [vmem:[%s317 + $0x88] sm:$0xff] %vm3786, %v3675
        %3805 = vst.msk [vmem:[%s317 + $0x90] sm:$0xff] %vm3786, %v3676
        %3806 = vst.msk [vmem:[%s317 + $0x98] sm:$0xff] %vm3786, %v3677
        %3807 = vst.msk [vmem:[%s317 + $0xa0] sm:$0xff] %vm3786, %v3678
        %3808 = vst.msk [vmem:[%s317 + $0xa8] sm:$0xff] %vm3786, %v3679
        %3809 = vst.msk [vmem:[%s317 + $0xb0] sm:$0xff] %vm3786, %v3680
        %3810 = vst.msk [vmem:[%s317 + $0xb8] sm:$0xff] %vm3786, %v3681
        %3811 = vst.msk [vmem:[%s317 + $0xc0] sm:$0xff] %vm3786, %v3682
        %3812 = vst.msk [vmem:[%s317 + $0xc8] sm:$0xff] %vm3786, %v3683
        %3813 = vst.msk [vmem:[%s317 + $0xd0] sm:$0xff] %vm3786, %v3684
        %3814 = vst.msk [vmem:[%s317 + $0xd8] sm:$0xff] %vm3786, %v3685
        %3815 = vst.msk [vmem:[%s317 + $0xe0] sm:$0xff] %vm3786, %v3686
        %3816 = vst.msk [vmem:[%s317 + $0xe8] sm:$0xff] %vm3786, %v3687
        %3817 = vst.msk [vmem:[%s317 + $0xf0] sm:$0xff] %vm3786, %v3688
        %3818 = vst.msk [vmem:[%s317 + $0xf8] sm:$0xff] %vm3786, %v3689
        %3819 = vst.msk [vmem:[%s317 + $0x100] sm:$0xff] %vm3786, %v3690
        %3820 = vst.msk [vmem:[%s317 + $0x108] sm:$0xff] %vm3786, %v3691
        %3821 = vst.msk [vmem:[%s317 + $0x110] sm:$0xff] %vm3786, %v3692
        %3822 = vst.msk [vmem:[%s317 + $0x118] sm:$0xff] %vm3786, %v3693
        %3823 = vst.msk [vmem:[%s317 + $0x120] sm:$0xff] %vm3786, %v3694
        %3824 = vst.msk [vmem:[%s317 + $0x128] sm:$0xff] %vm3786, %v3695
        %3825 = vst.msk [vmem:[%s317 + $0x130] sm:$0xff] %vm3786, %v3696
        %3826 = vst.msk [vmem:[%s317 + $0x138] sm:$0xff] %vm3786, %v3697
        %3827 = vst.msk [vmem:[%s317 + $0x140] sm:$0xff] %vm3786, %v3698
        %3828 = vst.msk [vmem:[%s317 + $0x148] sm:$0xff] %vm3786, %v3699
        %3829 = vst.msk [vmem:[%s317 + $0x150] sm:$0xff] %vm3786, %v3700
        %3830 = vst.msk [vmem:[%s317 + $0x158] sm:$0xff] %vm3786, %v3701
        %3831 = vst.msk [vmem:[%s317 + $0x160] sm:$0xff] %vm3786, %v3702
        %3832 = vst.msk [vmem:[%s317 + $0x168] sm:$0xff] %vm3786, %v3703
        %3833 = vst.msk [vmem:[%s317 + $0x170] sm:$0xff] %vm3786, %v3704
        %3834 = vst.msk [vmem:[%s317 + $0x178] sm:$0xff] %vm3786, %v3705
        %3835 = vst.msk [vmem:[%s317 + $0x180] sm:$0xff] %vm3786, %v3706
        %3836 = vst.msk [vmem:[%s317 + $0x188] sm:$0xff] %vm3786, %v3707
        %3837 = vst.msk [vmem:[%s317 + $0x190] sm:$0xff] %vm3786, %v3708
        %3838 = vst.msk [vmem:[%s317 + $0x198] sm:$0xff] %vm3786, %v3709
        %3839 = vst.msk [vmem:[%s317 + $0x1a0] sm:$0xff] %vm3786, %v3710
        %3840 = vst.msk [vmem:[%s317 + $0x1a8] sm:$0xff] %vm3786, %v3711
        %3841 = vst.msk [vmem:[%s317 + $0x1b0] sm:$0xff] %vm3786, %v3712
        %3842 = vst.msk [vmem:[%s317 + $0x1b8] sm:$0xff] %vm3786, %v3713
        %3843 = vst.msk [vmem:[%s317 + $0x1c0] sm:$0xff] %vm3786, %v3714
        %3844 = vst.msk [vmem:[%s317 + $0x1c8] sm:$0xff] %vm3786, %v3715
        %3845 = vst.msk [vmem:[%s317 + $0x1d0] sm:$0xff] %vm3786, %v3716
        %3846 = vst.msk [vmem:[%s317 + $0x1d8] sm:$0xff] %vm3786, %v3717
        %3847 = vst.msk [vmem:[%s317 + $0x1e0] sm:$0xff] %vm3786, %v3718
        %3848 = vst.msk [vmem:[%s317 + $0x1e8] sm:$0xff] %vm3786, %v3719
        %3849 = vst.msk [vmem:[%s317 + $0x1f0] sm:$0xff] %vm3786, %v3720
        %3850 = vst.msk [vmem:[%s317 + $0x1f8] sm:$0xff] %vm3786, %v3721
        %3851 = vst.msk [vmem:[%s317 + $0x200] sm:$0xff] %vm3786, %v3722
        %3852 = vst.msk [vmem:[%s317 + $0x208] sm:$0xff] %vm3786, %v3723
        %3853 = vst.msk [vmem:[%s317 + $0x210] sm:$0xff] %vm3786, %v3724
        %3854 = vst.msk [vmem:[%s317 + $0x218] sm:$0xff] %vm3786, %v3725
        %3855 = vst.msk [vmem:[%s317 + $0x220] sm:$0xff] %vm3786, %v3726
        %3856 = vst.msk [vmem:[%s317 + $0x228] sm:$0xff] %vm3786, %v3727
        %3857 = vst.msk [vmem:[%s317 + $0x230] sm:$0xff] %vm3786, %v3728
        %3858 = vst.msk [vmem:[%s317 + $0x238] sm:$0xff] %vm3786, %v3729
        %3859 = vst.msk [vmem:[%s317 + $0x240] sm:$0xff] %vm3786, %v3730
        %3860 = vst.msk [vmem:[%s317 + $0x248] sm:$0xff] %vm3786, %v3731
        %3861 = vst.msk [vmem:[%s317 + $0x250] sm:$0xff] %vm3786, %v3732
        %3862 = vst.msk [vmem:[%s317 + $0x258] sm:$0xff] %vm3786, %v3733
        %3863 = vst.msk [vmem:[%s317 + $0x260] sm:$0xff] %vm3786, %v3734
        %3864 = vst.msk [vmem:[%s317 + $0x268] sm:$0xff] %vm3786, %v3735
        %3865 = vst.msk [vmem:[%s317 + $0x270] sm:$0xff] %vm3786, %v3736
        %3866 = vst.msk [vmem:[%s317 + $0x278] sm:$0xff] %vm3786, %v3737
        %3867 = vst.msk [vmem:[%s317 + $0x280] sm:$0xff] %vm3786, %v3738
        %3868 = vst.msk [vmem:[%s317 + $0x288] sm:$0xff] %vm3786, %v3739
        %3869 = vst.msk [vmem:[%s317 + $0x290] sm:$0xff] %vm3786, %v3740
        %3870 = vst.msk [vmem:[%s317 + $0x298] sm:$0xff] %vm3786, %v3741
        %3871 = vst.msk [vmem:[%s317 + $0x2a0] sm:$0xff] %vm3786, %v3742
        %3872 = vst.msk [vmem:[%s317 + $0x2a8] sm:$0xff] %vm3786, %v3743
        %3873 = vst.msk [vmem:[%s317 + $0x2b0] sm:$0xff] %vm3786, %v3744
        %3874 = vst.msk [vmem:[%s317 + $0x2b8] sm:$0xff] %vm3786, %v3745
        %3875 = vst.msk [vmem:[%s317 + $0x2c0] sm:$0xff] %vm3786, %v3746
        %3876 = vst.msk [vmem:[%s317 + $0x2c8] sm:$0xff] %vm3786, %v3747
        %3877 = vst.msk [vmem:[%s317 + $0x2d0] sm:$0xff] %vm3786, %v3748
        %3878 = vst.msk [vmem:[%s317 + $0x2d8] sm:$0xff] %vm3786, %v3749
        %3879 = vst.msk [vmem:[%s317 + $0x2e0] sm:$0xff] %vm3786, %v3750
        %3880 = vst.msk [vmem:[%s317 + $0x2e8] sm:$0xff] %vm3786, %v3751
        %3881 = vst.msk [vmem:[%s317 + $0x2f0] sm:$0xff] %vm3786, %v3752
        %3882 = vst.msk [vmem:[%s317 + $0x2f8] sm:$0xff] %vm3786, %v3753
        %3883 = vst.msk [vmem:[%s317 + $0x300] sm:$0xff] %vm3786, %v3754
        %3884 = vst.msk [vmem:[%s317 + $0x308] sm:$0xff] %vm3786, %v3755
        %3885 = vst.msk [vmem:[%s317 + $0x310] sm:$0xff] %vm3786, %v3756
        %3886 = vst.msk [vmem:[%s317 + $0x318] sm:$0xff] %vm3786, %v3757
        %3887 = vst.msk [vmem:[%s317 + $0x320] sm:$0xff] %vm3786, %v3758
        %3888 = vst.msk [vmem:[%s317 + $0x328] sm:$0xff] %vm3786, %v3759
        %3889 = vst.msk [vmem:[%s317 + $0x330] sm:$0xff] %vm3786, %v3760
        %3890 = vst.msk [vmem:[%s317 + $0x338] sm:$0xff] %vm3786, %v3761
        %3891 = vst.msk [vmem:[%s317 + $0x340] sm:$0xff] %vm3786, %v3762
        %3892 = vst.msk [vmem:[%s317 + $0x348] sm:$0xff] %vm3786, %v3763
        %3893 = vst.msk [vmem:[%s317 + $0x350] sm:$0xff] %vm3786, %v3764
        %3894 = vst.msk [vmem:[%s317 + $0x358] sm:$0xff] %vm3786, %v3765
        %3895 = vst.msk [vmem:[%s317 + $0x360] sm:$0xff] %vm3786, %v3766
        %3896 = vst.msk [vmem:[%s317 + $0x368] sm:$0xff] %vm3786, %v3767
        %3897 = vst.msk [vmem:[%s317 + $0x370] sm:$0xff] %vm3786, %v3768
        %3898 = vst.msk [vmem:[%s317 + $0x378] sm:$0xff] %vm3786, %v3769
        %3899 = vst.msk [vmem:[%s317 + $0x380] sm:$0xff] %vm3786, %v3770
        %3900 = vst.msk [vmem:[%s317 + $0x388] sm:$0xff] %vm3786, %v3771
        %3901 = vst.msk [vmem:[%s317 + $0x390] sm:$0xff] %vm3786, %v3772
        %3902 = vst.msk [vmem:[%s317 + $0x398] sm:$0xff] %vm3786, %v3773
        %3903 = vst.msk [vmem:[%s317 + $0x3a0] sm:$0xff] %vm3786, %v3774
        %3904 = vst.msk [vmem:[%s317 + $0x3a8] sm:$0xff] %vm3786, %v3775
        %3905 = vst.msk [vmem:[%s317 + $0x3b0] sm:$0xff] %vm3786, %v3776
        %3906 = vst.msk [vmem:[%s317 + $0x3b8] sm:$0xff] %vm3786, %v3777
        %3907 = vst.msk [vmem:[%s317 + $0x3c0] sm:$0xff] %vm3786, %v3778
        %3908 = vst.msk [vmem:[%s317 + $0x3c8] sm:$0xff] %vm3786, %v3779
        %3909 = vst.msk [vmem:[%s317 + $0x3d0] sm:$0xff] %vm3786, %v3780
        %3910 = vst.msk [vmem:[%s317 + $0x3d8] sm:$0xff] %vm3786, %v3781
        %3911 = vst.msk [vmem:[%s317 + $0x3e0] sm:$0xff] %vm3786, %v3782
        %3912 = vst.msk [vmem:[%s317 + $0x3e8] sm:$0xff] %vm3786, %v3783
        %3913 = vst.msk [vmem:[%s317 + $0x3f0] sm:$0xff] %vm3786, %v3784
        %3914 = vst.msk [vmem:[%s317 + $0x3f8] sm:$0xff] %vm3786, %v3785
        %p3915 = scmp.lt.s32.totalorder %s25, 1
        %s3916 = scalar_select %p3915, %s25, 1
        %s3917 = smul.addr %s3916, 128
        %s3918 = smul.addr %s3917, 8
        %s3919 = scalar_lea.vmem %s7, %s3918
        // Predicated region
        $region57: #{stnkd_forward.2} parent=47 // pred_check
          %p3920 = pneg %p205
        $region58: #{stnkd_forward.2} parent=47 // pred_check_branch
          %3922 = sbr.rel (%p3920) target = $region60
        $region59: #{stnkd_forward.2} parent=47 // pred_region
          _
        $region60: #{stnkd_forward.2} parent=47 // pred_fallthru
          _
      $region48: #{stnkd_forward.2} parent=5 // pred_fallthru
        _
      %p3923 = scmp.le.s32.totalorder 2, %s16
      // Predicated region
      $region61: #{stnkd_forward.2} parent=5 // pred_check
        %p3924 = pneg %p3923
      $region62: #{stnkd_forward.2} parent=5 // pred_check_branch
        %3926 = sbr.rel (%p3924) target = $region64
      $region63: #{stnkd_forward.2} parent=5 // pred_region
        %s3927 = ssub.s32 %s16, 2
        // Predicated region
        $region65: #{stnkd_forward.2} parent=63 // pred_check
          %p3928 = pneg %p211
        $region66: #{stnkd_forward.2} parent=63 // pred_check_branch
          %3930 = sbr.rel (%p3928) target = $region68
        $region67: #{stnkd_forward.2} parent=63 // pred_region
          %p3931 = scmp.lt.s32.totalorder %s27, 1
          %s3932 = scalar_select %p3931, %s27, 1
          %s3933 = smul.addr %s3932, 128
          %s3934 = smul.addr %s3933, 8
          %s3935 = scalar_lea.vmem %s7, %s3934
        $region68: #{stnkd_forward.2} parent=63 // pred_fallthru
          _
      $region64: #{stnkd_forward.2} parent=5 // pred_fallthru
        _
    $region6: #{stnkd_forward.2} parent=1 // loop_footer
      %s20 = sadd.s32 1, %s16
    $region7: #{stnkd_forward.2} parent=1 // loop_footer_branch
      %15 = sbr.rel target = $region3
    $region8: #{stnkd_forward.2} parent=1 // loop_exit
      _
    %3936 = vsyncpa [#allocation3], 1
    %s3937 = scalar_lea.sflag [#allocation3], 1
    %3938 = vsyncpa %s3937, 1

</llo_original>
